<compile_context>
chip_gen: v7x
topology: tpu7x:2x2x1
jax: 0.10.0
libtpu: 0.0.40
codegen_flags: <defaults>
</compile_context>

<pallas_src>
import functools

import jax
import jax.numpy as jnp
from jax import lax
from jax.experimental import pallas as pl
from jax.experimental.pallas import tpu as pltpu

NEG_SLOPE = 0.2                       # GATv2Conv default negative_slope
LR_ALPHA = 0.5 * (1.0 + NEG_SLOPE)    # leaky_relu(z) = LR_ALPHA*z + LR_BETA*|z|
LR_BETA = 0.5 * (1.0 - NEG_SLOPE)
GN_EPS = 1e-5                         # GraphNorm eps
NEG_INF = -1e30                       # softmax mask value
MXU_DTYPE = jnp.bfloat16              # bf16 MXU operands, f32 accumulation


# --------------------------------------------------------------------------------------
# Kernels
# --------------------------------------------------------------------------------------
def _proj_kernel(x_ref, w_ref, b_ref, xr_ref, xl_ref, xlT_ref, *, hc):
    """Fused GATv2 projections: one MXU matmul for [lin_l | lin_r].

    Outputs: xr (targets, f32), xl (sources, bf16 aggregation RHS), xl^T (f32, sources on
    the lane axis for the logit loop) -- the transpose is done here, not in the wrapper.
    """
    xw = jnp.dot(x_ref[...].astype(MXU_DTYPE), w_ref[...].astype(MXU_DTYPE),
                 preferred_element_type=jnp.float32) + b_ref[...]
    xl = xw[:, :hc]                         # source-node projection (lin_l)
    xr_ref[...] = xw[:, hc:]                # target-node projection (lin_r)
    xl_ref[...] = xl.astype(MXU_DTYPE)      # bf16: exactly what the MXU aggregation uses
    xlT_ref[...] = xl.T                     # lane-dense transposed store


def _attn_kernel(xr_ref, xl_ref, xlT_ref, adj_ref, att_ref, bias_ref, o_ref,
                 m_sc, l_sc, acc_sc, *, num_heads, out_channels, concat):
    """GATv2 attention + aggregation: one (target-tile, source-tile) grid step.

    xr_ref  : (TM, H*C)  f32  target projections for this target tile
    xl_ref  : (TS, H*C)  bf16 source projections for this source tile (aggregation RHS)
    xlT_ref : (H*C, TS)  f32  same sources, transposed -> sources on the lane axis
    adj_ref : (TM, TS)   int8 adjacency mask (target row, source column), self-loops added
    att_ref : (H, C)     f32  GATv2 attention vector (SMEM -> scalar reads)
    bias_ref: (1, d_out) f32  GATv2Conv output bias
    Scratch : running max m (TM, H), running sum l (TM, H), accumulator acc (TM, H*C),
              online-softmax (flash-style) across the "arbitrary" source axis.
    """
    j = pl.program_id(1)

    @pl.when(j == 0)
    def _():
        m_sc[...] = jnp.full_like(m_sc, NEG_INF)
        l_sc[...] = jnp.zeros_like(l_sc)
        acc_sc[...] = jnp.zeros_like(acc_sc)

    mask = adj_ref[...] != 0                       # (TM, TS) bool, hoisted once per tile
    xr = xr_ref[...]                               # (TM, H*C) f32
    xlT = xlT_ref[...]                             # (H*C, TS) f32

    for h in range(num_heads):
        lo = h * out_channels

        # Linear part of leaky_relu as a rank-1 outer sum: u_i = a_h.xr_i, v_j = a_h.xl_j.
        u = None
        v = None
        for c in range(out_channels):
            a_c = att_ref[h, c]                               # SMEM scalar
            uc = a_c * xr[:, lo + c:lo + c + 1]               # (TM, 1)
            vc = a_c * xlT[lo + c:lo + c + 1, :]              # (1, TS)
            u = uc if u is None else u + uc
            v = vc if v is None else v + vc
        e = LR_ALPHA * (u + v)                                # (TM, TS)

        # |z| part: 4 VALU ops per element per channel (add, abs, scalar-mul, accumulate).
        for c in range(out_channels):
            scale = LR_BETA * att_ref[h, c]
            z = xr[:, lo + c:lo + c + 1] + xlT[lo + c:lo + c + 1, :]
            e = e + scale * jnp.abs(z)

        # Masked online softmax over source neighbours (exp underflows masked -> exactly 0).
        e = jnp.where(mask, e, NEG_INF)
        m_prev = m_sc[:, h:h + 1]
        m_new = jnp.maximum(m_prev, jnp.max(e, axis=1, keepdims=True))
        corr = jnp.exp(m_prev - m_new)
        p = jnp.exp(e - m_new)
        l_sc[:, h:h + 1] = corr * l_sc[:, h:h + 1] + jnp.sum(p, axis=1, keepdims=True)

        # Aggregate this source tile (bf16 MXU matmul); normalisation folded at finalize.
        agg = jnp.dot(p.astype(MXU_DTYPE), xl_ref[:, lo:lo + out_channels],
                      preferred_element_type=jnp.float32)     # (TM, C)
        acc_sc[:, lo:lo + out_channels] = corr * acc_sc[:, lo:lo + out_channels] + agg
        m_sc[:, h:h + 1] = m_new

    @pl.when(j == pl.num_programs(1) - 1)
    def _():
        acc = acc_sc[...]
        inv = pl.reciprocal(jnp.maximum(l_sc[...], 1e-20), approx=True)   # (TM, H), EUP
        heads = [acc[:, h * out_channels:(h + 1) * out_channels] * inv[:, h:h + 1]
                 for h in range(num_heads)]
        if concat:
            out = jnp.concatenate(heads, axis=-1)              # (TM, H*C)
        else:
            out = heads[0]
            for ho in heads[1:]:
                out = out + ho
            out = out * (1.0 / num_heads)
        o_ref[...] = out + bias_ref[...]                       # single store of the block


def _gn_stats_kernel(x_ref, sum_ref, sq_ref):
    """Per-channel sum / sum-of-squares, accumulated across row tiles (axis 'arbitrary')."""
    @pl.when(pl.program_id(0) == 0)
    def _():
        sum_ref[...] = jnp.zeros_like(sum_ref)
        sq_ref[...] = jnp.zeros_like(sq_ref)
    x = x_ref[...]
    sum_ref[...] += jnp.sum(x, axis=0, keepdims=True)
    sq_ref[...] += jnp.sum(x * x, axis=0, keepdims=True)


def _gn_norm_relu_kernel(x_ref, sum_ref, sq_ref, w_ref, b_ref, ms_ref, o_ref, *, inv_n):
    """GraphNorm normalise (from precomputed moments) + ReLU, row-tiled ('parallel')."""
    mean = sum_ref[...] * inv_n
    ex2 = sq_ref[...] * inv_n
    ms = ms_ref[...]
    # E[(x - mean*ms)^2] = E[x^2] - mean^2 * ms * (2 - ms)
    var = ex2 - mean * mean * ms * (2.0 - ms)
    scale = w_ref[...] * lax.rsqrt(var + GN_EPS)
    o_ref[...] = jnp.maximum(scale * (x_ref[...] - mean * ms) + b_ref[...], 0.0)


# --------------------------------------------------------------------------------------
# Wrappers
# --------------------------------------------------------------------------------------
def _row_tile(n, cap):
    """Full-extent blocks are always legal; otherwise tile in multiples of 8 sublanes."""
    if n <= cap:
        return n
    assert n % cap == 0, "pad num_nodes to a multiple of the row tile for large graphs"
    return cap


def _attn_tiles(n):
    """Generation-aware target/source tiles and VMEM budget for the attention kernel."""
    try:
        vmem_cap = pltpu.get_tpu_info().vmem_capacity_bytes
    except Exception:                       # conservative fallback (v7x-sized)
        vmem_cap = 64 * 1024 * 1024
    if vmem_cap >= 96 * 1024 * 1024:        # v5e / v6e: 128 MiB physical VMEM
        tm_cap, ts_cap, vmem_limit = 256, 512, 96 * 1024 * 1024
    else:                                   # v7x: 64 MiB per TensorCore
        tm_cap, ts_cap, vmem_limit = 128, 512, 48 * 1024 * 1024
    if n <= tm_cap:
        # Even 2-tile grid (when legal) so the "parallel" axis splits across both v7x TCs.
        tm = n // 2 if (n % 16 == 0 and n >= 16) else n
    else:
        assert n % tm_cap == 0, "pad num_nodes to a multiple of the target tile"
        tm = tm_cap
    ts = _row_tile(n, ts_cap)
    return tm, ts, vmem_limit


def gatv2_block_forward(x, adj, params, *, num_heads, out_channels, concat):
    """One dgcn block: GATv2Conv (dense-masked) + GraphNorm + ReLU."""
    n, f_in = x.shape
    hc = num_heads * out_channels
    d_out = hc if concat else out_channels

    # Fuse the two projection weights -> one MXU matmul in the kernel.
    w_fused = jnp.concatenate([params["wl"], params["wr"]], axis=1)   # (F_in, 2*H*C)
    b_fused = jnp.concatenate([params["bl"], params["br"]], axis=1)   # (1, 2*H*C)

    # ---- 1) fused projection (xr f32, xl bf16, xl^T f32), tiled over node rows ---------
    tp = _row_tile(n, 256)
    xr, xl_bf16, xlT = pl.pallas_call(
        functools.partial(_proj_kernel, hc=hc),
        grid=(n // tp,),
        in_specs=[pl.BlockSpec((tp, f_in), lambda i: (i, 0)),
                  pl.BlockSpec((f_in, 2 * hc), lambda i: (0, 0)),
                  pl.BlockSpec((1, 2 * hc), lambda i: (0, 0))],
        out_specs=(pl.BlockSpec((tp, hc), lambda i: (i, 0)),
                   pl.BlockSpec((tp, hc), lambda i: (i, 0)),
                   pl.BlockSpec((hc, tp), lambda i: (0, i))),
        out_shape=(jax.ShapeDtypeStruct((n, hc), jnp.float32),
                   jax.ShapeDtypeStruct((n, hc), MXU_DTYPE),
                   jax.ShapeDtypeStruct((hc, n), jnp.float32)),
        compiler_params=pltpu.CompilerParams(dimension_semantics=("parallel",)),
    )(x, w_fused, b_fused)

    # ---- 2) attention + aggregation: (target tiles "parallel") x (source tiles "arbitrary")
    tm, ts, vmem_limit = _attn_tiles(n)
    attn_out = pl.pallas_call(
        functools.partial(_attn_kernel, num_heads=num_heads,
                          out_channels=out_channels, concat=concat),
        grid=(n // tm, n // ts),
        in_specs=[pl.BlockSpec((tm, hc), lambda i, j: (i, 0)),        # xr (targets)
                  pl.BlockSpec((ts, hc), lambda i, j: (j, 0)),        # xl bf16 (source tile)
                  pl.BlockSpec((hc, ts), lambda i, j: (0, j)),        # xl^T (lanes = sources)
                  pl.BlockSpec((tm, ts), lambda i, j: (i, j)),        # adjacency mask (int8)
                  pl.BlockSpec(memory_space=pltpu.MemorySpace.SMEM),  # att (scalar table)
                  pl.BlockSpec((1, d_out), lambda i, j: (0, 0))],     # bias
        out_specs=pl.BlockSpec((tm, d_out), lambda i, j: (i, 0)),
        out_shape=jax.ShapeDtypeStruct((n, d_out), jnp.float32),
        scratch_shapes=[pltpu.VMEM((tm, num_heads), jnp.float32),     # running max
                        pltpu.VMEM((tm, num_heads), jnp.float32),     # running sum
                        pltpu.VMEM((tm, hc), jnp.float32)],           # accumulator
        compiler_params=pltpu.CompilerParams(
            dimension_semantics=("parallel", "arbitrary"),
            vmem_limit_bytes=vmem_limit),
    )(xr, xl_bf16, xlT, adj, params["att"], params["bias"])

    # ---- 3) GraphNorm + ReLU: tiled stats pass then tiled normalise pass ----------------
    tg = _row_tile(n, 512)
    col_sum, col_sq = pl.pallas_call(
        _gn_stats_kernel,
        grid=(n // tg,),
        in_specs=[pl.BlockSpec((tg, d_out), lambda i: (i, 0))],
        out_specs=(pl.BlockSpec((1, d_out), lambda i: (0, 0)),
                   pl.BlockSpec((1, d_out), lambda i: (0, 0))),
        out_shape=(jax.ShapeDtypeStruct((1, d_out), jnp.float32),
                   jax.ShapeDtypeStruct((1, d_out), jnp.float32)),
        compiler_params=pltpu.CompilerParams(dimension_semantics=("arbitrary",)),
    )(attn_out)

    out = pl.pallas_call(
        functools.partial(_gn_norm_relu_kernel, inv_n=1.0 / n),
        grid=(n // tg,),
        in_specs=[pl.BlockSpec((tg, d_out), lambda i: (i, 0)),
                  pl.BlockSpec((1, d_out), lambda i: (0, 0)),
                  pl.BlockSpec((1, d_out), lambda i: (0, 0)),
                  pl.BlockSpec((1, d_out), lambda i: (0, 0)),
                  pl.BlockSpec((1, d_out), lambda i: (0, 0)),
                  pl.BlockSpec((1, d_out), lambda i: (0, 0))],
        out_specs=pl.BlockSpec((tg, d_out), lambda i: (i, 0)),
        out_shape=jax.ShapeDtypeStruct((n, d_out), jnp.float32),
        compiler_params=pltpu.CompilerParams(dimension_semantics=("parallel",)),
    )(attn_out, col_sum, col_sq, params["gn_weight"], params["gn_bias"],
      params["gn_mean_scale"])
    return out


def _dense_adj_int8(edge_index, n):
    """Dense int8 adjacency mask adj[i, j] = 1 iff edge j -> i, with self-loops."""
    src, tgt = edge_index[0], edge_index[1]
    adj = jnp.zeros((n, n), jnp.int8).at[tgt, src].set(1)
    return jnp.maximum(adj, jnp.eye(n, dtype=jnp.int8))   # GATv2Conv add_self_loops=True


@functools.partial(jax.jit, static_argnames=("num_heads", "out_channels", "concat"))
def dgcn_layers_forward(x, edge_index, params_list, *, num_heads, out_channels, concat):
    """dgcn_layers.forward: for each block, y = block(x); x = cat((x, y.unsqueeze(-2)), -2).

    Each block consumes the most recent layer's node features (consistent with the
    nn_layers channel wiring); the dense stack along axis -2 collects input + all layers,
    built with a single final stack instead of per-block re-concatenation.
    """
    n = x.shape[0]
    d_out = num_heads * out_channels if concat else out_channels
    assert x.shape[-1] == d_out, "dense layer-stacking requires in_channels == block d_out"
    adj = _dense_adj_int8(edge_index, n)

    layer_outs = [x]
    feats = x
    for p in params_list:
        feats = gatv2_block_forward(feats, adj, p, num_heads=num_heads,
                                    out_channels=out_channels, concat=concat)
        layer_outs.append(feats)
    return jnp.stack(layer_outs, axis=-2)


# --------------------------------------------------------------------------------------
# Parameters + pure-JAX reference
# --------------------------------------------------------------------------------------
def init_params(key, in_channels, out_channels, num_heads, concat):
    """Deterministic synthetic parameters matching GATv2Conv + GraphNorm shapes."""
    hc = num_heads * out_channels
    d_out = hc if concat else out_channels
    ks = jax.random.split(key, 9)

    def glorot(k, shape):
        limit = jnp.sqrt(6.0 / (shape[0] + shape[1]))
        return jax.random.uniform(k, shape, jnp.float32, -limit, limit)

    def unif(k, shape, lo, hi):
        return jax.random.uniform(k, shape, jnp.float32, lo, hi)

    return {
        "wl": glorot(ks[0], (in_channels, hc)),           # lin_l weight (transposed)
        "bl": unif(ks[1], (1, hc), -0.1, 0.1),            # lin_l bias
        "wr": glorot(ks[2], (in_channels, hc)),           # lin_r weight (transposed)
        "br": unif(ks[3], (1, hc), -0.1, 0.1),            # lin_r bias
        "att": glorot(ks[4], (num_heads, out_channels)),  # attention vector a
        "bias": unif(ks[5], (1, d_out), -0.1, 0.1),       # GATv2Conv output bias
        "gn_weight": unif(ks[6], (1, d_out), 0.8, 1.2),
        "gn_bias": unif(ks[7], (1, d_out), -0.1, 0.1),
        "gn_mean_scale": unif(ks[8], (1, d_out), 0.8, 1.2),
    }


def reference_block(x, adj, params, *, num_heads, out_channels, concat):
    """Pure-JAX GATv2Conv + GraphNorm + ReLU, numerics-matched to the kernel
    (bf16 MXU operands, softmax normalisation folded after the aggregation)."""
    n = x.shape[0]
    hc = num_heads * out_channels
    w = jnp.concatenate([params["wl"], params["wr"]], axis=1)
    b = jnp.concatenate([params["bl"], params["br"]], axis=1)
    xw = jnp.dot(x.astype(MXU_DTYPE), w.astype(MXU_DTYPE),
                 preferred_element_type=jnp.float32) + b
    xl = xw[:, :hc].reshape(n, num_heads, out_channels)
    xr = xw[:, hc:].reshape(n, num_heads, out_channels)

    s = xr[:, None] + xl[None, :]                                   # (tgt, src, H, C)
    s = jnp.where(s > 0, s, NEG_SLOPE * s)
    e = jnp.einsum("ijhc,hc->ijh", s, params["att"])
    mask = (adj > 0)[:, :, None]
    e = jnp.where(mask, e, NEG_INF)
    e = e - jnp.max(e, axis=1, keepdims=True)
    p = jnp.exp(e) * mask.astype(jnp.float32)
    denom = jnp.maximum(jnp.sum(p, axis=1, keepdims=True), 1e-20)   # (tgt, 1, H)
    agg = jnp.einsum("ijh,jhc->ihc", p.astype(MXU_DTYPE), xl.astype(MXU_DTYPE),
                     preferred_element_type=jnp.float32)            # (tgt, H, C)
    out = agg / jnp.swapaxes(denom, 1, 2)
    out = out.reshape(n, hc) if concat else out.mean(axis=1)
    out = out + params["bias"]

    mean = jnp.mean(out, axis=0, keepdims=True)
    centered = out - mean * params["gn_mean_scale"]
    var = jnp.mean(centered * centered, axis=0, keepdims=True)
    y = params["gn_weight"] * centered * lax.rsqrt(var + GN_EPS) + params["gn_bias"]
    return jnp.maximum(y, 0.0)


def reference_dgcn_layers(x, edge_index, params_list, *, num_heads, out_channels, concat):
    n = x.shape[0]
    adj = _dense_adj_int8(edge_index, n)
    layer_outs = [x]
    feats = x
    for p in params_list:
        feats = reference_block(feats, adj, p, num_heads=num_heads,
                                out_channels=out_channels, concat=concat)
        layer_outs.append(feats)
    return jnp.stack(layer_outs, axis=-2)


# --------------------------------------------------------------------------------------
# Demo / correctness check
# --------------------------------------------------------------------------------------
if __name__ == "__main__":
    # F_IN == HEADS*C_OUT so the dense stacking along dim -2 is a valid concatenation.
    N, F_IN, HEADS, C_OUT, CONCAT = 8, 32, 2, 16, True
    NUM_BLOCKS = 2

    key = jax.random.PRNGKey(0)
    kx, kp = jax.random.split(key)
    x = jax.random.normal(kx, (N, F_IN), jnp.float32)

    # Deterministic bidirectional ring graph (PyG layout: row 0 = sources, row 1 = targets).
    ids = jnp.arange(N, dtype=jnp.int32)
    edge_index = jnp.stack([
        jnp.concatenate([ids, (ids + 1) % N]),
        jnp.concatenate([(ids + 1) % N, ids]),
    ])

    params_list = [init_params(k, F_IN, C_OUT, HEADS, CONCAT)
                   for k in jax.random.split(kp, NUM_BLOCKS)]

    out = dgcn_layers_forward(x, edge_index, params_list,
                              num_heads=HEADS, out_channels=C_OUT, concat=CONCAT)
    out = jax.block_until_ready(out)

    ref = reference_dgcn_layers(x, edge_index, params_list,
                                num_heads=HEADS, out_channels=C_OUT, concat=CONCAT)

    assert out.shape == (N, NUM_BLOCKS + 1, HEADS * C_OUT if CONCAT else C_OUT)
    # Tolerance covers the approx (EUP) reciprocal in the softmax normalisation and the
    # moments-based GraphNorm variance propagating through two stacked blocks; everything
    # else is numerics-matched (bf16 MXU operands in both kernel and reference).
    max_err = float(jnp.max(jnp.abs(out - ref)))
    assert jnp.allclose(out, ref, rtol=3e-2, atol=3e-2), f"mismatch: max|diff|={max_err}"
    print("KERNEL_OK")
</pallas_src>

<mosaic_0001>
module attributes {stable_mosaic.version = 11 : i64} {
  func.func @_proj_kernel(%arg0: i32, %arg1: memref<8x32xf32, #tpu.memory_space<vmem>>, %arg2: memref<32x64xf32, #tpu.memory_space<vmem>>, %arg3: memref<1x64xf32, #tpu.memory_space<vmem>>, %arg4: memref<8x32xf32, #tpu.memory_space<vmem>>, %arg5: memref<8x32xbf16, #tpu.memory_space<vmem>>, %arg6: memref<32x8xf32, #tpu.memory_space<vmem>>) attributes {dimension_semantics = [#tpu.dimension_semantics<parallel>], iteration_bounds = array<i64: 1>, scalar_prefetch = 0 : i64, scratch_operands = 0 : i64, tpu.core_type = #tpu.core_type<tc>, window_params = [{transform_indices = @transform_0, window_bounds = array<i64: 8, 32>}, {pipeline_mode = #tpu.pipeline_mode<synchronous>, transform_indices = @transform_1, window_bounds = array<i64: 32, 64>}, {pipeline_mode = #tpu.pipeline_mode<synchronous>, transform_indices = @transform_2, window_bounds = array<i64: 1, 64>}, {transform_indices = @transform_3, window_bounds = array<i64: 8, 32>}, {transform_indices = @transform_4, window_bounds = array<i64: 8, 32>}, {transform_indices = @transform_5, window_bounds = array<i64: 32, 8>}]} {
    %c0 = arith.constant 0 : index
    %c0_0 = arith.constant 0 : index
    %0 = vector.load %arg1[%c0, %c0_0] : memref<8x32xf32, #tpu.memory_space<vmem>>, vector<8x32xf32>
    %1 = arith.truncf %0 : vector<8x32xf32> to vector<8x32xbf16>
    %c0_1 = arith.constant 0 : index
    %c0_2 = arith.constant 0 : index
    %2 = vector.load %arg2[%c0_1, %c0_2] : memref<32x64xf32, #tpu.memory_space<vmem>>, vector<32x64xf32>
    %3 = arith.truncf %2 : vector<32x64xf32> to vector<32x64xbf16>
    %cst = arith.constant dense<0.000000e+00> : vector<8x64xf32>
    %4 = tpu.matmul %1, %3, %cst {dimension_numbers = #tpu.dot_dimension_numbers<[1], [0], [0], [1], [0, 0, 1, 1], [], []>} : vector<8x32xbf16>, vector<32x64xbf16>, vector<8x64xf32> -> vector<8x64xf32>
    %c0_3 = arith.constant 0 : index
    %c0_4 = arith.constant 0 : index
    %5 = vector.load %arg3[%c0_3, %c0_4] : memref<1x64xf32, #tpu.memory_space<vmem>>, vector<1x64xf32>
    %6 = vector.broadcast %5 : vector<1x64xf32> to vector<8x64xf32>
    %7 = arith.addf %4, %6 : vector<8x64xf32>
    %8 = vector.extract_strided_slice %7 {offsets = [0, 0], sizes = [8, 32], strides = [1, 1]} : vector<8x64xf32> to vector<8x32xf32>
    %9 = vector.extract_strided_slice %7 {offsets = [0, 32], sizes = [8, 32], strides = [1, 1]} : vector<8x64xf32> to vector<8x32xf32>
    %c0_5 = arith.constant 0 : index
    %c0_6 = arith.constant 0 : index
    %10 = vector.load %arg4[%c0_5, %c0_6] : memref<8x32xf32, #tpu.memory_space<vmem>>, vector<8x32xf32>
    tpu.vector_store %arg4[%c0_5, %c0_6], %9 {strides = array<i32>} : memref<8x32xf32, #tpu.memory_space<vmem>>, vector<8x32xf32>,
    %11 = arith.truncf %8 : vector<8x32xf32> to vector<8x32xbf16>
    %c0_7 = arith.constant 0 : index
    %c0_8 = arith.constant 0 : index
    %12 = vector.load %arg5[%c0_7, %c0_8] : memref<8x32xbf16, #tpu.memory_space<vmem>>, vector<8x32xbf16>
    tpu.vector_store %arg5[%c0_7, %c0_8], %11 {strides = array<i32>} : memref<8x32xbf16, #tpu.memory_space<vmem>>, vector<8x32xbf16>,
    %13 = tpu.transpose %8, [1, 0] : vector<8x32xf32> -> vector<32x8xf32>
    %c0_9 = arith.constant 0 : index
    %c0_10 = arith.constant 0 : index
    %14 = vector.load %arg6[%c0_9, %c0_10] : memref<32x8xf32, #tpu.memory_space<vmem>>, vector<32x8xf32>
    tpu.vector_store %arg6[%c0_9, %c0_10], %13 {strides = array<i32>} : memref<32x8xf32, #tpu.memory_space<vmem>>, vector<32x8xf32>,
    return
  }
  func.func @transform_0(%arg0: i32) -> (i32, i32) {
    %c0_i32 = arith.constant 0 : i32
    %c0_i32_0 = arith.constant 0 : i32
    return %arg0, %c0_i32 : i32, i32
  }
  func.func @transform_1(%arg0: i32) -> (i32, i32) {
    %c0_i32 = arith.constant 0 : i32
    %c0_i32_0 = arith.constant 0 : i32
    %c0_i32_1 = arith.constant 0 : i32
    return %c0_i32, %c0_i32_0 : i32, i32
  }
  func.func @transform_2(%arg0: i32) -> (i32, i32) {
    %c0_i32 = arith.constant 0 : i32
    %c0_i32_0 = arith.constant 0 : i32
    %c0_i32_1 = arith.constant 0 : i32
    return %c0_i32, %c0_i32_0 : i32, i32
  }
  func.func @transform_3(%arg0: i32) -> (i32, i32) {
    %c0_i32 = arith.constant 0 : i32
    %c0_i32_0 = arith.constant 0 : i32
    return %arg0, %c0_i32 : i32, i32
  }
  func.func @transform_4(%arg0: i32) -> (i32, i32) {
    %c0_i32 = arith.constant 0 : i32
    %c0_i32_0 = arith.constant 0 : i32
    return %arg0, %c0_i32 : i32, i32
  }
  func.func @transform_5(%arg0: i32) -> (i32, i32) {
    %c0_i32 = arith.constant 0 : i32
    %c0_i32_0 = arith.constant 0 : i32
    return %c0_i32, %arg0 : i32, i32
  }
}

module attributes {stable_mosaic.version = 11 : i64} {
  func.func @_gn_stats_kernel(%arg0: i32, %arg1: memref<8x32xf32, #tpu.memory_space<vmem>>, %arg2: memref<1x32xf32, #tpu.memory_space<vmem>>, %arg3: memref<1x32xf32, #tpu.memory_space<vmem>>) attributes {dimension_semantics = [#tpu.dimension_semantics<arbitrary>], iteration_bounds = array<i64: 1>, scalar_prefetch = 0 : i64, scratch_operands = 0 : i64, tpu.core_type = #tpu.core_type<tc>, window_params = [{transform_indices = @transform_0, window_bounds = array<i64: 8, 32>}, {pipeline_mode = #tpu.pipeline_mode<synchronous>, transform_indices = @transform_1, window_bounds = array<i64: 1, 32>}, {pipeline_mode = #tpu.pipeline_mode<synchronous>, transform_indices = @transform_2, window_bounds = array<i64: 1, 32>}]} {
    %c0_i32 = arith.constant 0 : i32
    %0 = arith.cmpi eq, %arg0, %c0_i32 : i32
    %1 = arith.extui %0 : i1 to i32
    %c0_i32_0 = arith.constant 0 : i32
    %2 = arith.cmpi ne, %1, %c0_i32_0 : i32
    scf.if %2 {
      %cst_11 = arith.constant 0.000000e+00 : f32
      %15 = vector.broadcast %cst_11 : f32 to vector<1x32xf32>
      %c0_12 = arith.constant 0 : index
      %c0_13 = arith.constant 0 : index
      %16 = vector.load %arg2[%c0_12, %c0_13] : memref<1x32xf32, #tpu.memory_space<vmem>>, vector<1x32xf32>
      tpu.vector_store %arg2[%c0_12, %c0_13], %15 {strides = array<i32>} : memref<1x32xf32, #tpu.memory_space<vmem>>, vector<1x32xf32>,
      %cst_14 = arith.constant 0.000000e+00 : f32
      %17 = vector.broadcast %cst_14 : f32 to vector<1x32xf32>
      %c0_15 = arith.constant 0 : index
      %c0_16 = arith.constant 0 : index
      %18 = vector.load %arg3[%c0_15, %c0_16] : memref<1x32xf32, #tpu.memory_space<vmem>>, vector<1x32xf32>
      tpu.vector_store %arg3[%c0_15, %c0_16], %17 {strides = array<i32>} : memref<1x32xf32, #tpu.memory_space<vmem>>, vector<1x32xf32>,
    } else {
    }
    %c0 = arith.constant 0 : index
    %c0_1 = arith.constant 0 : index
    %3 = vector.load %arg1[%c0, %c0_1] : memref<8x32xf32, #tpu.memory_space<vmem>>, vector<8x32xf32>
    %c0_2 = arith.constant 0 : index
    %c0_3 = arith.constant 0 : index
    %4 = vector.load %arg2[%c0_2, %c0_3] : memref<1x32xf32, #tpu.memory_space<vmem>>, vector<1x32xf32>
    %cst = arith.constant dense<0.000000e+00> : vector<32xf32>
    %5 = vector.multi_reduction <add>, %3, %cst [0] : vector<8x32xf32> to vector<32xf32>
    %6 = vector.shape_cast %5 : vector<32xf32> to vector<1x32xf32>
    %7 = arith.addf %4, %6 : vector<1x32xf32>
    %c0_4 = arith.constant 0 : index
    %c0_5 = arith.constant 0 : index
    %8 = vector.load %arg2[%c0_4, %c0_5] : memref<1x32xf32, #tpu.memory_space<vmem>>, vector<1x32xf32>
    tpu.vector_store %arg2[%c0_4, %c0_5], %7 {strides = array<i32>} : memref<1x32xf32, #tpu.memory_space<vmem>>, vector<1x32xf32>,
    %c0_6 = arith.constant 0 : index
    %c0_7 = arith.constant 0 : index
    %9 = vector.load %arg3[%c0_6, %c0_7] : memref<1x32xf32, #tpu.memory_space<vmem>>, vector<1x32xf32>
    %10 = arith.mulf %3, %3 : vector<8x32xf32>
    %cst_8 = arith.constant dense<0.000000e+00> : vector<32xf32>
    %11 = vector.multi_reduction <add>, %10, %cst_8 [0] : vector<8x32xf32> to vector<32xf32>
    %12 = vector.shape_cast %11 : vector<32xf32> to vector<1x32xf32>
    %13 = arith.addf %9, %12 : vector<1x32xf32>
    %c0_9 = arith.constant 0 : index
    %c0_10 = arith.constant 0 : index
    %14 = vector.load %arg3[%c0_9, %c0_10] : memref<1x32xf32, #tpu.memory_space<vmem>>, vector<1x32xf32>
    tpu.vector_store %arg3[%c0_9, %c0_10], %13 {strides = array<i32>} : memref<1x32xf32, #tpu.memory_space<vmem>>, vector<1x32xf32>,
    return
  }
  func.func @transform_0(%arg0: i32) -> (i32, i32) {
    %c0_i32 = arith.constant 0 : i32
    %c0_i32_0 = arith.constant 0 : i32
    return %arg0, %c0_i32 : i32, i32
  }
  func.func @transform_1(%arg0: i32) -> (i32, i32) {
    %c0_i32 = arith.constant 0 : i32
    %c0_i32_0 = arith.constant 0 : i32
    %c0_i32_1 = arith.constant 0 : i32
    return %c0_i32, %c0_i32_0 : i32, i32
  }
  func.func @transform_2(%arg0: i32) -> (i32, i32) {
    %c0_i32 = arith.constant 0 : i32
    %c0_i32_0 = arith.constant 0 : i32
    %c0_i32_1 = arith.constant 0 : i32
    return %c0_i32, %c0_i32_0 : i32, i32
  }
}

module attributes {stable_mosaic.version = 11 : i64} {
  func.func @_attn_kernel(%arg0: i32, %arg1: i32, %arg2: memref<8x32xf32, #tpu.memory_space<vmem>>, %arg3: memref<8x32xbf16, #tpu.memory_space<vmem>>, %arg4: memref<32x8xf32, #tpu.memory_space<vmem>>, %arg5: memref<8x8xi8, #tpu.memory_space<vmem>>, %arg6: memref<2x16xf32, #tpu.memory_space<smem>>, %arg7: memref<1x32xf32, #tpu.memory_space<vmem>>, %arg8: memref<8x32xf32, #tpu.memory_space<vmem>>, %arg9: memref<8x2xf32, #tpu.memory_space<vmem>>, %arg10: memref<8x2xf32, #tpu.memory_space<vmem>>, %arg11: memref<8x32xf32, #tpu.memory_space<vmem>>) attributes {dimension_semantics = [#tpu.dimension_semantics<parallel>, #tpu.dimension_semantics<arbitrary>], iteration_bounds = array<i64: 1, 1>, scalar_prefetch = 0 : i64, scratch_operands = 3 : i64, tpu.core_type = #tpu.core_type<tc>, window_params = [{transform_indices = @transform_0, window_bounds = array<i64: 8, 32>}, {transform_indices = @transform_1, window_bounds = array<i64: 8, 32>}, {transform_indices = @transform_2, window_bounds = array<i64: 32, 8>}, {transform_indices = @transform_3, window_bounds = array<i64: 8, 8>}, {transform_indices = @transform_4, window_bounds = array<i64: 2, 16>}, {pipeline_mode = #tpu.pipeline_mode<synchronous>, transform_indices = @transform_5, window_bounds = array<i64: 1, 32>}, {transform_indices = @transform_6, window_bounds = array<i64: 8, 32>}]} {
    %c0_i32 = arith.constant 0 : i32
    %0 = arith.cmpi eq, %arg1, %c0_i32 : i32
    %1 = arith.extui %0 : i1 to i32
    %c0_i32_0 = arith.constant 0 : i32
    %2 = arith.cmpi ne, %1, %c0_i32_0 : i32
    scf.if %2 {
      %cst_189 = arith.constant -1.000000e+30 : f32
      %709 = vector.broadcast %cst_189 : f32 to vector<8x2xf32>
      %c0_190 = arith.constant 0 : index
      %c0_191 = arith.constant 0 : index
      %710 = vector.load %arg9[%c0_190, %c0_191] : memref<8x2xf32, #tpu.memory_space<vmem>>, vector<8x2xf32>
      tpu.vector_store %arg9[%c0_190, %c0_191], %709 {strides = array<i32>} : memref<8x2xf32, #tpu.memory_space<vmem>>, vector<8x2xf32>,
      %cst_192 = arith.constant 0.000000e+00 : f32
      %711 = vector.broadcast %cst_192 : f32 to vector<8x2xf32>
      %c0_193 = arith.constant 0 : index
      %c0_194 = arith.constant 0 : index
      %712 = vector.load %arg10[%c0_193, %c0_194] : memref<8x2xf32, #tpu.memory_space<vmem>>, vector<8x2xf32>
      tpu.vector_store %arg10[%c0_193, %c0_194], %711 {strides = array<i32>} : memref<8x2xf32, #tpu.memory_space<vmem>>, vector<8x2xf32>,
      %cst_195 = arith.constant 0.000000e+00 : f32
      %713 = vector.broadcast %cst_195 : f32 to vector<8x32xf32>
      %c0_196 = arith.constant 0 : index
      %c0_197 = arith.constant 0 : index
      %714 = vector.load %arg11[%c0_196, %c0_197] : memref<8x32xf32, #tpu.memory_space<vmem>>, vector<8x32xf32>
      tpu.vector_store %arg11[%c0_196, %c0_197], %713 {strides = array<i32>} : memref<8x32xf32, #tpu.memory_space<vmem>>, vector<8x32xf32>,
    } else {
    }
    %c0 = arith.constant 0 : index
    %c0_1 = arith.constant 0 : index
    %3 = vector.load %arg5[%c0, %c0_1] : memref<8x8xi8, #tpu.memory_space<vmem>>, vector<8x8xi8>
    %c0_i8 = arith.constant 0 : i8
    %4 = vector.broadcast %c0_i8 : i8 to vector<8x8xi8>
    %5 = arith.cmpi ne, %3, %4 : vector<8x8xi8>
    %c0_2 = arith.constant 0 : index
    %c0_3 = arith.constant 0 : index
    %6 = vector.load %arg2[%c0_2, %c0_3] : memref<8x32xf32, #tpu.memory_space<vmem>>, vector<8x32xf32>
    %c0_4 = arith.constant 0 : index
    %c0_5 = arith.constant 0 : index
    %7 = vector.load %arg4[%c0_4, %c0_5] : memref<32x8xf32, #tpu.memory_space<vmem>>, vector<32x8xf32>
    %c0_6 = arith.constant 0 : index
    %c0_7 = arith.constant 0 : index
    %8 = memref.load %arg6[%c0_6, %c0_7] : memref<2x16xf32, #tpu.memory_space<smem>>
    %9 = vector.extract_strided_slice %6 {offsets = [0, 0], sizes = [8, 1], strides = [1, 1]} : vector<8x32xf32> to vector<8x1xf32>
    %10 = vector.broadcast %8 : f32 to vector<8x1xf32>
    %11 = arith.mulf %10, %9 : vector<8x1xf32>
    %12 = vector.extract_strided_slice %7 {offsets = [0, 0], sizes = [1, 8], strides = [1, 1]} : vector<32x8xf32> to vector<1x8xf32>
    %13 = vector.broadcast %8 : f32 to vector<1x8xf32>
    %14 = arith.mulf %13, %12 : vector<1x8xf32>
    %c0_8 = arith.constant 0 : index
    %c1 = arith.constant 1 : index
    %15 = memref.load %arg6[%c0_8, %c1] : memref<2x16xf32, #tpu.memory_space<smem>>
    %16 = vector.extract_strided_slice %6 {offsets = [0, 1], sizes = [8, 1], strides = [1, 1]} : vector<8x32xf32> to vector<8x1xf32>
    %17 = vector.broadcast %15 : f32 to vector<8x1xf32>
    %18 = arith.mulf %17, %16 : vector<8x1xf32>
    %19 = vector.extract_strided_slice %7 {offsets = [1, 0], sizes = [1, 8], strides = [1, 1]} : vector<32x8xf32> to vector<1x8xf32>
    %20 = vector.broadcast %15 : f32 to vector<1x8xf32>
    %21 = arith.mulf %20, %19 : vector<1x8xf32>
    %22 = arith.addf %11, %18 : vector<8x1xf32>
    %23 = arith.addf %14, %21 : vector<1x8xf32>
    %c0_9 = arith.constant 0 : index
    %c2 = arith.constant 2 : index
    %24 = memref.load %arg6[%c0_9, %c2] : memref<2x16xf32, #tpu.memory_space<smem>>
    %25 = vector.extract_strided_slice %6 {offsets = [0, 2], sizes = [8, 1], strides = [1, 1]} : vector<8x32xf32> to vector<8x1xf32>
    %26 = vector.broadcast %24 : f32 to vector<8x1xf32>
    %27 = arith.mulf %26, %25 : vector<8x1xf32>
    %28 = vector.extract_strided_slice %7 {offsets = [2, 0], sizes = [1, 8], strides = [1, 1]} : vector<32x8xf32> to vector<1x8xf32>
    %29 = vector.broadcast %24 : f32 to vector<1x8xf32>
    %30 = arith.mulf %29, %28 : vector<1x8xf32>
    %31 = arith.addf %22, %27 : vector<8x1xf32>
    %32 = arith.addf %23, %30 : vector<1x8xf32>
    %c0_10 = arith.constant 0 : index
    %c3 = arith.constant 3 : index
    %33 = memref.load %arg6[%c0_10, %c3] : memref<2x16xf32, #tpu.memory_space<smem>>
    %34 = vector.extract_strided_slice %6 {offsets = [0, 3], sizes = [8, 1], strides = [1, 1]} : vector<8x32xf32> to vector<8x1xf32>
    %35 = vector.broadcast %33 : f32 to vector<8x1xf32>
    %36 = arith.mulf %35, %34 : vector<8x1xf32>
    %37 = vector.extract_strided_slice %7 {offsets = [3, 0], sizes = [1, 8], strides = [1, 1]} : vector<32x8xf32> to vector<1x8xf32>
    %38 = vector.broadcast %33 : f32 to vector<1x8xf32>
    %39 = arith.mulf %38, %37 : vector<1x8xf32>
    %40 = arith.addf %31, %36 : vector<8x1xf32>
    %41 = arith.addf %32, %39 : vector<1x8xf32>
    %c0_11 = arith.constant 0 : index
    %c4 = arith.constant 4 : index
    %42 = memref.load %arg6[%c0_11, %c4] : memref<2x16xf32, #tpu.memory_space<smem>>
    %43 = vector.extract_strided_slice %6 {offsets = [0, 4], sizes = [8, 1], strides = [1, 1]} : vector<8x32xf32> to vector<8x1xf32>
    %44 = vector.broadcast %42 : f32 to vector<8x1xf32>
    %45 = arith.mulf %44, %43 : vector<8x1xf32>
    %46 = vector.extract_strided_slice %7 {offsets = [4, 0], sizes = [1, 8], strides = [1, 1]} : vector<32x8xf32> to vector<1x8xf32>
    %47 = vector.broadcast %42 : f32 to vector<1x8xf32>
    %48 = arith.mulf %47, %46 : vector<1x8xf32>
    %49 = arith.addf %40, %45 : vector<8x1xf32>
    %50 = arith.addf %41, %48 : vector<1x8xf32>
    %c0_12 = arith.constant 0 : index
    %c5 = arith.constant 5 : index
    %51 = memref.load %arg6[%c0_12, %c5] : memref<2x16xf32, #tpu.memory_space<smem>>
    %52 = vector.extract_strided_slice %6 {offsets = [0, 5], sizes = [8, 1], strides = [1, 1]} : vector<8x32xf32> to vector<8x1xf32>
    %53 = vector.broadcast %51 : f32 to vector<8x1xf32>
    %54 = arith.mulf %53, %52 : vector<8x1xf32>
    %55 = vector.extract_strided_slice %7 {offsets = [5, 0], sizes = [1, 8], strides = [1, 1]} : vector<32x8xf32> to vector<1x8xf32>
    %56 = vector.broadcast %51 : f32 to vector<1x8xf32>
    %57 = arith.mulf %56, %55 : vector<1x8xf32>
    %58 = arith.addf %49, %54 : vector<8x1xf32>
    %59 = arith.addf %50, %57 : vector<1x8xf32>
    %c0_13 = arith.constant 0 : index
    %c6 = arith.constant 6 : index
    %60 = memref.load %arg6[%c0_13, %c6] : memref<2x16xf32, #tpu.memory_space<smem>>
    %61 = vector.extract_strided_slice %6 {offsets = [0, 6], sizes = [8, 1], strides = [1, 1]} : vector<8x32xf32> to vector<8x1xf32>
    %62 = vector.broadcast %60 : f32 to vector<8x1xf32>
    %63 = arith.mulf %62, %61 : vector<8x1xf32>
    %64 = vector.extract_strided_slice %7 {offsets = [6, 0], sizes = [1, 8], strides = [1, 1]} : vector<32x8xf32> to vector<1x8xf32>
    %65 = vector.broadcast %60 : f32 to vector<1x8xf32>
    %66 = arith.mulf %65, %64 : vector<1x8xf32>
    %67 = arith.addf %58, %63 : vector<8x1xf32>
    %68 = arith.addf %59, %66 : vector<1x8xf32>
    %c0_14 = arith.constant 0 : index
    %c7 = arith.constant 7 : index
    %69 = memref.load %arg6[%c0_14, %c7] : memref<2x16xf32, #tpu.memory_space<smem>>
    %70 = vector.extract_strided_slice %6 {offsets = [0, 7], sizes = [8, 1], strides = [1, 1]} : vector<8x32xf32> to vector<8x1xf32>
    %71 = vector.broadcast %69 : f32 to vector<8x1xf32>
    %72 = arith.mulf %71, %70 : vector<8x1xf32>
    %73 = vector.extract_strided_slice %7 {offsets = [7, 0], sizes = [1, 8], strides = [1, 1]} : vector<32x8xf32> to vector<1x8xf32>
    %74 = vector.broadcast %69 : f32 to vector<1x8xf32>
    %75 = arith.mulf %74, %73 : vector<1x8xf32>
    %76 = arith.addf %67, %72 : vector<8x1xf32>
    %77 = arith.addf %68, %75 : vector<1x8xf32>
    %c0_15 = arith.constant 0 : index
    %c8 = arith.constant 8 : index
    %78 = memref.load %arg6[%c0_15, %c8] : memref<2x16xf32, #tpu.memory_space<smem>>
    %79 = vector.extract_strided_slice %6 {offsets = [0, 8], sizes = [8, 1], strides = [1, 1]} : vector<8x32xf32> to vector<8x1xf32>
    %80 = vector.broadcast %78 : f32 to vector<8x1xf32>
    %81 = arith.mulf %80, %79 : vector<8x1xf32>
    %82 = vector.extract_strided_slice %7 {offsets = [8, 0], sizes = [1, 8], strides = [1, 1]} : vector<32x8xf32> to vector<1x8xf32>
    %83 = vector.broadcast %78 : f32 to vector<1x8xf32>
    %84 = arith.mulf %83, %82 : vector<1x8xf32>
    %85 = arith.addf %76, %81 : vector<8x1xf32>
    %86 = arith.addf %77, %84 : vector<1x8xf32>
    %c0_16 = arith.constant 0 : index
    %c9 = arith.constant 9 : index
    %87 = memref.load %arg6[%c0_16, %c9] : memref<2x16xf32, #tpu.memory_space<smem>>
    %88 = vector.extract_strided_slice %6 {offsets = [0, 9], sizes = [8, 1], strides = [1, 1]} : vector<8x32xf32> to vector<8x1xf32>
    %89 = vector.broadcast %87 : f32 to vector<8x1xf32>
    %90 = arith.mulf %89, %88 : vector<8x1xf32>
    %91 = vector.extract_strided_slice %7 {offsets = [9, 0], sizes = [1, 8], strides = [1, 1]} : vector<32x8xf32> to vector<1x8xf32>
    %92 = vector.broadcast %87 : f32 to vector<1x8xf32>
    %93 = arith.mulf %92, %91 : vector<1x8xf32>
    %94 = arith.addf %85, %90 : vector<8x1xf32>
    %95 = arith.addf %86, %93 : vector<1x8xf32>
    %c0_17 = arith.constant 0 : index
    %c10 = arith.constant 10 : index
    %96 = memref.load %arg6[%c0_17, %c10] : memref<2x16xf32, #tpu.memory_space<smem>>
    %97 = vector.extract_strided_slice %6 {offsets = [0, 10], sizes = [8, 1], strides = [1, 1]} : vector<8x32xf32> to vector<8x1xf32>
    %98 = vector.broadcast %96 : f32 to vector<8x1xf32>
    %99 = arith.mulf %98, %97 : vector<8x1xf32>
    %100 = vector.extract_strided_slice %7 {offsets = [10, 0], sizes = [1, 8], strides = [1, 1]} : vector<32x8xf32> to vector<1x8xf32>
    %101 = vector.broadcast %96 : f32 to vector<1x8xf32>
    %102 = arith.mulf %101, %100 : vector<1x8xf32>
    %103 = arith.addf %94, %99 : vector<8x1xf32>
    %104 = arith.addf %95, %102 : vector<1x8xf32>
    %c0_18 = arith.constant 0 : index
    %c11 = arith.constant 11 : index
    %105 = memref.load %arg6[%c0_18, %c11] : memref<2x16xf32, #tpu.memory_space<smem>>
    %106 = vector.extract_strided_slice %6 {offsets = [0, 11], sizes = [8, 1], strides = [1, 1]} : vector<8x32xf32> to vector<8x1xf32>
    %107 = vector.broadcast %105 : f32 to vector<8x1xf32>
    %108 = arith.mulf %107, %106 : vector<8x1xf32>
    %109 = vector.extract_strided_slice %7 {offsets = [11, 0], sizes = [1, 8], strides = [1, 1]} : vector<32x8xf32> to vector<1x8xf32>
    %110 = vector.broadcast %105 : f32 to vector<1x8xf32>
    %111 = arith.mulf %110, %109 : vector<1x8xf32>
    %112 = arith.addf %103, %108 : vector<8x1xf32>
    %113 = arith.addf %104, %111 : vector<1x8xf32>
    %c0_19 = arith.constant 0 : index
    %c12 = arith.constant 12 : index
    %114 = memref.load %arg6[%c0_19, %c12] : memref<2x16xf32, #tpu.memory_space<smem>>
    %115 = vector.extract_strided_slice %6 {offsets = [0, 12], sizes = [8, 1], strides = [1, 1]} : vector<8x32xf32> to vector<8x1xf32>
    %116 = vector.broadcast %114 : f32 to vector<8x1xf32>
    %117 = arith.mulf %116, %115 : vector<8x1xf32>
    %118 = vector.extract_strided_slice %7 {offsets = [12, 0], sizes = [1, 8], strides = [1, 1]} : vector<32x8xf32> to vector<1x8xf32>
    %119 = vector.broadcast %114 : f32 to vector<1x8xf32>
    %120 = arith.mulf %119, %118 : vector<1x8xf32>
    %121 = arith.addf %112, %117 : vector<8x1xf32>
    %122 = arith.addf %113, %120 : vector<1x8xf32>
    %c0_20 = arith.constant 0 : index
    %c13 = arith.constant 13 : index
    %123 = memref.load %arg6[%c0_20, %c13] : memref<2x16xf32, #tpu.memory_space<smem>>
    %124 = vector.extract_strided_slice %6 {offsets = [0, 13], sizes = [8, 1], strides = [1, 1]} : vector<8x32xf32> to vector<8x1xf32>
    %125 = vector.broadcast %123 : f32 to vector<8x1xf32>
    %126 = arith.mulf %125, %124 : vector<8x1xf32>
    %127 = vector.extract_strided_slice %7 {offsets = [13, 0], sizes = [1, 8], strides = [1, 1]} : vector<32x8xf32> to vector<1x8xf32>
    %128 = vector.broadcast %123 : f32 to vector<1x8xf32>
    %129 = arith.mulf %128, %127 : vector<1x8xf32>
    %130 = arith.addf %121, %126 : vector<8x1xf32>
    %131 = arith.addf %122, %129 : vector<1x8xf32>
    %c0_21 = arith.constant 0 : index
    %c14 = arith.constant 14 : index
    %132 = memref.load %arg6[%c0_21, %c14] : memref<2x16xf32, #tpu.memory_space<smem>>
    %133 = vector.extract_strided_slice %6 {offsets = [0, 14], sizes = [8, 1], strides = [1, 1]} : vector<8x32xf32> to vector<8x1xf32>
    %134 = vector.broadcast %132 : f32 to vector<8x1xf32>
    %135 = arith.mulf %134, %133 : vector<8x1xf32>
    %136 = vector.extract_strided_slice %7 {offsets = [14, 0], sizes = [1, 8], strides = [1, 1]} : vector<32x8xf32> to vector<1x8xf32>
    %137 = vector.broadcast %132 : f32 to vector<1x8xf32>
    %138 = arith.mulf %137, %136 : vector<1x8xf32>
    %139 = arith.addf %130, %135 : vector<8x1xf32>
    %140 = arith.addf %131, %138 : vector<1x8xf32>
    %c0_22 = arith.constant 0 : index
    %c15 = arith.constant 15 : index
    %141 = memref.load %arg6[%c0_22, %c15] : memref<2x16xf32, #tpu.memory_space<smem>>
    %142 = vector.extract_strided_slice %6 {offsets = [0, 15], sizes = [8, 1], strides = [1, 1]} : vector<8x32xf32> to vector<8x1xf32>
    %143 = vector.broadcast %141 : f32 to vector<8x1xf32>
    %144 = arith.mulf %143, %142 : vector<8x1xf32>
    %145 = vector.extract_strided_slice %7 {offsets = [15, 0], sizes = [1, 8], strides = [1, 1]} : vector<32x8xf32> to vector<1x8xf32>
    %146 = vector.broadcast %141 : f32 to vector<1x8xf32>
    %147 = arith.mulf %146, %145 : vector<1x8xf32>
    %148 = arith.addf %139, %144 : vector<8x1xf32>
    %149 = arith.addf %140, %147 : vector<1x8xf32>
    %150 = vector.broadcast %148 : vector<8x1xf32> to vector<8x8xf32>
    %151 = vector.broadcast %149 : vector<1x8xf32> to vector<8x8xf32>
    %152 = arith.addf %150, %151 : vector<8x8xf32>
    %cst = arith.constant 6.000000e-01 : f32
    %153 = vector.broadcast %cst : f32 to vector<8x8xf32>
    %154 = arith.mulf %153, %152 : vector<8x8xf32>
    %c0_23 = arith.constant 0 : index
    %c0_24 = arith.constant 0 : index
    %155 = memref.load %arg6[%c0_23, %c0_24] : memref<2x16xf32, #tpu.memory_space<smem>>
    %cst_25 = arith.constant 4.000000e-01 : f32
    %156 = arith.mulf %cst_25, %155 : f32
    %157 = vector.extract_strided_slice %6 {offsets = [0, 0], sizes = [8, 1], strides = [1, 1]} : vector<8x32xf32> to vector<8x1xf32>
    %158 = vector.extract_strided_slice %7 {offsets = [0, 0], sizes = [1, 8], strides = [1, 1]} : vector<32x8xf32> to vector<1x8xf32>
    %159 = vector.broadcast %157 : vector<8x1xf32> to vector<8x8xf32>
    %160 = vector.broadcast %158 : vector<1x8xf32> to vector<8x8xf32>
    %161 = arith.addf %159, %160 : vector<8x8xf32>
    %162 = math.absf %161 : vector<8x8xf32>
    %163 = vector.broadcast %156 : f32 to vector<8x8xf32>
    %164 = arith.mulf %163, %162 : vector<8x8xf32>
    %165 = arith.addf %154, %164 : vector<8x8xf32>
    %c0_26 = arith.constant 0 : index
    %c1_27 = arith.constant 1 : index
    %166 = memref.load %arg6[%c0_26, %c1_27] : memref<2x16xf32, #tpu.memory_space<smem>>
    %cst_28 = arith.constant 4.000000e-01 : f32
    %167 = arith.mulf %cst_28, %166 : f32
    %168 = vector.extract_strided_slice %6 {offsets = [0, 1], sizes = [8, 1], strides = [1, 1]} : vector<8x32xf32> to vector<8x1xf32>
    %169 = vector.extract_strided_slice %7 {offsets = [1, 0], sizes = [1, 8], strides = [1, 1]} : vector<32x8xf32> to vector<1x8xf32>
    %170 = vector.broadcast %168 : vector<8x1xf32> to vector<8x8xf32>
    %171 = vector.broadcast %169 : vector<1x8xf32> to vector<8x8xf32>
    %172 = arith.addf %170, %171 : vector<8x8xf32>
    %173 = math.absf %172 : vector<8x8xf32>
    %174 = vector.broadcast %167 : f32 to vector<8x8xf32>
    %175 = arith.mulf %174, %173 : vector<8x8xf32>
    %176 = arith.addf %165, %175 : vector<8x8xf32>
    %c0_29 = arith.constant 0 : index
    %c2_30 = arith.constant 2 : index
    %177 = memref.load %arg6[%c0_29, %c2_30] : memref<2x16xf32, #tpu.memory_space<smem>>
    %cst_31 = arith.constant 4.000000e-01 : f32
    %178 = arith.mulf %cst_31, %177 : f32
    %179 = vector.extract_strided_slice %6 {offsets = [0, 2], sizes = [8, 1], strides = [1, 1]} : vector<8x32xf32> to vector<8x1xf32>
    %180 = vector.extract_strided_slice %7 {offsets = [2, 0], sizes = [1, 8], strides = [1, 1]} : vector<32x8xf32> to vector<1x8xf32>
    %181 = vector.broadcast %179 : vector<8x1xf32> to vector<8x8xf32>
    %182 = vector.broadcast %180 : vector<1x8xf32> to vector<8x8xf32>
    %183 = arith.addf %181, %182 : vector<8x8xf32>
    %184 = math.absf %183 : vector<8x8xf32>
    %185 = vector.broadcast %178 : f32 to vector<8x8xf32>
    %186 = arith.mulf %185, %184 : vector<8x8xf32>
    %187 = arith.addf %176, %186 : vector<8x8xf32>
    %c0_32 = arith.constant 0 : index
    %c3_33 = arith.constant 3 : index
    %188 = memref.load %arg6[%c0_32, %c3_33] : memref<2x16xf32, #tpu.memory_space<smem>>
    %cst_34 = arith.constant 4.000000e-01 : f32
    %189 = arith.mulf %cst_34, %188 : f32
    %190 = vector.extract_strided_slice %6 {offsets = [0, 3], sizes = [8, 1], strides = [1, 1]} : vector<8x32xf32> to vector<8x1xf32>
    %191 = vector.extract_strided_slice %7 {offsets = [3, 0], sizes = [1, 8], strides = [1, 1]} : vector<32x8xf32> to vector<1x8xf32>
    %192 = vector.broadcast %190 : vector<8x1xf32> to vector<8x8xf32>
    %193 = vector.broadcast %191 : vector<1x8xf32> to vector<8x8xf32>
    %194 = arith.addf %192, %193 : vector<8x8xf32>
    %195 = math.absf %194 : vector<8x8xf32>
    %196 = vector.broadcast %189 : f32 to vector<8x8xf32>
    %197 = arith.mulf %196, %195 : vector<8x8xf32>
    %198 = arith.addf %187, %197 : vector<8x8xf32>
    %c0_35 = arith.constant 0 : index
    %c4_36 = arith.constant 4 : index
    %199 = memref.load %arg6[%c0_35, %c4_36] : memref<2x16xf32, #tpu.memory_space<smem>>
    %cst_37 = arith.constant 4.000000e-01 : f32
    %200 = arith.mulf %cst_37, %199 : f32
    %201 = vector.extract_strided_slice %6 {offsets = [0, 4], sizes = [8, 1], strides = [1, 1]} : vector<8x32xf32> to vector<8x1xf32>
    %202 = vector.extract_strided_slice %7 {offsets = [4, 0], sizes = [1, 8], strides = [1, 1]} : vector<32x8xf32> to vector<1x8xf32>
    %203 = vector.broadcast %201 : vector<8x1xf32> to vector<8x8xf32>
    %204 = vector.broadcast %202 : vector<1x8xf32> to vector<8x8xf32>
    %205 = arith.addf %203, %204 : vector<8x8xf32>
    %206 = math.absf %205 : vector<8x8xf32>
    %207 = vector.broadcast %200 : f32 to vector<8x8xf32>
    %208 = arith.mulf %207, %206 : vector<8x8xf32>
    %209 = arith.addf %198, %208 : vector<8x8xf32>
    %c0_38 = arith.constant 0 : index
    %c5_39 = arith.constant 5 : index
    %210 = memref.load %arg6[%c0_38, %c5_39] : memref<2x16xf32, #tpu.memory_space<smem>>
    %cst_40 = arith.constant 4.000000e-01 : f32
    %211 = arith.mulf %cst_40, %210 : f32
    %212 = vector.extract_strided_slice %6 {offsets = [0, 5], sizes = [8, 1], strides = [1, 1]} : vector<8x32xf32> to vector<8x1xf32>
    %213 = vector.extract_strided_slice %7 {offsets = [5, 0], sizes = [1, 8], strides = [1, 1]} : vector<32x8xf32> to vector<1x8xf32>
    %214 = vector.broadcast %212 : vector<8x1xf32> to vector<8x8xf32>
    %215 = vector.broadcast %213 : vector<1x8xf32> to vector<8x8xf32>
    %216 = arith.addf %214, %215 : vector<8x8xf32>
    %217 = math.absf %216 : vector<8x8xf32>
    %218 = vector.broadcast %211 : f32 to vector<8x8xf32>
    %219 = arith.mulf %218, %217 : vector<8x8xf32>
    %220 = arith.addf %209, %219 : vector<8x8xf32>
    %c0_41 = arith.constant 0 : index
    %c6_42 = arith.constant 6 : index
    %221 = memref.load %arg6[%c0_41, %c6_42] : memref<2x16xf32, #tpu.memory_space<smem>>
    %cst_43 = arith.constant 4.000000e-01 : f32
    %222 = arith.mulf %cst_43, %221 : f32
    %223 = vector.extract_strided_slice %6 {offsets = [0, 6], sizes = [8, 1], strides = [1, 1]} : vector<8x32xf32> to vector<8x1xf32>
    %224 = vector.extract_strided_slice %7 {offsets = [6, 0], sizes = [1, 8], strides = [1, 1]} : vector<32x8xf32> to vector<1x8xf32>
    %225 = vector.broadcast %223 : vector<8x1xf32> to vector<8x8xf32>
    %226 = vector.broadcast %224 : vector<1x8xf32> to vector<8x8xf32>
    %227 = arith.addf %225, %226 : vector<8x8xf32>
    %228 = math.absf %227 : vector<8x8xf32>
    %229 = vector.broadcast %222 : f32 to vector<8x8xf32>
    %230 = arith.mulf %229, %228 : vector<8x8xf32>
    %231 = arith.addf %220, %230 : vector<8x8xf32>
    %c0_44 = arith.constant 0 : index
    %c7_45 = arith.constant 7 : index
    %232 = memref.load %arg6[%c0_44, %c7_45] : memref<2x16xf32, #tpu.memory_space<smem>>
    %cst_46 = arith.constant 4.000000e-01 : f32
    %233 = arith.mulf %cst_46, %232 : f32
    %234 = vector.extract_strided_slice %6 {offsets = [0, 7], sizes = [8, 1], strides = [1, 1]} : vector<8x32xf32> to vector<8x1xf32>
    %235 = vector.extract_strided_slice %7 {offsets = [7, 0], sizes = [1, 8], strides = [1, 1]} : vector<32x8xf32> to vector<1x8xf32>
    %236 = vector.broadcast %234 : vector<8x1xf32> to vector<8x8xf32>
    %237 = vector.broadcast %235 : vector<1x8xf32> to vector<8x8xf32>
    %238 = arith.addf %236, %237 : vector<8x8xf32>
    %239 = math.absf %238 : vector<8x8xf32>
    %240 = vector.broadcast %233 : f32 to vector<8x8xf32>
    %241 = arith.mulf %240, %239 : vector<8x8xf32>
    %242 = arith.addf %231, %241 : vector<8x8xf32>
    %c0_47 = arith.constant 0 : index
    %c8_48 = arith.constant 8 : index
    %243 = memref.load %arg6[%c0_47, %c8_48] : memref<2x16xf32, #tpu.memory_space<smem>>
    %cst_49 = arith.constant 4.000000e-01 : f32
    %244 = arith.mulf %cst_49, %243 : f32
    %245 = vector.extract_strided_slice %6 {offsets = [0, 8], sizes = [8, 1], strides = [1, 1]} : vector<8x32xf32> to vector<8x1xf32>
    %246 = vector.extract_strided_slice %7 {offsets = [8, 0], sizes = [1, 8], strides = [1, 1]} : vector<32x8xf32> to vector<1x8xf32>
    %247 = vector.broadcast %245 : vector<8x1xf32> to vector<8x8xf32>
    %248 = vector.broadcast %246 : vector<1x8xf32> to vector<8x8xf32>
    %249 = arith.addf %247, %248 : vector<8x8xf32>
    %250 = math.absf %249 : vector<8x8xf32>
    %251 = vector.broadcast %244 : f32 to vector<8x8xf32>
    %252 = arith.mulf %251, %250 : vector<8x8xf32>
    %253 = arith.addf %242, %252 : vector<8x8xf32>
    %c0_50 = arith.constant 0 : index
    %c9_51 = arith.constant 9 : index
    %254 = memref.load %arg6[%c0_50, %c9_51] : memref<2x16xf32, #tpu.memory_space<smem>>
    %cst_52 = arith.constant 4.000000e-01 : f32
    %255 = arith.mulf %cst_52, %254 : f32
    %256 = vector.extract_strided_slice %6 {offsets = [0, 9], sizes = [8, 1], strides = [1, 1]} : vector<8x32xf32> to vector<8x1xf32>
    %257 = vector.extract_strided_slice %7 {offsets = [9, 0], sizes = [1, 8], strides = [1, 1]} : vector<32x8xf32> to vector<1x8xf32>
    %258 = vector.broadcast %256 : vector<8x1xf32> to vector<8x8xf32>
    %259 = vector.broadcast %257 : vector<1x8xf32> to vector<8x8xf32>
    %260 = arith.addf %258, %259 : vector<8x8xf32>
    %261 = math.absf %260 : vector<8x8xf32>
    %262 = vector.broadcast %255 : f32 to vector<8x8xf32>
    %263 = arith.mulf %262, %261 : vector<8x8xf32>
    %264 = arith.addf %253, %263 : vector<8x8xf32>
    %c0_53 = arith.constant 0 : index
    %c10_54 = arith.constant 10 : index
    %265 = memref.load %arg6[%c0_53, %c10_54] : memref<2x16xf32, #tpu.memory_space<smem>>
    %cst_55 = arith.constant 4.000000e-01 : f32
    %266 = arith.mulf %cst_55, %265 : f32
    %267 = vector.extract_strided_slice %6 {offsets = [0, 10], sizes = [8, 1], strides = [1, 1]} : vector<8x32xf32> to vector<8x1xf32>
    %268 = vector.extract_strided_slice %7 {offsets = [10, 0], sizes = [1, 8], strides = [1, 1]} : vector<32x8xf32> to vector<1x8xf32>
    %269 = vector.broadcast %267 : vector<8x1xf32> to vector<8x8xf32>
    %270 = vector.broadcast %268 : vector<1x8xf32> to vector<8x8xf32>
    %271 = arith.addf %269, %270 : vector<8x8xf32>
    %272 = math.absf %271 : vector<8x8xf32>
    %273 = vector.broadcast %266 : f32 to vector<8x8xf32>
    %274 = arith.mulf %273, %272 : vector<8x8xf32>
    %275 = arith.addf %264, %274 : vector<8x8xf32>
    %c0_56 = arith.constant 0 : index
    %c11_57 = arith.constant 11 : index
    %276 = memref.load %arg6[%c0_56, %c11_57] : memref<2x16xf32, #tpu.memory_space<smem>>
    %cst_58 = arith.constant 4.000000e-01 : f32
    %277 = arith.mulf %cst_58, %276 : f32
    %278 = vector.extract_strided_slice %6 {offsets = [0, 11], sizes = [8, 1], strides = [1, 1]} : vector<8x32xf32> to vector<8x1xf32>
    %279 = vector.extract_strided_slice %7 {offsets = [11, 0], sizes = [1, 8], strides = [1, 1]} : vector<32x8xf32> to vector<1x8xf32>
    %280 = vector.broadcast %278 : vector<8x1xf32> to vector<8x8xf32>
    %281 = vector.broadcast %279 : vector<1x8xf32> to vector<8x8xf32>
    %282 = arith.addf %280, %281 : vector<8x8xf32>
    %283 = math.absf %282 : vector<8x8xf32>
    %284 = vector.broadcast %277 : f32 to vector<8x8xf32>
    %285 = arith.mulf %284, %283 : vector<8x8xf32>
    %286 = arith.addf %275, %285 : vector<8x8xf32>
    %c0_59 = arith.constant 0 : index
    %c12_60 = arith.constant 12 : index
    %287 = memref.load %arg6[%c0_59, %c12_60] : memref<2x16xf32, #tpu.memory_space<smem>>
    %cst_61 = arith.constant 4.000000e-01 : f32
    %288 = arith.mulf %cst_61, %287 : f32
    %289 = vector.extract_strided_slice %6 {offsets = [0, 12], sizes = [8, 1], strides = [1, 1]} : vector<8x32xf32> to vector<8x1xf32>
    %290 = vector.extract_strided_slice %7 {offsets = [12, 0], sizes = [1, 8], strides = [1, 1]} : vector<32x8xf32> to vector<1x8xf32>
    %291 = vector.broadcast %289 : vector<8x1xf32> to vector<8x8xf32>
    %292 = vector.broadcast %290 : vector<1x8xf32> to vector<8x8xf32>
    %293 = arith.addf %291, %292 : vector<8x8xf32>
    %294 = math.absf %293 : vector<8x8xf32>
    %295 = vector.broadcast %288 : f32 to vector<8x8xf32>
    %296 = arith.mulf %295, %294 : vector<8x8xf32>
    %297 = arith.addf %286, %296 : vector<8x8xf32>
    %c0_62 = arith.constant 0 : index
    %c13_63 = arith.constant 13 : index
    %298 = memref.load %arg6[%c0_62, %c13_63] : memref<2x16xf32, #tpu.memory_space<smem>>
    %cst_64 = arith.constant 4.000000e-01 : f32
    %299 = arith.mulf %cst_64, %298 : f32
    %300 = vector.extract_strided_slice %6 {offsets = [0, 13], sizes = [8, 1], strides = [1, 1]} : vector<8x32xf32> to vector<8x1xf32>
    %301 = vector.extract_strided_slice %7 {offsets = [13, 0], sizes = [1, 8], strides = [1, 1]} : vector<32x8xf32> to vector<1x8xf32>
    %302 = vector.broadcast %300 : vector<8x1xf32> to vector<8x8xf32>
    %303 = vector.broadcast %301 : vector<1x8xf32> to vector<8x8xf32>
    %304 = arith.addf %302, %303 : vector<8x8xf32>
    %305 = math.absf %304 : vector<8x8xf32>
    %306 = vector.broadcast %299 : f32 to vector<8x8xf32>
    %307 = arith.mulf %306, %305 : vector<8x8xf32>
    %308 = arith.addf %297, %307 : vector<8x8xf32>
    %c0_65 = arith.constant 0 : index
    %c14_66 = arith.constant 14 : index
    %309 = memref.load %arg6[%c0_65, %c14_66] : memref<2x16xf32, #tpu.memory_space<smem>>
    %cst_67 = arith.constant 4.000000e-01 : f32
    %310 = arith.mulf %cst_67, %309 : f32
    %311 = vector.extract_strided_slice %6 {offsets = [0, 14], sizes = [8, 1], strides = [1, 1]} : vector<8x32xf32> to vector<8x1xf32>
    %312 = vector.extract_strided_slice %7 {offsets = [14, 0], sizes = [1, 8], strides = [1, 1]} : vector<32x8xf32> to vector<1x8xf32>
    %313 = vector.broadcast %311 : vector<8x1xf32> to vector<8x8xf32>
    %314 = vector.broadcast %312 : vector<1x8xf32> to vector<8x8xf32>
    %315 = arith.addf %313, %314 : vector<8x8xf32>
    %316 = math.absf %315 : vector<8x8xf32>
    %317 = vector.broadcast %310 : f32 to vector<8x8xf32>
    %318 = arith.mulf %317, %316 : vector<8x8xf32>
    %319 = arith.addf %308, %318 : vector<8x8xf32>
    %c0_68 = arith.constant 0 : index
    %c15_69 = arith.constant 15 : index
    %320 = memref.load %arg6[%c0_68, %c15_69] : memref<2x16xf32, #tpu.memory_space<smem>>
    %cst_70 = arith.constant 4.000000e-01 : f32
    %321 = arith.mulf %cst_70, %320 : f32
    %322 = vector.extract_strided_slice %6 {offsets = [0, 15], sizes = [8, 1], strides = [1, 1]} : vector<8x32xf32> to vector<8x1xf32>
    %323 = vector.extract_strided_slice %7 {offsets = [15, 0], sizes = [1, 8], strides = [1, 1]} : vector<32x8xf32> to vector<1x8xf32>
    %324 = vector.broadcast %322 : vector<8x1xf32> to vector<8x8xf32>
    %325 = vector.broadcast %323 : vector<1x8xf32> to vector<8x8xf32>
    %326 = arith.addf %324, %325 : vector<8x8xf32>
    %327 = math.absf %326 : vector<8x8xf32>
    %328 = vector.broadcast %321 : f32 to vector<8x8xf32>
    %329 = arith.mulf %328, %327 : vector<8x8xf32>
    %330 = arith.addf %319, %329 : vector<8x8xf32>
    %cst_71 = arith.constant -1.000000e+30 : f32
    %331 = vector.broadcast %cst_71 : f32 to vector<8x8xf32>
    %332 = arith.select %5, %330, %331 : vector<8x8xi1>, vector<8x8xf32>
    %c0_72 = arith.constant 0 : index
    %c0_73 = arith.constant 0 : index
    %333 = vector.load %arg9[%c0_72, %c0_73] : memref<8x2xf32, #tpu.memory_space<vmem>>, vector<8x1xf32>
    %cst_74 = arith.constant dense<0xFF800000> : vector<8xf32>
    %334 = vector.multi_reduction <maximumf>, %332, %cst_74 [1] : vector<8x8xf32> to vector<8xf32>
    %335 = vector.shape_cast %334 : vector<8xf32> to vector<8x1xf32>
    %336 = arith.maximumf %333, %335 : vector<8x1xf32>
    %337 = arith.subf %333, %336 : vector<8x1xf32>
    %338 = math.exp %337 : vector<8x1xf32>
    %339 = vector.broadcast %336 : vector<8x1xf32> to vector<8x8xf32>
    %340 = arith.subf %332, %339 : vector<8x8xf32>
    %341 = math.exp %340 : vector<8x8xf32>
    %c0_75 = arith.constant 0 : index
    %c0_76 = arith.constant 0 : index
    %342 = vector.load %arg10[%c0_75, %c0_76] : memref<8x2xf32, #tpu.memory_space<vmem>>, vector<8x1xf32>
    %343 = arith.mulf %338, %342 : vector<8x1xf32>
    %cst_77 = arith.constant dense<0.000000e+00> : vector<8xf32>
    %344 = vector.multi_reduction <add>, %341, %cst_77 [1] : vector<8x8xf32> to vector<8xf32>
    %345 = vector.shape_cast %344 : vector<8xf32> to vector<8x1xf32>
    %346 = arith.addf %343, %345 : vector<8x1xf32>
    %c0_78 = arith.constant 0 : index
    %c0_79 = arith.constant 0 : index
    %347 = vector.load %arg10[%c0_78, %c0_79] : memref<8x2xf32, #tpu.memory_space<vmem>>, vector<8x1xf32>
    tpu.vector_store %arg10[%c0_78, %c0_79], %346 {strides = array<i32>} : memref<8x2xf32, #tpu.memory_space<vmem>>, vector<8x1xf32>,
    %348 = arith.truncf %341 : vector<8x8xf32> to vector<8x8xbf16>
    %c0_80 = arith.constant 0 : index
    %c0_81 = arith.constant 0 : index
    %349 = vector.load %arg3[%c0_80, %c0_81] : memref<8x32xbf16, #tpu.memory_space<vmem>>, vector<8x16xbf16>
    %cst_82 = arith.constant dense<0.000000e+00> : vector<8x16xf32>
    %350 = tpu.matmul %348, %349, %cst_82 {dimension_numbers = #tpu.dot_dimension_numbers<[1], [0], [0], [1], [0, 0, 1, 1], [], []>} : vector<8x8xbf16>, vector<8x16xbf16>, vector<8x16xf32> -> vector<8x16xf32>
    %c0_83 = arith.constant 0 : index
    %c0_84 = arith.constant 0 : index
    %351 = vector.load %arg11[%c0_83, %c0_84] : memref<8x32xf32, #tpu.memory_space<vmem>>, vector<8x16xf32>
    %352 = vector.broadcast %338 : vector<8x1xf32> to vector<8x16xf32>
    %353 = arith.mulf %352, %351 : vector<8x16xf32>
    %354 = arith.addf %353, %350 : vector<8x16xf32>
    %c0_85 = arith.constant 0 : index
    %c0_86 = arith.constant 0 : index
    %355 = vector.load %arg11[%c0_85, %c0_86] : memref<8x32xf32, #tpu.memory_space<vmem>>, vector<8x16xf32>
    tpu.vector_store %arg11[%c0_85, %c0_86], %354 {strides = array<i32>} : memref<8x32xf32, #tpu.memory_space<vmem>>, vector<8x16xf32>,
    %c0_87 = arith.constant 0 : index
    %c0_88 = arith.constant 0 : index
    %356 = vector.load %arg9[%c0_87, %c0_88] : memref<8x2xf32, #tpu.memory_space<vmem>>, vector<8x1xf32>
    tpu.vector_store %arg9[%c0_87, %c0_88], %336 {strides = array<i32>} : memref<8x2xf32, #tpu.memory_space<vmem>>, vector<8x1xf32>,
    %c1_89 = arith.constant 1 : index
    %c0_90 = arith.constant 0 : index
    %357 = memref.load %arg6[%c1_89, %c0_90] : memref<2x16xf32, #tpu.memory_space<smem>>
    %358 = vector.extract_strided_slice %6 {offsets = [0, 16], sizes = [8, 1], strides = [1, 1]} : vector<8x32xf32> to vector<8x1xf32>
    %359 = vector.broadcast %357 : f32 to vector<8x1xf32>
    %360 = arith.mulf %359, %358 : vector<8x1xf32>
    %361 = vector.extract_strided_slice %7 {offsets = [16, 0], sizes = [1, 8], strides = [1, 1]} : vector<32x8xf32> to vector<1x8xf32>
    %362 = vector.broadcast %357 : f32 to vector<1x8xf32>
    %363 = arith.mulf %362, %361 : vector<1x8xf32>
    %c1_91 = arith.constant 1 : index
    %c1_92 = arith.constant 1 : index
    %364 = memref.load %arg6[%c1_91, %c1_92] : memref<2x16xf32, #tpu.memory_space<smem>>
    %365 = vector.extract_strided_slice %6 {offsets = [0, 17], sizes = [8, 1], strides = [1, 1]} : vector<8x32xf32> to vector<8x1xf32>
    %366 = vector.broadcast %364 : f32 to vector<8x1xf32>
    %367 = arith.mulf %366, %365 : vector<8x1xf32>
    %368 = vector.extract_strided_slice %7 {offsets = [17, 0], sizes = [1, 8], strides = [1, 1]} : vector<32x8xf32> to vector<1x8xf32>
    %369 = vector.broadcast %364 : f32 to vector<1x8xf32>
    %370 = arith.mulf %369, %368 : vector<1x8xf32>
    %371 = arith.addf %360, %367 : vector<8x1xf32>
    %372 = arith.addf %363, %370 : vector<1x8xf32>
    %c1_93 = arith.constant 1 : index
    %c2_94 = arith.constant 2 : index
    %373 = memref.load %arg6[%c1_93, %c2_94] : memref<2x16xf32, #tpu.memory_space<smem>>
    %374 = vector.extract_strided_slice %6 {offsets = [0, 18], sizes = [8, 1], strides = [1, 1]} : vector<8x32xf32> to vector<8x1xf32>
    %375 = vector.broadcast %373 : f32 to vector<8x1xf32>
    %376 = arith.mulf %375, %374 : vector<8x1xf32>
    %377 = vector.extract_strided_slice %7 {offsets = [18, 0], sizes = [1, 8], strides = [1, 1]} : vector<32x8xf32> to vector<1x8xf32>
    %378 = vector.broadcast %373 : f32 to vector<1x8xf32>
    %379 = arith.mulf %378, %377 : vector<1x8xf32>
    %380 = arith.addf %371, %376 : vector<8x1xf32>
    %381 = arith.addf %372, %379 : vector<1x8xf32>
    %c1_95 = arith.constant 1 : index
    %c3_96 = arith.constant 3 : index
    %382 = memref.load %arg6[%c1_95, %c3_96] : memref<2x16xf32, #tpu.memory_space<smem>>
    %383 = vector.extract_strided_slice %6 {offsets = [0, 19], sizes = [8, 1], strides = [1, 1]} : vector<8x32xf32> to vector<8x1xf32>
    %384 = vector.broadcast %382 : f32 to vector<8x1xf32>
    %385 = arith.mulf %384, %383 : vector<8x1xf32>
    %386 = vector.extract_strided_slice %7 {offsets = [19, 0], sizes = [1, 8], strides = [1, 1]} : vector<32x8xf32> to vector<1x8xf32>
    %387 = vector.broadcast %382 : f32 to vector<1x8xf32>
    %388 = arith.mulf %387, %386 : vector<1x8xf32>
    %389 = arith.addf %380, %385 : vector<8x1xf32>
    %390 = arith.addf %381, %388 : vector<1x8xf32>
    %c1_97 = arith.constant 1 : index
    %c4_98 = arith.constant 4 : index
    %391 = memref.load %arg6[%c1_97, %c4_98] : memref<2x16xf32, #tpu.memory_space<smem>>
    %392 = vector.extract_strided_slice %6 {offsets = [0, 20], sizes = [8, 1], strides = [1, 1]} : vector<8x32xf32> to vector<8x1xf32>
    %393 = vector.broadcast %391 : f32 to vector<8x1xf32>
    %394 = arith.mulf %393, %392 : vector<8x1xf32>
    %395 = vector.extract_strided_slice %7 {offsets = [20, 0], sizes = [1, 8], strides = [1, 1]} : vector<32x8xf32> to vector<1x8xf32>
    %396 = vector.broadcast %391 : f32 to vector<1x8xf32>
    %397 = arith.mulf %396, %395 : vector<1x8xf32>
    %398 = arith.addf %389, %394 : vector<8x1xf32>
    %399 = arith.addf %390, %397 : vector<1x8xf32>
    %c1_99 = arith.constant 1 : index
    %c5_100 = arith.constant 5 : index
    %400 = memref.load %arg6[%c1_99, %c5_100] : memref<2x16xf32, #tpu.memory_space<smem>>
    %401 = vector.extract_strided_slice %6 {offsets = [0, 21], sizes = [8, 1], strides = [1, 1]} : vector<8x32xf32> to vector<8x1xf32>
    %402 = vector.broadcast %400 : f32 to vector<8x1xf32>
    %403 = arith.mulf %402, %401 : vector<8x1xf32>
    %404 = vector.extract_strided_slice %7 {offsets = [21, 0], sizes = [1, 8], strides = [1, 1]} : vector<32x8xf32> to vector<1x8xf32>
    %405 = vector.broadcast %400 : f32 to vector<1x8xf32>
    %406 = arith.mulf %405, %404 : vector<1x8xf32>
    %407 = arith.addf %398, %403 : vector<8x1xf32>
    %408 = arith.addf %399, %406 : vector<1x8xf32>
    %c1_101 = arith.constant 1 : index
    %c6_102 = arith.constant 6 : index
    %409 = memref.load %arg6[%c1_101, %c6_102] : memref<2x16xf32, #tpu.memory_space<smem>>
    %410 = vector.extract_strided_slice %6 {offsets = [0, 22], sizes = [8, 1], strides = [1, 1]} : vector<8x32xf32> to vector<8x1xf32>
    %411 = vector.broadcast %409 : f32 to vector<8x1xf32>
    %412 = arith.mulf %411, %410 : vector<8x1xf32>
    %413 = vector.extract_strided_slice %7 {offsets = [22, 0], sizes = [1, 8], strides = [1, 1]} : vector<32x8xf32> to vector<1x8xf32>
    %414 = vector.broadcast %409 : f32 to vector<1x8xf32>
    %415 = arith.mulf %414, %413 : vector<1x8xf32>
    %416 = arith.addf %407, %412 : vector<8x1xf32>
    %417 = arith.addf %408, %415 : vector<1x8xf32>
    %c1_103 = arith.constant 1 : index
    %c7_104 = arith.constant 7 : index
    %418 = memref.load %arg6[%c1_103, %c7_104] : memref<2x16xf32, #tpu.memory_space<smem>>
    %419 = vector.extract_strided_slice %6 {offsets = [0, 23], sizes = [8, 1], strides = [1, 1]} : vector<8x32xf32> to vector<8x1xf32>
    %420 = vector.broadcast %418 : f32 to vector<8x1xf32>
    %421 = arith.mulf %420, %419 : vector<8x1xf32>
    %422 = vector.extract_strided_slice %7 {offsets = [23, 0], sizes = [1, 8], strides = [1, 1]} : vector<32x8xf32> to vector<1x8xf32>
    %423 = vector.broadcast %418 : f32 to vector<1x8xf32>
    %424 = arith.mulf %423, %422 : vector<1x8xf32>
    %425 = arith.addf %416, %421 : vector<8x1xf32>
    %426 = arith.addf %417, %424 : vector<1x8xf32>
    %c1_105 = arith.constant 1 : index
    %c8_106 = arith.constant 8 : index
    %427 = memref.load %arg6[%c1_105, %c8_106] : memref<2x16xf32, #tpu.memory_space<smem>>
    %428 = vector.extract_strided_slice %6 {offsets = [0, 24], sizes = [8, 1], strides = [1, 1]} : vector<8x32xf32> to vector<8x1xf32>
    %429 = vector.broadcast %427 : f32 to vector<8x1xf32>
    %430 = arith.mulf %429, %428 : vector<8x1xf32>
    %431 = vector.extract_strided_slice %7 {offsets = [24, 0], sizes = [1, 8], strides = [1, 1]} : vector<32x8xf32> to vector<1x8xf32>
    %432 = vector.broadcast %427 : f32 to vector<1x8xf32>
    %433 = arith.mulf %432, %431 : vector<1x8xf32>
    %434 = arith.addf %425, %430 : vector<8x1xf32>
    %435 = arith.addf %426, %433 : vector<1x8xf32>
    %c1_107 = arith.constant 1 : index
    %c9_108 = arith.constant 9 : index
    %436 = memref.load %arg6[%c1_107, %c9_108] : memref<2x16xf32, #tpu.memory_space<smem>>
    %437 = vector.extract_strided_slice %6 {offsets = [0, 25], sizes = [8, 1], strides = [1, 1]} : vector<8x32xf32> to vector<8x1xf32>
    %438 = vector.broadcast %436 : f32 to vector<8x1xf32>
    %439 = arith.mulf %438, %437 : vector<8x1xf32>
    %440 = vector.extract_strided_slice %7 {offsets = [25, 0], sizes = [1, 8], strides = [1, 1]} : vector<32x8xf32> to vector<1x8xf32>
    %441 = vector.broadcast %436 : f32 to vector<1x8xf32>
    %442 = arith.mulf %441, %440 : vector<1x8xf32>
    %443 = arith.addf %434, %439 : vector<8x1xf32>
    %444 = arith.addf %435, %442 : vector<1x8xf32>
    %c1_109 = arith.constant 1 : index
    %c10_110 = arith.constant 10 : index
    %445 = memref.load %arg6[%c1_109, %c10_110] : memref<2x16xf32, #tpu.memory_space<smem>>
    %446 = vector.extract_strided_slice %6 {offsets = [0, 26], sizes = [8, 1], strides = [1, 1]} : vector<8x32xf32> to vector<8x1xf32>
    %447 = vector.broadcast %445 : f32 to vector<8x1xf32>
    %448 = arith.mulf %447, %446 : vector<8x1xf32>
    %449 = vector.extract_strided_slice %7 {offsets = [26, 0], sizes = [1, 8], strides = [1, 1]} : vector<32x8xf32> to vector<1x8xf32>
    %450 = vector.broadcast %445 : f32 to vector<1x8xf32>
    %451 = arith.mulf %450, %449 : vector<1x8xf32>
    %452 = arith.addf %443, %448 : vector<8x1xf32>
    %453 = arith.addf %444, %451 : vector<1x8xf32>
    %c1_111 = arith.constant 1 : index
    %c11_112 = arith.constant 11 : index
    %454 = memref.load %arg6[%c1_111, %c11_112] : memref<2x16xf32, #tpu.memory_space<smem>>
    %455 = vector.extract_strided_slice %6 {offsets = [0, 27], sizes = [8, 1], strides = [1, 1]} : vector<8x32xf32> to vector<8x1xf32>
    %456 = vector.broadcast %454 : f32 to vector<8x1xf32>
    %457 = arith.mulf %456, %455 : vector<8x1xf32>
    %458 = vector.extract_strided_slice %7 {offsets = [27, 0], sizes = [1, 8], strides = [1, 1]} : vector<32x8xf32> to vector<1x8xf32>
    %459 = vector.broadcast %454 : f32 to vector<1x8xf32>
    %460 = arith.mulf %459, %458 : vector<1x8xf32>
    %461 = arith.addf %452, %457 : vector<8x1xf32>
    %462 = arith.addf %453, %460 : vector<1x8xf32>
    %c1_113 = arith.constant 1 : index
    %c12_114 = arith.constant 12 : index
    %463 = memref.load %arg6[%c1_113, %c12_114] : memref<2x16xf32, #tpu.memory_space<smem>>
    %464 = vector.extract_strided_slice %6 {offsets = [0, 28], sizes = [8, 1], strides = [1, 1]} : vector<8x32xf32> to vector<8x1xf32>
    %465 = vector.broadcast %463 : f32 to vector<8x1xf32>
    %466 = arith.mulf %465, %464 : vector<8x1xf32>
    %467 = vector.extract_strided_slice %7 {offsets = [28, 0], sizes = [1, 8], strides = [1, 1]} : vector<32x8xf32> to vector<1x8xf32>
    %468 = vector.broadcast %463 : f32 to vector<1x8xf32>
    %469 = arith.mulf %468, %467 : vector<1x8xf32>
    %470 = arith.addf %461, %466 : vector<8x1xf32>
    %471 = arith.addf %462, %469 : vector<1x8xf32>
    %c1_115 = arith.constant 1 : index
    %c13_116 = arith.constant 13 : index
    %472 = memref.load %arg6[%c1_115, %c13_116] : memref<2x16xf32, #tpu.memory_space<smem>>
    %473 = vector.extract_strided_slice %6 {offsets = [0, 29], sizes = [8, 1], strides = [1, 1]} : vector<8x32xf32> to vector<8x1xf32>
    %474 = vector.broadcast %472 : f32 to vector<8x1xf32>
    %475 = arith.mulf %474, %473 : vector<8x1xf32>
    %476 = vector.extract_strided_slice %7 {offsets = [29, 0], sizes = [1, 8], strides = [1, 1]} : vector<32x8xf32> to vector<1x8xf32>
    %477 = vector.broadcast %472 : f32 to vector<1x8xf32>
    %478 = arith.mulf %477, %476 : vector<1x8xf32>
    %479 = arith.addf %470, %475 : vector<8x1xf32>
    %480 = arith.addf %471, %478 : vector<1x8xf32>
    %c1_117 = arith.constant 1 : index
    %c14_118 = arith.constant 14 : index
    %481 = memref.load %arg6[%c1_117, %c14_118] : memref<2x16xf32, #tpu.memory_space<smem>>
    %482 = vector.extract_strided_slice %6 {offsets = [0, 30], sizes = [8, 1], strides = [1, 1]} : vector<8x32xf32> to vector<8x1xf32>
    %483 = vector.broadcast %481 : f32 to vector<8x1xf32>
    %484 = arith.mulf %483, %482 : vector<8x1xf32>
    %485 = vector.extract_strided_slice %7 {offsets = [30, 0], sizes = [1, 8], strides = [1, 1]} : vector<32x8xf32> to vector<1x8xf32>
    %486 = vector.broadcast %481 : f32 to vector<1x8xf32>
    %487 = arith.mulf %486, %485 : vector<1x8xf32>
    %488 = arith.addf %479, %484 : vector<8x1xf32>
    %489 = arith.addf %480, %487 : vector<1x8xf32>
    %c1_119 = arith.constant 1 : index
    %c15_120 = arith.constant 15 : index
    %490 = memref.load %arg6[%c1_119, %c15_120] : memref<2x16xf32, #tpu.memory_space<smem>>
    %491 = vector.extract_strided_slice %6 {offsets = [0, 31], sizes = [8, 1], strides = [1, 1]} : vector<8x32xf32> to vector<8x1xf32>
    %492 = vector.broadcast %490 : f32 to vector<8x1xf32>
    %493 = arith.mulf %492, %491 : vector<8x1xf32>
    %494 = vector.extract_strided_slice %7 {offsets = [31, 0], sizes = [1, 8], strides = [1, 1]} : vector<32x8xf32> to vector<1x8xf32>
    %495 = vector.broadcast %490 : f32 to vector<1x8xf32>
    %496 = arith.mulf %495, %494 : vector<1x8xf32>
    %497 = arith.addf %488, %493 : vector<8x1xf32>
    %498 = arith.addf %489, %496 : vector<1x8xf32>
    %499 = vector.broadcast %497 : vector<8x1xf32> to vector<8x8xf32>
    %500 = vector.broadcast %498 : vector<1x8xf32> to vector<8x8xf32>
    %501 = arith.addf %499, %500 : vector<8x8xf32>
    %cst_121 = arith.constant 6.000000e-01 : f32
    %502 = vector.broadcast %cst_121 : f32 to vector<8x8xf32>
    %503 = arith.mulf %502, %501 : vector<8x8xf32>
    %c1_122 = arith.constant 1 : index
    %c0_123 = arith.constant 0 : index
    %504 = memref.load %arg6[%c1_122, %c0_123] : memref<2x16xf32, #tpu.memory_space<smem>>
    %cst_124 = arith.constant 4.000000e-01 : f32
    %505 = arith.mulf %cst_124, %504 : f32
    %506 = vector.extract_strided_slice %6 {offsets = [0, 16], sizes = [8, 1], strides = [1, 1]} : vector<8x32xf32> to vector<8x1xf32>
    %507 = vector.extract_strided_slice %7 {offsets = [16, 0], sizes = [1, 8], strides = [1, 1]} : vector<32x8xf32> to vector<1x8xf32>
    %508 = vector.broadcast %506 : vector<8x1xf32> to vector<8x8xf32>
    %509 = vector.broadcast %507 : vector<1x8xf32> to vector<8x8xf32>
    %510 = arith.addf %508, %509 : vector<8x8xf32>
    %511 = math.absf %510 : vector<8x8xf32>
    %512 = vector.broadcast %505 : f32 to vector<8x8xf32>
    %513 = arith.mulf %512, %511 : vector<8x8xf32>
    %514 = arith.addf %503, %513 : vector<8x8xf32>
    %c1_125 = arith.constant 1 : index
    %c1_126 = arith.constant 1 : index
    %515 = memref.load %arg6[%c1_125, %c1_126] : memref<2x16xf32, #tpu.memory_space<smem>>
    %cst_127 = arith.constant 4.000000e-01 : f32
    %516 = arith.mulf %cst_127, %515 : f32
    %517 = vector.extract_strided_slice %6 {offsets = [0, 17], sizes = [8, 1], strides = [1, 1]} : vector<8x32xf32> to vector<8x1xf32>
    %518 = vector.extract_strided_slice %7 {offsets = [17, 0], sizes = [1, 8], strides = [1, 1]} : vector<32x8xf32> to vector<1x8xf32>
    %519 = vector.broadcast %517 : vector<8x1xf32> to vector<8x8xf32>
    %520 = vector.broadcast %518 : vector<1x8xf32> to vector<8x8xf32>
    %521 = arith.addf %519, %520 : vector<8x8xf32>
    %522 = math.absf %521 : vector<8x8xf32>
    %523 = vector.broadcast %516 : f32 to vector<8x8xf32>
    %524 = arith.mulf %523, %522 : vector<8x8xf32>
    %525 = arith.addf %514, %524 : vector<8x8xf32>
    %c1_128 = arith.constant 1 : index
    %c2_129 = arith.constant 2 : index
    %526 = memref.load %arg6[%c1_128, %c2_129] : memref<2x16xf32, #tpu.memory_space<smem>>
    %cst_130 = arith.constant 4.000000e-01 : f32
    %527 = arith.mulf %cst_130, %526 : f32
    %528 = vector.extract_strided_slice %6 {offsets = [0, 18], sizes = [8, 1], strides = [1, 1]} : vector<8x32xf32> to vector<8x1xf32>
    %529 = vector.extract_strided_slice %7 {offsets = [18, 0], sizes = [1, 8], strides = [1, 1]} : vector<32x8xf32> to vector<1x8xf32>
    %530 = vector.broadcast %528 : vector<8x1xf32> to vector<8x8xf32>
    %531 = vector.broadcast %529 : vector<1x8xf32> to vector<8x8xf32>
    %532 = arith.addf %530, %531 : vector<8x8xf32>
    %533 = math.absf %532 : vector<8x8xf32>
    %534 = vector.broadcast %527 : f32 to vector<8x8xf32>
    %535 = arith.mulf %534, %533 : vector<8x8xf32>
    %536 = arith.addf %525, %535 : vector<8x8xf32>
    %c1_131 = arith.constant 1 : index
    %c3_132 = arith.constant 3 : index
    %537 = memref.load %arg6[%c1_131, %c3_132] : memref<2x16xf32, #tpu.memory_space<smem>>
    %cst_133 = arith.constant 4.000000e-01 : f32
    %538 = arith.mulf %cst_133, %537 : f32
    %539 = vector.extract_strided_slice %6 {offsets = [0, 19], sizes = [8, 1], strides = [1, 1]} : vector<8x32xf32> to vector<8x1xf32>
    %540 = vector.extract_strided_slice %7 {offsets = [19, 0], sizes = [1, 8], strides = [1, 1]} : vector<32x8xf32> to vector<1x8xf32>
    %541 = vector.broadcast %539 : vector<8x1xf32> to vector<8x8xf32>
    %542 = vector.broadcast %540 : vector<1x8xf32> to vector<8x8xf32>
    %543 = arith.addf %541, %542 : vector<8x8xf32>
    %544 = math.absf %543 : vector<8x8xf32>
    %545 = vector.broadcast %538 : f32 to vector<8x8xf32>
    %546 = arith.mulf %545, %544 : vector<8x8xf32>
    %547 = arith.addf %536, %546 : vector<8x8xf32>
    %c1_134 = arith.constant 1 : index
    %c4_135 = arith.constant 4 : index
    %548 = memref.load %arg6[%c1_134, %c4_135] : memref<2x16xf32, #tpu.memory_space<smem>>
    %cst_136 = arith.constant 4.000000e-01 : f32
    %549 = arith.mulf %cst_136, %548 : f32
    %550 = vector.extract_strided_slice %6 {offsets = [0, 20], sizes = [8, 1], strides = [1, 1]} : vector<8x32xf32> to vector<8x1xf32>
    %551 = vector.extract_strided_slice %7 {offsets = [20, 0], sizes = [1, 8], strides = [1, 1]} : vector<32x8xf32> to vector<1x8xf32>
    %552 = vector.broadcast %550 : vector<8x1xf32> to vector<8x8xf32>
    %553 = vector.broadcast %551 : vector<1x8xf32> to vector<8x8xf32>
    %554 = arith.addf %552, %553 : vector<8x8xf32>
    %555 = math.absf %554 : vector<8x8xf32>
    %556 = vector.broadcast %549 : f32 to vector<8x8xf32>
    %557 = arith.mulf %556, %555 : vector<8x8xf32>
    %558 = arith.addf %547, %557 : vector<8x8xf32>
    %c1_137 = arith.constant 1 : index
    %c5_138 = arith.constant 5 : index
    %559 = memref.load %arg6[%c1_137, %c5_138] : memref<2x16xf32, #tpu.memory_space<smem>>
    %cst_139 = arith.constant 4.000000e-01 : f32
    %560 = arith.mulf %cst_139, %559 : f32
    %561 = vector.extract_strided_slice %6 {offsets = [0, 21], sizes = [8, 1], strides = [1, 1]} : vector<8x32xf32> to vector<8x1xf32>
    %562 = vector.extract_strided_slice %7 {offsets = [21, 0], sizes = [1, 8], strides = [1, 1]} : vector<32x8xf32> to vector<1x8xf32>
    %563 = vector.broadcast %561 : vector<8x1xf32> to vector<8x8xf32>
    %564 = vector.broadcast %562 : vector<1x8xf32> to vector<8x8xf32>
    %565 = arith.addf %563, %564 : vector<8x8xf32>
    %566 = math.absf %565 : vector<8x8xf32>
    %567 = vector.broadcast %560 : f32 to vector<8x8xf32>
    %568 = arith.mulf %567, %566 : vector<8x8xf32>
    %569 = arith.addf %558, %568 : vector<8x8xf32>
    %c1_140 = arith.constant 1 : index
    %c6_141 = arith.constant 6 : index
    %570 = memref.load %arg6[%c1_140, %c6_141] : memref<2x16xf32, #tpu.memory_space<smem>>
    %cst_142 = arith.constant 4.000000e-01 : f32
    %571 = arith.mulf %cst_142, %570 : f32
    %572 = vector.extract_strided_slice %6 {offsets = [0, 22], sizes = [8, 1], strides = [1, 1]} : vector<8x32xf32> to vector<8x1xf32>
    %573 = vector.extract_strided_slice %7 {offsets = [22, 0], sizes = [1, 8], strides = [1, 1]} : vector<32x8xf32> to vector<1x8xf32>
    %574 = vector.broadcast %572 : vector<8x1xf32> to vector<8x8xf32>
    %575 = vector.broadcast %573 : vector<1x8xf32> to vector<8x8xf32>
    %576 = arith.addf %574, %575 : vector<8x8xf32>
    %577 = math.absf %576 : vector<8x8xf32>
    %578 = vector.broadcast %571 : f32 to vector<8x8xf32>
    %579 = arith.mulf %578, %577 : vector<8x8xf32>
    %580 = arith.addf %569, %579 : vector<8x8xf32>
    %c1_143 = arith.constant 1 : index
    %c7_144 = arith.constant 7 : index
    %581 = memref.load %arg6[%c1_143, %c7_144] : memref<2x16xf32, #tpu.memory_space<smem>>
    %cst_145 = arith.constant 4.000000e-01 : f32
    %582 = arith.mulf %cst_145, %581 : f32
    %583 = vector.extract_strided_slice %6 {offsets = [0, 23], sizes = [8, 1], strides = [1, 1]} : vector<8x32xf32> to vector<8x1xf32>
    %584 = vector.extract_strided_slice %7 {offsets = [23, 0], sizes = [1, 8], strides = [1, 1]} : vector<32x8xf32> to vector<1x8xf32>
    %585 = vector.broadcast %583 : vector<8x1xf32> to vector<8x8xf32>
    %586 = vector.broadcast %584 : vector<1x8xf32> to vector<8x8xf32>
    %587 = arith.addf %585, %586 : vector<8x8xf32>
    %588 = math.absf %587 : vector<8x8xf32>
    %589 = vector.broadcast %582 : f32 to vector<8x8xf32>
    %590 = arith.mulf %589, %588 : vector<8x8xf32>
    %591 = arith.addf %580, %590 : vector<8x8xf32>
    %c1_146 = arith.constant 1 : index
    %c8_147 = arith.constant 8 : index
    %592 = memref.load %arg6[%c1_146, %c8_147] : memref<2x16xf32, #tpu.memory_space<smem>>
    %cst_148 = arith.constant 4.000000e-01 : f32
    %593 = arith.mulf %cst_148, %592 : f32
    %594 = vector.extract_strided_slice %6 {offsets = [0, 24], sizes = [8, 1], strides = [1, 1]} : vector<8x32xf32> to vector<8x1xf32>
    %595 = vector.extract_strided_slice %7 {offsets = [24, 0], sizes = [1, 8], strides = [1, 1]} : vector<32x8xf32> to vector<1x8xf32>
    %596 = vector.broadcast %594 : vector<8x1xf32> to vector<8x8xf32>
    %597 = vector.broadcast %595 : vector<1x8xf32> to vector<8x8xf32>
    %598 = arith.addf %596, %597 : vector<8x8xf32>
    %599 = math.absf %598 : vector<8x8xf32>
    %600 = vector.broadcast %593 : f32 to vector<8x8xf32>
    %601 = arith.mulf %600, %599 : vector<8x8xf32>
    %602 = arith.addf %591, %601 : vector<8x8xf32>
    %c1_149 = arith.constant 1 : index
    %c9_150 = arith.constant 9 : index
    %603 = memref.load %arg6[%c1_149, %c9_150] : memref<2x16xf32, #tpu.memory_space<smem>>
    %cst_151 = arith.constant 4.000000e-01 : f32
    %604 = arith.mulf %cst_151, %603 : f32
    %605 = vector.extract_strided_slice %6 {offsets = [0, 25], sizes = [8, 1], strides = [1, 1]} : vector<8x32xf32> to vector<8x1xf32>
    %606 = vector.extract_strided_slice %7 {offsets = [25, 0], sizes = [1, 8], strides = [1, 1]} : vector<32x8xf32> to vector<1x8xf32>
    %607 = vector.broadcast %605 : vector<8x1xf32> to vector<8x8xf32>
    %608 = vector.broadcast %606 : vector<1x8xf32> to vector<8x8xf32>
    %609 = arith.addf %607, %608 : vector<8x8xf32>
    %610 = math.absf %609 : vector<8x8xf32>
    %611 = vector.broadcast %604 : f32 to vector<8x8xf32>
    %612 = arith.mulf %611, %610 : vector<8x8xf32>
    %613 = arith.addf %602, %612 : vector<8x8xf32>
    %c1_152 = arith.constant 1 : index
    %c10_153 = arith.constant 10 : index
    %614 = memref.load %arg6[%c1_152, %c10_153] : memref<2x16xf32, #tpu.memory_space<smem>>
    %cst_154 = arith.constant 4.000000e-01 : f32
    %615 = arith.mulf %cst_154, %614 : f32
    %616 = vector.extract_strided_slice %6 {offsets = [0, 26], sizes = [8, 1], strides = [1, 1]} : vector<8x32xf32> to vector<8x1xf32>
    %617 = vector.extract_strided_slice %7 {offsets = [26, 0], sizes = [1, 8], strides = [1, 1]} : vector<32x8xf32> to vector<1x8xf32>
    %618 = vector.broadcast %616 : vector<8x1xf32> to vector<8x8xf32>
    %619 = vector.broadcast %617 : vector<1x8xf32> to vector<8x8xf32>
    %620 = arith.addf %618, %619 : vector<8x8xf32>
    %621 = math.absf %620 : vector<8x8xf32>
    %622 = vector.broadcast %615 : f32 to vector<8x8xf32>
    %623 = arith.mulf %622, %621 : vector<8x8xf32>
    %624 = arith.addf %613, %623 : vector<8x8xf32>
    %c1_155 = arith.constant 1 : index
    %c11_156 = arith.constant 11 : index
    %625 = memref.load %arg6[%c1_155, %c11_156] : memref<2x16xf32, #tpu.memory_space<smem>>
    %cst_157 = arith.constant 4.000000e-01 : f32
    %626 = arith.mulf %cst_157, %625 : f32
    %627 = vector.extract_strided_slice %6 {offsets = [0, 27], sizes = [8, 1], strides = [1, 1]} : vector<8x32xf32> to vector<8x1xf32>
    %628 = vector.extract_strided_slice %7 {offsets = [27, 0], sizes = [1, 8], strides = [1, 1]} : vector<32x8xf32> to vector<1x8xf32>
    %629 = vector.broadcast %627 : vector<8x1xf32> to vector<8x8xf32>
    %630 = vector.broadcast %628 : vector<1x8xf32> to vector<8x8xf32>
    %631 = arith.addf %629, %630 : vector<8x8xf32>
    %632 = math.absf %631 : vector<8x8xf32>
    %633 = vector.broadcast %626 : f32 to vector<8x8xf32>
    %634 = arith.mulf %633, %632 : vector<8x8xf32>
    %635 = arith.addf %624, %634 : vector<8x8xf32>
    %c1_158 = arith.constant 1 : index
    %c12_159 = arith.constant 12 : index
    %636 = memref.load %arg6[%c1_158, %c12_159] : memref<2x16xf32, #tpu.memory_space<smem>>
    %cst_160 = arith.constant 4.000000e-01 : f32
    %637 = arith.mulf %cst_160, %636 : f32
    %638 = vector.extract_strided_slice %6 {offsets = [0, 28], sizes = [8, 1], strides = [1, 1]} : vector<8x32xf32> to vector<8x1xf32>
    %639 = vector.extract_strided_slice %7 {offsets = [28, 0], sizes = [1, 8], strides = [1, 1]} : vector<32x8xf32> to vector<1x8xf32>
    %640 = vector.broadcast %638 : vector<8x1xf32> to vector<8x8xf32>
    %641 = vector.broadcast %639 : vector<1x8xf32> to vector<8x8xf32>
    %642 = arith.addf %640, %641 : vector<8x8xf32>
    %643 = math.absf %642 : vector<8x8xf32>
    %644 = vector.broadcast %637 : f32 to vector<8x8xf32>
    %645 = arith.mulf %644, %643 : vector<8x8xf32>
    %646 = arith.addf %635, %645 : vector<8x8xf32>
    %c1_161 = arith.constant 1 : index
    %c13_162 = arith.constant 13 : index
    %647 = memref.load %arg6[%c1_161, %c13_162] : memref<2x16xf32, #tpu.memory_space<smem>>
    %cst_163 = arith.constant 4.000000e-01 : f32
    %648 = arith.mulf %cst_163, %647 : f32
    %649 = vector.extract_strided_slice %6 {offsets = [0, 29], sizes = [8, 1], strides = [1, 1]} : vector<8x32xf32> to vector<8x1xf32>
    %650 = vector.extract_strided_slice %7 {offsets = [29, 0], sizes = [1, 8], strides = [1, 1]} : vector<32x8xf32> to vector<1x8xf32>
    %651 = vector.broadcast %649 : vector<8x1xf32> to vector<8x8xf32>
    %652 = vector.broadcast %650 : vector<1x8xf32> to vector<8x8xf32>
    %653 = arith.addf %651, %652 : vector<8x8xf32>
    %654 = math.absf %653 : vector<8x8xf32>
    %655 = vector.broadcast %648 : f32 to vector<8x8xf32>
    %656 = arith.mulf %655, %654 : vector<8x8xf32>
    %657 = arith.addf %646, %656 : vector<8x8xf32>
    %c1_164 = arith.constant 1 : index
    %c14_165 = arith.constant 14 : index
    %658 = memref.load %arg6[%c1_164, %c14_165] : memref<2x16xf32, #tpu.memory_space<smem>>
    %cst_166 = arith.constant 4.000000e-01 : f32
    %659 = arith.mulf %cst_166, %658 : f32
    %660 = vector.extract_strided_slice %6 {offsets = [0, 30], sizes = [8, 1], strides = [1, 1]} : vector<8x32xf32> to vector<8x1xf32>
    %661 = vector.extract_strided_slice %7 {offsets = [30, 0], sizes = [1, 8], strides = [1, 1]} : vector<32x8xf32> to vector<1x8xf32>
    %662 = vector.broadcast %660 : vector<8x1xf32> to vector<8x8xf32>
    %663 = vector.broadcast %661 : vector<1x8xf32> to vector<8x8xf32>
    %664 = arith.addf %662, %663 : vector<8x8xf32>
    %665 = math.absf %664 : vector<8x8xf32>
    %666 = vector.broadcast %659 : f32 to vector<8x8xf32>
    %667 = arith.mulf %666, %665 : vector<8x8xf32>
    %668 = arith.addf %657, %667 : vector<8x8xf32>
    %c1_167 = arith.constant 1 : index
    %c15_168 = arith.constant 15 : index
    %669 = memref.load %arg6[%c1_167, %c15_168] : memref<2x16xf32, #tpu.memory_space<smem>>
    %cst_169 = arith.constant 4.000000e-01 : f32
    %670 = arith.mulf %cst_169, %669 : f32
    %671 = vector.extract_strided_slice %6 {offsets = [0, 31], sizes = [8, 1], strides = [1, 1]} : vector<8x32xf32> to vector<8x1xf32>
    %672 = vector.extract_strided_slice %7 {offsets = [31, 0], sizes = [1, 8], strides = [1, 1]} : vector<32x8xf32> to vector<1x8xf32>
    %673 = vector.broadcast %671 : vector<8x1xf32> to vector<8x8xf32>
    %674 = vector.broadcast %672 : vector<1x8xf32> to vector<8x8xf32>
    %675 = arith.addf %673, %674 : vector<8x8xf32>
    %676 = math.absf %675 : vector<8x8xf32>
    %677 = vector.broadcast %670 : f32 to vector<8x8xf32>
    %678 = arith.mulf %677, %676 : vector<8x8xf32>
    %679 = arith.addf %668, %678 : vector<8x8xf32>
    %cst_170 = arith.constant -1.000000e+30 : f32
    %680 = vector.broadcast %cst_170 : f32 to vector<8x8xf32>
    %681 = arith.select %5, %679, %680 : vector<8x8xi1>, vector<8x8xf32>
    %c0_171 = arith.constant 0 : index
    %c1_172 = arith.constant 1 : index
    %682 = vector.load %arg9[%c0_171, %c1_172] : memref<8x2xf32, #tpu.memory_space<vmem>>, vector<8x1xf32>
    %cst_173 = arith.constant dense<0xFF800000> : vector<8xf32>
    %683 = vector.multi_reduction <maximumf>, %681, %cst_173 [1] : vector<8x8xf32> to vector<8xf32>
    %684 = vector.shape_cast %683 : vector<8xf32> to vector<8x1xf32>
    %685 = arith.maximumf %682, %684 : vector<8x1xf32>
    %686 = arith.subf %682, %685 : vector<8x1xf32>
    %687 = math.exp %686 : vector<8x1xf32>
    %688 = vector.broadcast %685 : vector<8x1xf32> to vector<8x8xf32>
    %689 = arith.subf %681, %688 : vector<8x8xf32>
    %690 = math.exp %689 : vector<8x8xf32>
    %c0_174 = arith.constant 0 : index
    %c1_175 = arith.constant 1 : index
    %691 = vector.load %arg10[%c0_174, %c1_175] : memref<8x2xf32, #tpu.memory_space<vmem>>, vector<8x1xf32>
    %692 = arith.mulf %687, %691 : vector<8x1xf32>
    %cst_176 = arith.constant dense<0.000000e+00> : vector<8xf32>
    %693 = vector.multi_reduction <add>, %690, %cst_176 [1] : vector<8x8xf32> to vector<8xf32>
    %694 = vector.shape_cast %693 : vector<8xf32> to vector<8x1xf32>
    %695 = arith.addf %692, %694 : vector<8x1xf32>
    %c0_177 = arith.constant 0 : index
    %c1_178 = arith.constant 1 : index
    %696 = vector.load %arg10[%c0_177, %c1_178] : memref<8x2xf32, #tpu.memory_space<vmem>>, vector<8x1xf32>
    tpu.vector_store %arg10[%c0_177, %c1_178], %695 {strides = array<i32>} : memref<8x2xf32, #tpu.memory_space<vmem>>, vector<8x1xf32>,
    %697 = arith.truncf %690 : vector<8x8xf32> to vector<8x8xbf16>
    %c0_179 = arith.constant 0 : index
    %c16 = arith.constant 16 : index
    %698 = vector.load %arg3[%c0_179, %c16] : memref<8x32xbf16, #tpu.memory_space<vmem>>, vector<8x16xbf16>
    %cst_180 = arith.constant dense<0.000000e+00> : vector<8x16xf32>
    %699 = tpu.matmul %697, %698, %cst_180 {dimension_numbers = #tpu.dot_dimension_numbers<[1], [0], [0], [1], [0, 0, 1, 1], [], []>} : vector<8x8xbf16>, vector<8x16xbf16>, vector<8x16xf32> -> vector<8x16xf32>
    %c0_181 = arith.constant 0 : index
    %c16_182 = arith.constant 16 : index
    %700 = vector.load %arg11[%c0_181, %c16_182] : memref<8x32xf32, #tpu.memory_space<vmem>>, vector<8x16xf32>
    %701 = vector.broadcast %687 : vector<8x1xf32> to vector<8x16xf32>
    %702 = arith.mulf %701, %700 : vector<8x16xf32>
    %703 = arith.addf %702, %699 : vector<8x16xf32>
    %c0_183 = arith.constant 0 : index
    %c16_184 = arith.constant 16 : index
    %704 = vector.load %arg11[%c0_183, %c16_184] : memref<8x32xf32, #tpu.memory_space<vmem>>, vector<8x16xf32>
    tpu.vector_store %arg11[%c0_183, %c16_184], %703 {strides = array<i32>} : memref<8x32xf32, #tpu.memory_space<vmem>>, vector<8x16xf32>,
    %c0_185 = arith.constant 0 : index
    %c1_186 = arith.constant 1 : index
    %705 = vector.load %arg9[%c0_185, %c1_186] : memref<8x2xf32, #tpu.memory_space<vmem>>, vector<8x1xf32>
    tpu.vector_store %arg9[%c0_185, %c1_186], %685 {strides = array<i32>} : memref<8x2xf32, #tpu.memory_space<vmem>>, vector<8x1xf32>,
    %c0_i32_187 = arith.constant 0 : i32
    %706 = arith.cmpi eq, %arg1, %c0_i32_187 : i32
    %707 = arith.extui %706 : i1 to i32
    %c0_i32_188 = arith.constant 0 : i32
    %708 = arith.cmpi ne, %707, %c0_i32_188 : i32
    scf.if %708 {
      %c0_189 = arith.constant 0 : index
      %c0_190 = arith.constant 0 : index
      %709 = vector.load %arg11[%c0_189, %c0_190] : memref<8x32xf32, #tpu.memory_space<vmem>>, vector<8x32xf32>
      %c0_191 = arith.constant 0 : index
      %c0_192 = arith.constant 0 : index
      %710 = vector.load %arg10[%c0_191, %c0_192] : memref<8x2xf32, #tpu.memory_space<vmem>>, vector<8x2xf32>
      %cst_193 = arith.constant 9.99999968E-21 : f32
      %711 = vector.broadcast %cst_193 : f32 to vector<8x2xf32>
      %712 = arith.maximumf %710, %711 : vector<8x2xf32>
      %713 = tpu.reciprocal %712 {approx = true} : vector<8x2xf32> -> vector<8x2xf32>
      %714 = vector.extract_strided_slice %709 {offsets = [0, 0], sizes = [8, 16], strides = [1, 1]} : vector<8x32xf32> to vector<8x16xf32>
      %715 = vector.extract_strided_slice %713 {offsets = [0, 0], sizes = [8, 1], strides = [1, 1]} : vector<8x2xf32> to vector<8x1xf32>
      %716 = vector.broadcast %715 : vector<8x1xf32> to vector<8x16xf32>
      %717 = arith.mulf %714, %716 : vector<8x16xf32>
      %718 = vector.extract_strided_slice %709 {offsets = [0, 16], sizes = [8, 16], strides = [1, 1]} : vector<8x32xf32> to vector<8x16xf32>
      %719 = vector.extract_strided_slice %713 {offsets = [0, 1], sizes = [8, 1], strides = [1, 1]} : vector<8x2xf32> to vector<8x1xf32>
      %720 = vector.broadcast %719 : vector<8x1xf32> to vector<8x16xf32>
      %721 = arith.mulf %718, %720 : vector<8x16xf32>
      %722 = tpu.concatenate %717, %721 in 1 : vector<8x16xf32>, vector<8x16xf32> -> vector<8x32xf32>
      %c0_194 = arith.constant 0 : index
      %c0_195 = arith.constant 0 : index
      %723 = vector.load %arg7[%c0_194, %c0_195] : memref<1x32xf32, #tpu.memory_space<vmem>>, vector<1x32xf32>
      %724 = vector.broadcast %723 : vector<1x32xf32> to vector<8x32xf32>
      %725 = arith.addf %722, %724 : vector<8x32xf32>
      %c0_196 = arith.constant 0 : index
      %c0_197 = arith.constant 0 : index
      %726 = vector.load %arg8[%c0_196, %c0_197] : memref<8x32xf32, #tpu.memory_space<vmem>>, vector<8x32xf32>
      tpu.vector_store %arg8[%c0_196, %c0_197], %725 {strides = array<i32>} : memref<8x32xf32, #tpu.memory_space<vmem>>, vector<8x32xf32>,
    } else {
    }
    return
  }
  func.func @transform_0(%arg0: i32, %arg1: i32) -> (i32, i32) {
    %c0_i32 = arith.constant 0 : i32
    %c0_i32_0 = arith.constant 0 : i32
    return %arg0, %c0_i32 : i32, i32
  }
  func.func @transform_1(%arg0: i32, %arg1: i32) -> (i32, i32) {
    %c0_i32 = arith.constant 0 : i32
    %c0_i32_0 = arith.constant 0 : i32
    return %arg1, %c0_i32 : i32, i32
  }
  func.func @transform_2(%arg0: i32, %arg1: i32) -> (i32, i32) {
    %c0_i32 = arith.constant 0 : i32
    %c0_i32_0 = arith.constant 0 : i32
    return %c0_i32, %arg1 : i32, i32
  }
  func.func @transform_3(%arg0: i32, %arg1: i32) -> (i32, i32) {
    %c0_i32 = arith.constant 0 : i32
    return %arg0, %arg1 : i32, i32
  }
  func.func @transform_4(%arg0: i32, %arg1: i32) -> (i32, i32) {
    %c0_i32 = arith.constant 0 : i32
    %c0_i32_0 = arith.constant 0 : i32
    %c0_i32_1 = arith.constant 0 : i32
    return %c0_i32, %c0_i32_0 : i32, i32
  }
  func.func @transform_5(%arg0: i32, %arg1: i32) -> (i32, i32) {
    %c0_i32 = arith.constant 0 : i32
    %c0_i32_0 = arith.constant 0 : i32
    %c0_i32_1 = arith.constant 0 : i32
    return %c0_i32, %c0_i32_0 : i32, i32
  }
  func.func @transform_6(%arg0: i32, %arg1: i32) -> (i32, i32) {
    %c0_i32 = arith.constant 0 : i32
    %c0_i32_0 = arith.constant 0 : i32
    return %arg0, %c0_i32 : i32, i32
  }
}

module attributes {stable_mosaic.version = 11 : i64} {
  func.func @_gn_norm_relu_kernel(%arg0: i32, %arg1: memref<8x32xf32, #tpu.memory_space<vmem>>, %arg2: memref<1x32xf32, #tpu.memory_space<vmem>>, %arg3: memref<1x32xf32, #tpu.memory_space<vmem>>, %arg4: memref<1x32xf32, #tpu.memory_space<vmem>>, %arg5: memref<1x32xf32, #tpu.memory_space<vmem>>, %arg6: memref<1x32xf32, #tpu.memory_space<vmem>>, %arg7: memref<8x32xf32, #tpu.memory_space<vmem>>) attributes {dimension_semantics = [#tpu.dimension_semantics<parallel>], iteration_bounds = array<i64: 1>, scalar_prefetch = 0 : i64, scratch_operands = 0 : i64, tpu.core_type = #tpu.core_type<tc>, window_params = [{transform_indices = @transform_0, window_bounds = array<i64: 8, 32>}, {pipeline_mode = #tpu.pipeline_mode<synchronous>, transform_indices = @transform_1, window_bounds = array<i64: 1, 32>}, {pipeline_mode = #tpu.pipeline_mode<synchronous>, transform_indices = @transform_2, window_bounds = array<i64: 1, 32>}, {pipeline_mode = #tpu.pipeline_mode<synchronous>, transform_indices = @transform_3, window_bounds = array<i64: 1, 32>}, {pipeline_mode = #tpu.pipeline_mode<synchronous>, transform_indices = @transform_4, window_bounds = array<i64: 1, 32>}, {pipeline_mode = #tpu.pipeline_mode<synchronous>, transform_indices = @transform_5, window_bounds = array<i64: 1, 32>}, {transform_indices = @transform_6, window_bounds = array<i64: 8, 32>}]} {
    %c0 = arith.constant 0 : index
    %c0_0 = arith.constant 0 : index
    %0 = vector.load %arg2[%c0, %c0_0] : memref<1x32xf32, #tpu.memory_space<vmem>>, vector<1x32xf32>
    %cst = arith.constant 1.250000e-01 : f32
    %1 = vector.broadcast %cst : f32 to vector<1x32xf32>
    %2 = arith.mulf %0, %1 : vector<1x32xf32>
    %c0_1 = arith.constant 0 : index
    %c0_2 = arith.constant 0 : index
    %3 = vector.load %arg3[%c0_1, %c0_2] : memref<1x32xf32, #tpu.memory_space<vmem>>, vector<1x32xf32>
    %cst_3 = arith.constant 1.250000e-01 : f32
    %4 = vector.broadcast %cst_3 : f32 to vector<1x32xf32>
    %5 = arith.mulf %3, %4 : vector<1x32xf32>
    %c0_4 = arith.constant 0 : index
    %c0_5 = arith.constant 0 : index
    %6 = vector.load %arg6[%c0_4, %c0_5] : memref<1x32xf32, #tpu.memory_space<vmem>>, vector<1x32xf32>
    %7 = arith.mulf %2, %2 : vector<1x32xf32>
    %8 = arith.mulf %7, %6 : vector<1x32xf32>
    %cst_6 = arith.constant 2.000000e+00 : f32
    %9 = vector.broadcast %cst_6 : f32 to vector<1x32xf32>
    %10 = arith.subf %9, %6 : vector<1x32xf32>
    %11 = arith.mulf %8, %10 : vector<1x32xf32>
    %12 = arith.subf %5, %11 : vector<1x32xf32>
    %c0_7 = arith.constant 0 : index
    %c0_8 = arith.constant 0 : index
    %13 = vector.load %arg4[%c0_7, %c0_8] : memref<1x32xf32, #tpu.memory_space<vmem>>, vector<1x32xf32>
    %cst_9 = arith.constant 9.99999974E-6 : f32
    %14 = vector.broadcast %cst_9 : f32 to vector<1x32xf32>
    %15 = arith.addf %12, %14 : vector<1x32xf32>
    %16 = math.rsqrt %15 : vector<1x32xf32>
    %17 = arith.mulf %13, %16 : vector<1x32xf32>
    %c0_10 = arith.constant 0 : index
    %c0_11 = arith.constant 0 : index
    %18 = vector.load %arg1[%c0_10, %c0_11] : memref<8x32xf32, #tpu.memory_space<vmem>>, vector<8x32xf32>
    %19 = arith.mulf %2, %6 : vector<1x32xf32>
    %20 = vector.broadcast %19 : vector<1x32xf32> to vector<8x32xf32>
    %21 = arith.subf %18, %20 : vector<8x32xf32>
    %22 = vector.broadcast %17 : vector<1x32xf32> to vector<8x32xf32>
    %23 = arith.mulf %22, %21 : vector<8x32xf32>
    %c0_12 = arith.constant 0 : index
    %c0_13 = arith.constant 0 : index
    %24 = vector.load %arg5[%c0_12, %c0_13] : memref<1x32xf32, #tpu.memory_space<vmem>>, vector<1x32xf32>
    %25 = vector.broadcast %24 : vector<1x32xf32> to vector<8x32xf32>
    %26 = arith.addf %23, %25 : vector<8x32xf32>
    %cst_14 = arith.constant 0.000000e+00 : f32
    %27 = vector.broadcast %cst_14 : f32 to vector<8x32xf32>
    %28 = arith.maximumf %26, %27 : vector<8x32xf32>
    %c0_15 = arith.constant 0 : index
    %c0_16 = arith.constant 0 : index
    %29 = vector.load %arg7[%c0_15, %c0_16] : memref<8x32xf32, #tpu.memory_space<vmem>>, vector<8x32xf32>
    tpu.vector_store %arg7[%c0_15, %c0_16], %28 {strides = array<i32>} : memref<8x32xf32, #tpu.memory_space<vmem>>, vector<8x32xf32>,
    return
  }
  func.func @transform_0(%arg0: i32) -> (i32, i32) {
    %c0_i32 = arith.constant 0 : i32
    %c0_i32_0 = arith.constant 0 : i32
    return %arg0, %c0_i32 : i32, i32
  }
  func.func @transform_1(%arg0: i32) -> (i32, i32) {
    %c0_i32 = arith.constant 0 : i32
    %c0_i32_0 = arith.constant 0 : i32
    %c0_i32_1 = arith.constant 0 : i32
    return %c0_i32, %c0_i32_0 : i32, i32
  }
  func.func @transform_2(%arg0: i32) -> (i32, i32) {
    %c0_i32 = arith.constant 0 : i32
    %c0_i32_0 = arith.constant 0 : i32
    %c0_i32_1 = arith.constant 0 : i32
    return %c0_i32, %c0_i32_0 : i32, i32
  }
  func.func @transform_3(%arg0: i32) -> (i32, i32) {
    %c0_i32 = arith.constant 0 : i32
    %c0_i32_0 = arith.constant 0 : i32
    %c0_i32_1 = arith.constant 0 : i32
    return %c0_i32, %c0_i32_0 : i32, i32
  }
  func.func @transform_4(%arg0: i32) -> (i32, i32) {
    %c0_i32 = arith.constant 0 : i32
    %c0_i32_0 = arith.constant 0 : i32
    %c0_i32_1 = arith.constant 0 : i32
    return %c0_i32, %c0_i32_0 : i32, i32
  }
  func.func @transform_5(%arg0: i32) -> (i32, i32) {
    %c0_i32 = arith.constant 0 : i32
    %c0_i32_0 = arith.constant 0 : i32
    %c0_i32_1 = arith.constant 0 : i32
    return %c0_i32, %c0_i32_0 : i32, i32
  }
  func.func @transform_6(%arg0: i32) -> (i32, i32) {
    %c0_i32 = arith.constant 0 : i32
    %c0_i32_0 = arith.constant 0 : i32
    return %arg0, %c0_i32 : i32, i32
  }
}

</mosaic_0001>

<llo_original>
// kernel: dgcn_layers_forward.10
$region0: #{dgcn_layers_forward.10}
  #allocation0 [shape = 'u32[]', space=smem, size = 0x4, offset = 0x4, fixed_abs, tag = 'smem constant byte address 0x4 - core index']
  #allocation1 [shape = 'u32[144,128]{1,0:T(1,128)}', space=vmem, size = 0x12000, scoped, tag = 'internal scratch']
  %s0 = inlined_call_operand.vmem [shape: f32[8,32], index: 0, kind: input, shape index: {}]
  %s1 = inlined_call_operand.vmem [shape: f32[1,32], index: 1, kind: output, shape index: {0}]
  %s2 = inlined_call_operand.vmem [shape: f32[1,32], index: 2, kind: output, shape index: {1}]
  %3 = xla_tuple %s1, %s2
  %s4 = sld [smem:[#allocation0]]
  $region26: #{dgcn_layers_forward.10} parent=0
    _
  %s6 = ssub.s32 1, %s4
  %s7 = scalar_select 0, %s6, %s4
  // Predicated region
  $region2: #{dgcn_layers_forward.10} parent=0 // pred_check
    _
  $region3: #{dgcn_layers_forward.10} parent=0 // pred_check_branch
    %9 = sbr.rel (0) target = $region5
  $region4: #{dgcn_layers_forward.10} parent=0 // pred_region
    _
  $region5: #{dgcn_layers_forward.10} parent=0 // pred_fallthru
    _
  %p10 = scmp.eq.s32.totalorder 0, 0
  // Predicated region
  $region6: #{dgcn_layers_forward.10} parent=0 // pred_check
    %p11 = pneg %p10
  $region7: #{dgcn_layers_forward.10} parent=0 // pred_check_branch
    %13 = sbr.rel (%p11) target = $region9
  $region8: #{dgcn_layers_forward.10} parent=0 // pred_region
    %vm14 = vcmask 253952
    %15 = vst.msk [vmem:[%s1] sm:$0x1] %vm14, 0.0
    %16 = vst.msk [vmem:[%s2] sm:$0x1] %vm14, 0.0
  $region9: #{dgcn_layers_forward.10} parent=0 // pred_fallthru
    _
  %v17 = vld [vmem:[%s0] sm:$0xff]
  %v18 = vld [vmem:[%s1] sm:$0x1]
  %vm19 = vcmask 261120
  %v20 = vsel %vm19, %v17, 0.0
  %v21 = vrot.slane %v20, 4
  %v22 = vadd.f32 %v20, %v21
  %v23 = vrot.slane %v22, 2
  %v24 = vadd.f32 %v22, %v23
  %v25 = vrot.slane %v24, 1
  %v26 = vadd.f32 %v24, %v25
  %v27 = vadd.f32 %v18, %v26
  %vm28 = vcmask 253952
  %29 = vst.msk [vmem:[%s1] sm:$0x1] %vm28, %v27
  %v30 = vld [vmem:[%s2] sm:$0x1]
  %v31 = vmul.f32 %v17, %v17
  %v32 = vsel %vm19, %v31, 0.0
  %v33 = vrot.slane %v32, 4
  %v34 = vadd.f32 %v32, %v33
  %v35 = vrot.slane %v34, 2
  %v36 = vadd.f32 %v34, %v35
  %v37 = vrot.slane %v36, 1
  %v38 = vadd.f32 %v36, %v37
  %v39 = vadd.f32 %v30, %v38
  %40 = vst.msk [vmem:[%s2] sm:$0x1] %vm28, %v39
  // Predicated region
  $region10: #{dgcn_layers_forward.10} parent=0 // pred_check
    _
  $region11: #{dgcn_layers_forward.10} parent=0 // pred_check_branch
    %42 = sbr.rel (0) target = $region13
  $region12: #{dgcn_layers_forward.10} parent=0 // pred_region
    _
  $region13: #{dgcn_layers_forward.10} parent=0 // pred_fallthru
    _
  // Predicated region
  $region14: #{dgcn_layers_forward.10} parent=0 // pred_check
    _
  $region15: #{dgcn_layers_forward.10} parent=0 // pred_check_branch
    %44 = sbr.rel (0) target = $region17
  $region16: #{dgcn_layers_forward.10} parent=0 // pred_region
    _
  $region17: #{dgcn_layers_forward.10} parent=0 // pred_fallthru
    _
  // Predicated region
  $region18: #{dgcn_layers_forward.10} parent=0 // pred_check
    _
  $region19: #{dgcn_layers_forward.10} parent=0 // pred_check_branch
    %46 = sbr.rel (0) target = $region21
  $region20: #{dgcn_layers_forward.10} parent=0 // pred_region
    _
  $region21: #{dgcn_layers_forward.10} parent=0 // pred_fallthru
    _
  // Predicated region
  $region22: #{dgcn_layers_forward.10} parent=0 // pred_check
    _
  $region23: #{dgcn_layers_forward.10} parent=0 // pred_check_branch
    %48 = sbr.rel (0) target = $region25
  $region24: #{dgcn_layers_forward.10} parent=0 // pred_region
    _
  $region25: #{dgcn_layers_forward.10} parent=0 // pred_fallthru
    _

// kernel: dgcn_layers_forward.8
$region0: #{dgcn_layers_forward.8}
  #allocation0 [shape = 'u32[]', space=smem, size = 0x4, offset = 0x4, fixed_abs, tag = 'smem constant byte address 0x4 - core index']
  #allocation1 [shape = 'u32[144,128]{1,0:T(1,128)}', space=vmem, size = 0x12000, scoped, tag = 'internal scratch']
  %s0 = inlined_call_operand.vmem [shape: f32[8,32], index: 0, kind: input, shape index: {}]
  %s1 = inlined_call_operand.vmem [shape: f32[32,64], index: 1, kind: input, shape index: {}]
  %s2 = inlined_call_operand.vmem [shape: f32[1,64], index: 2, kind: input, shape index: {}]
  %s3 = inlined_call_operand.vmem [shape: f32[8,32], index: 3, kind: output, shape index: {0}]
  %s4 = inlined_call_operand.vmem [shape: bf16[8,32], index: 4, kind: output, shape index: {1}]
  %s5 = inlined_call_operand.vmem [shape: f32[32,8], index: 5, kind: output, shape index: {2}]
  %6 = xla_tuple %s3, %s4, %s5
  %s7 = sld [smem:[#allocation0]]
  $region38: #{dgcn_layers_forward.8} parent=0
    _
  %s9 = ssub.s32 1, %s7
  %s10 = scalar_select 0, %s9, %s7
  // Predicated region
  $region2: #{dgcn_layers_forward.8} parent=0 // pred_check
    _
  $region3: #{dgcn_layers_forward.8} parent=0 // pred_check_branch
    %12 = sbr.rel (0) target = $region5
  $region4: #{dgcn_layers_forward.8} parent=0 // pred_region
    _
  $region5: #{dgcn_layers_forward.8} parent=0 // pred_fallthru
    _
  // Predicated region
  $region6: #{dgcn_layers_forward.8} parent=0 // pred_check
    _
  $region7: #{dgcn_layers_forward.8} parent=0 // pred_check_branch
    %14 = sbr.rel (0) target = $region9
  $region8: #{dgcn_layers_forward.8} parent=0 // pred_region
    _
  $region9: #{dgcn_layers_forward.8} parent=0 // pred_fallthru
    _
  // Predicated region
  $region10: #{dgcn_layers_forward.8} parent=0 // pred_check
    _
  $region11: #{dgcn_layers_forward.8} parent=0 // pred_check_branch
    %16 = sbr.rel (0) target = $region13
  $region12: #{dgcn_layers_forward.8} parent=0 // pred_region
    _
  $region13: #{dgcn_layers_forward.8} parent=0 // pred_fallthru
    _
  %v18 = vld [vmem:[%s0] sm:$0xff]
  %v19 = vpack.c.bf16 %v18, %v18
  %v20 = vld [vmem:[%s1] sm:$0xff]
  %v21 = vld [vmem:[%s1 + $0x8] sm:$0xff]
  %v22 = vld [vmem:[%s1 + $0x10] sm:$0xff]
  %v23 = vld [vmem:[%s1 + $0x18] sm:$0xff]
  %v24 = vpack.c.bf16 %v21, %v20
  %v25 = vpack.c.bf16 %v23, %v22
  %v26 = vld [vmem:[%s2] sm:$0x1]
  %v28 = vlaneseq
  %v29 = vshrl.u32 %v28, 7
  %v30 = vsub.s32 0, %v29
  %v31 = vrot.slane %v26, %v30
  %vm33 = vcmask 261120
  %v35 = vsel %vm33, %v19, 0
  %37 = vmatprep.subr.bf16.mxu0 0
  %38 = vmatpush1.bf16.msra.mxu0 %v24
  %39 = vmatprep.subr.bf16.mxu0 0
  %40 = vmatpush1.bf16.msra.mxu0 %v25
  %41 = vmatprep.subr.bf16.mxu0 0
  %42 = vmatpush1.bf16.msra.mxu0 0
  %43 = vmatprep.subr.bf16.mxu0 0
  %44 = vmatpush1.bf16.msra.mxu0 0
  %45 = vmatprep.subr.bf16.mxu0 0
  %46 = vmatpush1.bf16.msra.mxu0 0
  %47 = vmatprep.subr.bf16.mxu0 0
  %48 = vmatpush1.bf16.msra.mxu0 0
  %49 = vmatprep.subr.bf16.mxu0 0
  %50 = vmatpush1.bf16.msra.mxu0 0
  %51 = vmatprep.subr.bf16.mxu0 0
  %52 = vmatpush1.bf16.msra.mxu0 0
  %53 = vmatprep.subr.bf16.mxu0 0
  %54 = vmatpush1.bf16.msra.mxu0 0
  %55 = vmatprep.subr.bf16.mxu0 0
  %56 = vmatpush1.bf16.msra.mxu0 0
  %57 = vmatprep.subr.bf16.mxu0 0
  %58 = vmatpush1.bf16.msra.mxu0 0
  %59 = vmatprep.subr.bf16.mxu0 0
  %60 = vmatpush1.bf16.msra.mxu0 0
  %61 = vmatprep.subr.bf16.mxu0 0
  %62 = vmatpush1.bf16.msra.mxu0 0
  %63 = vmatprep.subr.bf16.mxu0 0
  %64 = vmatpush1.bf16.msra.mxu0 0
  %65 = vmatprep.subr.bf16.mxu0 0
  %66 = vmatpush1.bf16.msra.mxu0 0
  %67 = vmatprep.subr.bf16.mxu0 0
  %68 = vmatpush1.bf16.msra.mxu0 0
  %69 = vmatprep.mubr.bf16.mxu0 0
  %70 = vmatmul.mubr.bf16.gmra.mrb[0].mxu0 %v35
  %v71 = vpop.f32.mrb[0].mxu0
  %v72 = vadd.f32 %v31, %v71
  %v73 = vpop.f32.mrb[0].mxu0
  %v74 = vpop.f32.mrb[0].mxu0
  %v75 = vpop.f32.mrb[0].mxu0
  %76 = vdwg.mxu0
  %78 = vrot.lane.b32.xlu0 %v72, 96
  %v79 = vpop.permute.xlu0 %78
  %81 = vst.msk [vmem:[%s3] sm:$0xff] %vm33, %v79
  %v82 = vpack.c.bf16 %v72, %v72
  %vm83 = vcmask 257024
  %84 = vst.msk [vmem:[%s4] sm:$0xf] %vm83, %v82
  %85 = vxpose.xlu0.b32.start [1/16] %v72, 128
  %86 = vxpose.xlu0.b32.cont [2/16] 0.0, 128
  %87 = vxpose.xlu0.b32.cont [3/16] 0.0, 128
  %88 = vxpose.xlu0.b32.cont [4/16] 0.0, 128
  %89 = vxpose.xlu0.b32.cont [5/16] 0.0, 128
  %90 = vxpose.xlu0.b32.cont [6/16] 0.0, 128
  %91 = vxpose.xlu0.b32.cont [7/16] 0.0, 128
  %92 = vxpose.xlu0.b32.cont [8/16] 0.0, 128
  %93 = vxpose.xlu0.b32.cont [9/16] 0.0, 128
  %94 = vxpose.xlu0.b32.cont [10/16] 0.0, 128
  %95 = vxpose.xlu0.b32.cont [11/16] 0.0, 128
  %96 = vxpose.xlu0.b32.cont [12/16] 0.0, 128
  %97 = vxpose.xlu0.b32.cont [13/16] 0.0, 128
  %98 = vxpose.xlu0.b32.cont [14/16] 0.0, 128
  %99 = vxpose.xlu0.b32.cont [15/16] 0.0, 128
  %100 = vxpose.xlu0.b32.end [16/16] 0.0, 128
  %v101 = vpop.trf.xlu0
  %v102 = vpop.trf.xlu0
  %v103 = vpop.trf.xlu0
  %v104 = vpop.trf.xlu0
  %v105 = vpop.trf.xlu0
  %v106 = vpop.trf.xlu0
  %v107 = vpop.trf.xlu0
  %v108 = vpop.trf.xlu0
  %v109 = vpop.trf.xlu0
  %v110 = vpop.trf.xlu0
  %v111 = vpop.trf.xlu0
  %v112 = vpop.trf.xlu0
  %v113 = vpop.trf.xlu0
  %v114 = vpop.trf.xlu0
  %v115 = vpop.trf.xlu0
  %v116 = vpop.trf.xlu0
  %vm117 = vcmask 64512
  %118 = vst.msk [vmem:[%s5] sm:$0xff] %vm117, %v101
  %119 = vst.msk [vmem:[%s5 + $0x8] sm:$0xff] %vm117, %v102
  %120 = vst.msk [vmem:[%s5 + $0x10] sm:$0xff] %vm117, %v103
  %121 = vst.msk [vmem:[%s5 + $0x18] sm:$0xff] %vm117, %v104
  // Predicated region
  $region14: #{dgcn_layers_forward.8} parent=0 // pred_check
    _
  $region15: #{dgcn_layers_forward.8} parent=0 // pred_check_branch
    %123 = sbr.rel (0) target = $region17
  $region16: #{dgcn_layers_forward.8} parent=0 // pred_region
    _
  $region17: #{dgcn_layers_forward.8} parent=0 // pred_fallthru
    _
  // Predicated region
  $region18: #{dgcn_layers_forward.8} parent=0 // pred_check
    _
  $region19: #{dgcn_layers_forward.8} parent=0 // pred_check_branch
    %125 = sbr.rel (0) target = $region21
  $region20: #{dgcn_layers_forward.8} parent=0 // pred_region
    _
  $region21: #{dgcn_layers_forward.8} parent=0 // pred_fallthru
    _
  // Predicated region
  $region22: #{dgcn_layers_forward.8} parent=0 // pred_check
    _
  $region23: #{dgcn_layers_forward.8} parent=0 // pred_check_branch
    %127 = sbr.rel (0) target = $region25
  $region24: #{dgcn_layers_forward.8} parent=0 // pred_region
    _
  $region25: #{dgcn_layers_forward.8} parent=0 // pred_fallthru
    _
  // Predicated region
  $region26: #{dgcn_layers_forward.8} parent=0 // pred_check
    _
  $region27: #{dgcn_layers_forward.8} parent=0 // pred_check_branch
    %129 = sbr.rel (0) target = $region29
  $region28: #{dgcn_layers_forward.8} parent=0 // pred_region
    _
  $region29: #{dgcn_layers_forward.8} parent=0 // pred_fallthru
    _
  // Predicated region
  $region30: #{dgcn_layers_forward.8} parent=0 // pred_check
    _
  $region31: #{dgcn_layers_forward.8} parent=0 // pred_check_branch
    %131 = sbr.rel (0) target = $region33
  $region32: #{dgcn_layers_forward.8} parent=0 // pred_region
    _
  $region33: #{dgcn_layers_forward.8} parent=0 // pred_fallthru
    _
  // Predicated region
  $region34: #{dgcn_layers_forward.8} parent=0 // pred_check
    _
  $region35: #{dgcn_layers_forward.8} parent=0 // pred_check_branch
    %133 = sbr.rel (0) target = $region37
  $region36: #{dgcn_layers_forward.8} parent=0 // pred_region
    _
  $region37: #{dgcn_layers_forward.8} parent=0 // pred_fallthru
    _

// kernel: dgcn_layers_forward.11
$region0: #{dgcn_layers_forward.11}
  #allocation0 [shape = 'u32[]', space=smem, size = 0x4, offset = 0x4, fixed_abs, tag = 'smem constant byte address 0x4 - core index']
  #allocation1 [shape = 'u32[144,128]{1,0:T(1,128)}', space=vmem, size = 0x12000, scoped, tag = 'internal scratch']
  %s0 = inlined_call_operand.vmem [shape: f32[8,32], index: 0, kind: input, shape index: {}]
  %s1 = inlined_call_operand.vmem [shape: f32[1,32], index: 1, kind: input, shape index: {}]
  %s2 = inlined_call_operand.vmem [shape: f32[1,32], index: 2, kind: input, shape index: {}]
  %s3 = inlined_call_operand.vmem [shape: f32[1,32], index: 3, kind: input, shape index: {}]
  %s4 = inlined_call_operand.vmem [shape: f32[1,32], index: 4, kind: input, shape index: {}]
  %s5 = inlined_call_operand.vmem [shape: f32[1,32], index: 5, kind: input, shape index: {}]
  %s6 = inlined_call_operand.vmem [shape: f32[8,32], index: 6, kind: output, shape index: {}]
  %s7 = sld [smem:[#allocation0]]
  $region34: #{dgcn_layers_forward.11} parent=0
    _
  %s9 = ssub.s32 1, %s7
  %s10 = scalar_select 0, %s9, %s7
  // Predicated region
  $region2: #{dgcn_layers_forward.11} parent=0 // pred_check
    _
  $region3: #{dgcn_layers_forward.11} parent=0 // pred_check_branch
    %12 = sbr.rel (0) target = $region5
  $region4: #{dgcn_layers_forward.11} parent=0 // pred_region
    _
  $region5: #{dgcn_layers_forward.11} parent=0 // pred_fallthru
    _
  // Predicated region
  $region6: #{dgcn_layers_forward.11} parent=0 // pred_check
    _
  $region7: #{dgcn_layers_forward.11} parent=0 // pred_check_branch
    %14 = sbr.rel (0) target = $region9
  $region8: #{dgcn_layers_forward.11} parent=0 // pred_region
    _
  $region9: #{dgcn_layers_forward.11} parent=0 // pred_fallthru
    _
  // Predicated region
  $region10: #{dgcn_layers_forward.11} parent=0 // pred_check
    _
  $region11: #{dgcn_layers_forward.11} parent=0 // pred_check_branch
    %16 = sbr.rel (0) target = $region13
  $region12: #{dgcn_layers_forward.11} parent=0 // pred_region
    _
  $region13: #{dgcn_layers_forward.11} parent=0 // pred_fallthru
    _
  // Predicated region
  $region14: #{dgcn_layers_forward.11} parent=0 // pred_check
    _
  $region15: #{dgcn_layers_forward.11} parent=0 // pred_check_branch
    %18 = sbr.rel (0) target = $region17
  $region16: #{dgcn_layers_forward.11} parent=0 // pred_region
    _
  $region17: #{dgcn_layers_forward.11} parent=0 // pred_fallthru
    _
  // Predicated region
  $region18: #{dgcn_layers_forward.11} parent=0 // pred_check
    _
  $region19: #{dgcn_layers_forward.11} parent=0 // pred_check_branch
    %20 = sbr.rel (0) target = $region21
  $region20: #{dgcn_layers_forward.11} parent=0 // pred_region
    _
  $region21: #{dgcn_layers_forward.11} parent=0 // pred_fallthru
    _
  // Predicated region
  $region22: #{dgcn_layers_forward.11} parent=0 // pred_check
    _
  $region23: #{dgcn_layers_forward.11} parent=0 // pred_check_branch
    %22 = sbr.rel (0) target = $region25
  $region24: #{dgcn_layers_forward.11} parent=0 // pred_region
    _
  $region25: #{dgcn_layers_forward.11} parent=0 // pred_fallthru
    _
  %v23 = vld [vmem:[%s1] sm:$0x1]
  %v24 = vmul.f32 %v23, 0.125
  %v25 = vld [vmem:[%s2] sm:$0x1]
  %v26 = vmul.f32 %v25, 0.125
  %v27 = vld [vmem:[%s5] sm:$0x1]
  %v28 = vmul.f32 %v24, %v24
  %v29 = vmul.f32 %v28, %v27
  %v30 = vsub.f32 2.0, %v27
  %v31 = vmul.f32 %v29, %v30
  %v32 = vsub.f32 %v26, %v31
  %v33 = vld [vmem:[%s3] sm:$0x1]
  %v34 = vadd.f32 %v32, 1e-05
  %v35 = vrsqrt.pop %v34
  %v36 = vmul.f32 %v33, %v35
  %v37 = vld [vmem:[%s0] sm:$0xff]
  %v38 = vmul.f32 %v24, %v27
  %v40 = vlaneseq
  %v41 = vshrl.u32 %v40, 7
  %v42 = vsub.s32 0, %v41
  %v43 = vrot.slane %v38, %v42
  %v45 = vsub.f32 %v37, %v43
  %v47 = vlaneseq
  %v48 = vshrl.u32 %v47, 7
  %v49 = vsub.s32 0, %v48
  %v50 = vrot.slane %v36, %v49
  %v52 = vmul.f32 %v50, %v45
  %v53 = vld [vmem:[%s4] sm:$0x1]
  %v55 = vlaneseq
  %v56 = vshrl.u32 %v55, 7
  %v57 = vsub.s32 0, %v56
  %v58 = vrot.slane %v53, %v57
  %v60 = vadd.f32 %v52, %v58
  %v61 = vmax.f32 %v60, 0.0
  %vm62 = vcmask 261120
  %63 = vst.msk [vmem:[%s6] sm:$0xff] %vm62, %v61
  // Predicated region
  $region26: #{dgcn_layers_forward.11} parent=0 // pred_check
    _
  $region27: #{dgcn_layers_forward.11} parent=0 // pred_check_branch
    %65 = sbr.rel (0) target = $region29
  $region28: #{dgcn_layers_forward.11} parent=0 // pred_region
    _
  $region29: #{dgcn_layers_forward.11} parent=0 // pred_fallthru
    _
  // Predicated region
  $region30: #{dgcn_layers_forward.11} parent=0 // pred_check
    _
  $region31: #{dgcn_layers_forward.11} parent=0 // pred_check_branch
    %67 = sbr.rel (0) target = $region33
  $region32: #{dgcn_layers_forward.11} parent=0 // pred_region
    _
  $region33: #{dgcn_layers_forward.11} parent=0 // pred_fallthru
    _

// kernel: dgcn_layers_forward.9
$region0: #{dgcn_layers_forward.9}
  #allocation0 [shape = 'u32[]', space=smem, size = 0x4, offset = 0x4, fixed_abs, tag = 'smem constant byte address 0x4 - core index']
  #allocation1 [shape = 'u32[144,128]{1,0:T(1,128)}', space=vmem, size = 0x12000, scoped, tag = 'internal scratch']
  #allocation2 [shape = 'f32[8,2]{1,0:T(8,128)}', space=vmem, size = 0x1000, scoped, tag = 'scratch operand']
  #allocation3 [shape = 'f32[8,2]{1,0:T(8,128)}', space=vmem, size = 0x1000, scoped, tag = 'scratch operand']
  #allocation4 [shape = 'f32[8,32]{1,0:T(8,128)}', space=vmem, size = 0x1000, scoped, tag = 'scratch operand']
  %s0 = inlined_call_operand.vmem [shape: f32[8,32], index: 0, kind: input, shape index: {}]
  %s1 = inlined_call_operand.vmem [shape: bf16[8,32], index: 1, kind: input, shape index: {}]
  %s2 = inlined_call_operand.vmem [shape: f32[32,8], index: 2, kind: input, shape index: {}]
  %s3 = inlined_call_operand.vmem [shape: s8[8,8], index: 3, kind: input, shape index: {}]
  %s4 = inlined_call_operand.vmem [shape: f32[2,16], index: 4, kind: input, shape index: {}]
  %s5 = inlined_call_operand.vmem [shape: f32[1,32], index: 5, kind: input, shape index: {}]
  %s6 = inlined_call_operand.vmem [shape: f32[8,32], index: 6, kind: output, shape index: {}]
  %s7 = sld [smem:[#allocation0]]
  $region46: #{dgcn_layers_forward.9} parent=0
    _
  %s9 = ssub.s32 1, %s7
  %s10 = scalar_select 0, %s9, %s7
  $region1: #{dgcn_layers_forward.9} parent=0
    #allocation5 [shape = 'u8[1024]{0}', space=smem, size = 0x400, scoped, tag = 'input window, operand 4, single buffered']
    #allocation6 [shape = 's32[1]{0}', space=sflag, size = 0x4, scoped, tag = 'scoped memory for dgcn_layers_forward.9']
    %11 = vsyncpa [#allocation6], 0
    // Predicated region
    $region2: #{dgcn_layers_forward.9} parent=1 // pred_check
      _
    $region3: #{dgcn_layers_forward.9} parent=1 // pred_check_branch
      %13 = sbr.rel (0) target = $region5
    $region4: #{dgcn_layers_forward.9} parent=1 // pred_region
      _
    $region5: #{dgcn_layers_forward.9} parent=1 // pred_fallthru
      _
    // Predicated region
    $region6: #{dgcn_layers_forward.9} parent=1 // pred_check
      _
    $region7: #{dgcn_layers_forward.9} parent=1 // pred_check_branch
      %15 = sbr.rel (0) target = $region9
    $region8: #{dgcn_layers_forward.9} parent=1 // pred_region
      _
    $region9: #{dgcn_layers_forward.9} parent=1 // pred_fallthru
      _
    // Predicated region
    $region10: #{dgcn_layers_forward.9} parent=1 // pred_check
      _
    $region11: #{dgcn_layers_forward.9} parent=1 // pred_check_branch
      %17 = sbr.rel (0) target = $region13
    $region12: #{dgcn_layers_forward.9} parent=1 // pred_region
      _
    $region13: #{dgcn_layers_forward.9} parent=1 // pred_fallthru
      _
    // Predicated region
    $region14: #{dgcn_layers_forward.9} parent=1 // pred_check
      _
    $region15: #{dgcn_layers_forward.9} parent=1 // pred_check_branch
      %19 = sbr.rel (0) target = $region17
    $region16: #{dgcn_layers_forward.9} parent=1 // pred_region
      _
    $region17: #{dgcn_layers_forward.9} parent=1 // pred_fallthru
      _
    // Predicated region
    $region18: #{dgcn_layers_forward.9} parent=1 // pred_check
      _
    $region19: #{dgcn_layers_forward.9} parent=1 // pred_check_branch
      %21 = sbr.rel (0) target = $region21
    $region20: #{dgcn_layers_forward.9} parent=1 // pred_region
      %s23 = ssub.s32 32, 32
      %24 = vsyncadd [#allocation6], %s23
      %s26 = sshll.u32 %s4, 4
      %s27 = int_to_ptr.vmem [resolvable:$true] %s26
      %29 = dma.vmem_to_smem %s27, 32, [#allocation5], [#allocation6]
    $region21: #{dgcn_layers_forward.9} parent=1 // pred_fallthru
      _
    // Predicated region
    $region22: #{dgcn_layers_forward.9} parent=1 // pred_check
      _
    $region23: #{dgcn_layers_forward.9} parent=1 // pred_check_branch
      %31 = sbr.rel (0) target = $region25
    $region24: #{dgcn_layers_forward.9} parent=1 // pred_region
      _
    $region25: #{dgcn_layers_forward.9} parent=1 // pred_fallthru
      _
    // Predicated region
    $region26: #{dgcn_layers_forward.9} parent=1 // pred_check
      _
    $region27: #{dgcn_layers_forward.9} parent=1 // pred_check_branch
      %33 = sbr.rel (0) target = $region29
    $region28: #{dgcn_layers_forward.9} parent=1 // pred_region
      %34 = dma.done [#allocation6], 32
    $region29: #{dgcn_layers_forward.9} parent=1 // pred_fallthru
      _
    %35 = sfence
    %p39 = scmp.eq.s32.totalorder 0, 0
    // Predicated region
    $region30: #{dgcn_layers_forward.9} parent=1 // pred_check
      %p40 = pneg %p39
    $region31: #{dgcn_layers_forward.9} parent=1 // pred_check_branch
      %42 = sbr.rel (%p40) target = $region33
    $region32: #{dgcn_layers_forward.9} parent=1 // pred_region
      %vm43 = vcmask 15360
      %44 = vst.msk [vmem:[#allocation2] sm:$0xff] %vm43, -1e+30
      %45 = vst.msk [vmem:[#allocation3] sm:$0xff] %vm43, 0.0
      %vm46 = vcmask 261120
      %47 = vst.msk [vmem:[#allocation4] sm:$0xff] %vm46, 0.0
    $region33: #{dgcn_layers_forward.9} parent=1 // pred_fallthru
      _
    %v48 = vld [vmem:[%s3] sm:$0x3]
    %vm49 = vnez %v48
    %v50 = vld [vmem:[%s0] sm:$0xff]
    %v51 = vld [vmem:[%s2] sm:$0xff]
    %v52 = vld [vmem:[%s2 + $0x8] sm:$0xff]
    %v53 = vld [vmem:[%s2 + $0x10] sm:$0xff]
    %v54 = vld [vmem:[%s2 + $0x18] sm:$0xff]
    %s55 = sld [smem:[#allocation5]]
    %v56 = vstv %s55
    %v57 = vmul.f32 %v56, %v50
    %v58 = vmul.f32 %v56, %v51
    %s59 = sld [smem:[#allocation5 + $0x1]]
    %v60 = vstv %s59
    %v61 = vmul.f32 %v60, %v50
    %v62 = vmul.f32 %v60, %v51
    %64 = vrot.lane.b32.xlu0 %v61, 127
    %v65 = vpop.permute.xlu0 %64
    %v67 = vadd.f32 %v57, %v65
    %v69 = vrot.slane %v62, 1
    %v71 = vadd.f32 %v58, %v69
    %s72 = sld [smem:[#allocation5 + $0x2]]
    %v73 = vstv %s72
    %v74 = vmul.f32 %v73, %v50
    %v75 = vmul.f32 %v73, %v51
    %77 = vrot.lane.b32.xlu0 %v74, 126
    %v78 = vpop.permute.xlu0 %77
    %v80 = vadd.f32 %v67, %v78
    %v82 = vrot.slane %v75, 2
    %v84 = vadd.f32 %v71, %v82
    %s85 = sld [smem:[#allocation5 + $0x3]]
    %v86 = vstv %s85
    %v87 = vmul.f32 %v86, %v50
    %v88 = vmul.f32 %v86, %v51
    %90 = vrot.lane.b32.xlu0 %v87, 125
    %v91 = vpop.permute.xlu0 %90
    %v93 = vadd.f32 %v80, %v91
    %v95 = vrot.slane %v88, 3
    %v97 = vadd.f32 %v84, %v95
    %s98 = sld [smem:[#allocation5 + $0x4]]
    %v99 = vstv %s98
    %v100 = vmul.f32 %v99, %v50
    %v101 = vmul.f32 %v99, %v51
    %103 = vrot.lane.b32.xlu0 %v100, 124
    %v104 = vpop.permute.xlu0 %103
    %v106 = vadd.f32 %v93, %v104
    %v108 = vrot.slane %v101, 4
    %v110 = vadd.f32 %v97, %v108
    %s111 = sld [smem:[#allocation5 + $0x5]]
    %v112 = vstv %s111
    %v113 = vmul.f32 %v112, %v50
    %v114 = vmul.f32 %v112, %v51
    %116 = vrot.lane.b32.xlu0 %v113, 123
    %v117 = vpop.permute.xlu0 %116
    %v119 = vadd.f32 %v106, %v117
    %v121 = vrot.slane %v114, 5
    %v123 = vadd.f32 %v110, %v121
    %s124 = sld [smem:[#allocation5 + $0x6]]
    %v125 = vstv %s124
    %v126 = vmul.f32 %v125, %v50
    %v127 = vmul.f32 %v125, %v51
    %129 = vrot.lane.b32.xlu0 %v126, 122
    %v130 = vpop.permute.xlu0 %129
    %v132 = vadd.f32 %v119, %v130
    %v134 = vrot.slane %v127, 6
    %v136 = vadd.f32 %v123, %v134
    %s137 = sld [smem:[#allocation5 + $0x7]]
    %v138 = vstv %s137
    %v139 = vmul.f32 %v138, %v50
    %v140 = vmul.f32 %v138, %v51
    %142 = vrot.lane.b32.xlu0 %v139, 121
    %v143 = vpop.permute.xlu0 %142
    %v145 = vadd.f32 %v132, %v143
    %v147 = vrot.slane %v140, 7
    %v149 = vadd.f32 %v136, %v147
    %s150 = sld [smem:[#allocation5 + $0x8]]
    %v151 = vstv %s150
    %v152 = vmul.f32 %v151, %v50
    %v153 = vmul.f32 %v151, %v52
    %155 = vrot.lane.b32.xlu0 %v152, 120
    %v156 = vpop.permute.xlu0 %155
    %v158 = vadd.f32 %v145, %v156
    %v159 = vadd.f32 %v149, %v153
    %s160 = sld [smem:[#allocation5 + $0x9]]
    %v161 = vstv %s160
    %v162 = vmul.f32 %v161, %v50
    %v163 = vmul.f32 %v161, %v52
    %165 = vrot.lane.b32.xlu0 %v162, 119
    %v166 = vpop.permute.xlu0 %165
    %v168 = vadd.f32 %v158, %v166
    %v170 = vrot.slane %v163, 1
    %v172 = vadd.f32 %v159, %v170
    %s173 = sld [smem:[#allocation5 + $0xa]]
    %v174 = vstv %s173
    %v175 = vmul.f32 %v174, %v50
    %v176 = vmul.f32 %v174, %v52
    %178 = vrot.lane.b32.xlu0 %v175, 118
    %v179 = vpop.permute.xlu0 %178
    %v181 = vadd.f32 %v168, %v179
    %v183 = vrot.slane %v176, 2
    %v185 = vadd.f32 %v172, %v183
    %s186 = sld [smem:[#allocation5 + $0xb]]
    %v187 = vstv %s186
    %v188 = vmul.f32 %v187, %v50
    %v189 = vmul.f32 %v187, %v52
    %191 = vrot.lane.b32.xlu0 %v188, 117
    %v192 = vpop.permute.xlu0 %191
    %v194 = vadd.f32 %v181, %v192
    %v196 = vrot.slane %v189, 3
    %v198 = vadd.f32 %v185, %v196
    %s199 = sld [smem:[#allocation5 + $0xc]]
    %v200 = vstv %s199
    %v201 = vmul.f32 %v200, %v50
    %v202 = vmul.f32 %v200, %v52
    %204 = vrot.lane.b32.xlu0 %v201, 116
    %v205 = vpop.permute.xlu0 %204
    %v207 = vadd.f32 %v194, %v205
    %v209 = vrot.slane %v202, 4
    %v211 = vadd.f32 %v198, %v209
    %s212 = sld [smem:[#allocation5 + $0xd]]
    %v213 = vstv %s212
    %v214 = vmul.f32 %v213, %v50
    %v215 = vmul.f32 %v213, %v52
    %217 = vrot.lane.b32.xlu0 %v214, 115
    %v218 = vpop.permute.xlu0 %217
    %v220 = vadd.f32 %v207, %v218
    %v222 = vrot.slane %v215, 5
    %v224 = vadd.f32 %v211, %v222
    %s225 = sld [smem:[#allocation5 + $0xe]]
    %v226 = vstv %s225
    %v227 = vmul.f32 %v226, %v50
    %v228 = vmul.f32 %v226, %v52
    %230 = vrot.lane.b32.xlu0 %v227, 114
    %v231 = vpop.permute.xlu0 %230
    %v233 = vadd.f32 %v220, %v231
    %v235 = vrot.slane %v228, 6
    %v237 = vadd.f32 %v224, %v235
    %s238 = sld [smem:[#allocation5 + $0xf]]
    %v239 = vstv %s238
    %v240 = vmul.f32 %v239, %v50
    %v241 = vmul.f32 %v239, %v52
    %243 = vrot.lane.b32.xlu0 %v240, 113
    %v244 = vpop.permute.xlu0 %243
    %v246 = vadd.f32 %v233, %v244
    %v248 = vrot.slane %v241, 7
    %v250 = vadd.f32 %v237, %v248
    %252 = vset.pattern.permute.xlu0 0
    %253 = vperm.xlu0 %252, %v246
    %v254 = vpop.permute.xlu0 %253
    %v256 = vlaneseq
    %v257 = vshrl.u32 %v256, 7
    %v258 = vsub.s32 0, %v257
    %v259 = vrot.slane %v250, %v258
    %v260 = vadd.f32 %v254, %v259
    %v261 = vmul.f32 %v260, 0.6
    %s262 = smul.f32 %s55, 0.4
    %264 = vset.pattern.permute.xlu0 0
    %265 = vperm.xlu0 %264, %v50
    %v266 = vpop.permute.xlu0 %265
    %v268 = vlaneseq
    %v269 = vshrl.u32 %v268, 7
    %v270 = vsub.s32 0, %v269
    %v271 = vrot.slane %v51, %v270
    %v272 = vadd.f32 %v266, %v271
    %v273 = vand.u32 2147483647, %v272
    %v274 = vstv %s262
    %v275 = vmul.f32 %v274, %v273
    %v276 = vadd.f32 %v261, %v275
    %s277 = smul.f32 %s59, 0.4
    %278 = vset.pattern.permute.xlu0 1
    %279 = vperm.xlu0 %278, %v50
    %v280 = vpop.permute.xlu0 %279
    %v282 = vlaneseq
    %v283 = vshrl.u32 %v282, 7
    %v284 = vsub.s32 1, %v283
    %v285 = vrot.slane %v51, %v284
    %v286 = vadd.f32 %v280, %v285
    %v287 = vand.u32 2147483647, %v286
    %v288 = vstv %s277
    %v289 = vmul.f32 %v288, %v287
    %v290 = vadd.f32 %v276, %v289
    %s291 = smul.f32 %s72, 0.4
    %292 = vset.pattern.permute.xlu0 2
    %293 = vperm.xlu0 %292, %v50
    %v294 = vpop.permute.xlu0 %293
    %v296 = vlaneseq
    %v297 = vshrl.u32 %v296, 7
    %v298 = vsub.s32 2, %v297
    %v299 = vrot.slane %v51, %v298
    %v300 = vadd.f32 %v294, %v299
    %v301 = vand.u32 2147483647, %v300
    %v302 = vstv %s291
    %v303 = vmul.f32 %v302, %v301
    %v304 = vadd.f32 %v290, %v303
    %s305 = smul.f32 %s85, 0.4
    %306 = vset.pattern.permute.xlu0 3
    %307 = vperm.xlu0 %306, %v50
    %v308 = vpop.permute.xlu0 %307
    %v310 = vlaneseq
    %v311 = vshrl.u32 %v310, 7
    %v312 = vsub.s32 3, %v311
    %v313 = vrot.slane %v51, %v312
    %v314 = vadd.f32 %v308, %v313
    %v315 = vand.u32 2147483647, %v314
    %v316 = vstv %s305
    %v317 = vmul.f32 %v316, %v315
    %v318 = vadd.f32 %v304, %v317
    %s319 = smul.f32 %s98, 0.4
    %320 = vset.pattern.permute.xlu0 4
    %321 = vperm.xlu0 %320, %v50
    %v322 = vpop.permute.xlu0 %321
    %v324 = vlaneseq
    %v325 = vshrl.u32 %v324, 7
    %v326 = vsub.s32 4, %v325
    %v327 = vrot.slane %v51, %v326
    %v328 = vadd.f32 %v322, %v327
    %v329 = vand.u32 2147483647, %v328
    %v330 = vstv %s319
    %v331 = vmul.f32 %v330, %v329
    %v332 = vadd.f32 %v318, %v331
    %s333 = smul.f32 %s111, 0.4
    %334 = vset.pattern.permute.xlu0 5
    %335 = vperm.xlu0 %334, %v50
    %v336 = vpop.permute.xlu0 %335
    %v338 = vlaneseq
    %v339 = vshrl.u32 %v338, 7
    %v340 = vsub.s32 5, %v339
    %v341 = vrot.slane %v51, %v340
    %v342 = vadd.f32 %v336, %v341
    %v343 = vand.u32 2147483647, %v342
    %v344 = vstv %s333
    %v345 = vmul.f32 %v344, %v343
    %v346 = vadd.f32 %v332, %v345
    %s347 = smul.f32 %s124, 0.4
    %348 = vset.pattern.permute.xlu0 6
    %349 = vperm.xlu0 %348, %v50
    %v350 = vpop.permute.xlu0 %349
    %v352 = vlaneseq
    %v353 = vshrl.u32 %v352, 7
    %v354 = vsub.s32 6, %v353
    %v355 = vrot.slane %v51, %v354
    %v356 = vadd.f32 %v350, %v355
    %v357 = vand.u32 2147483647, %v356
    %v358 = vstv %s347
    %v359 = vmul.f32 %v358, %v357
    %v360 = vadd.f32 %v346, %v359
    %s361 = smul.f32 %s137, 0.4
    %362 = vset.pattern.permute.xlu0 7
    %363 = vperm.xlu0 %362, %v50
    %v364 = vpop.permute.xlu0 %363
    %v366 = vlaneseq
    %v367 = vshrl.u32 %v366, 7
    %v368 = vsub.s32 7, %v367
    %v369 = vrot.slane %v51, %v368
    %v370 = vadd.f32 %v364, %v369
    %v371 = vand.u32 2147483647, %v370
    %v372 = vstv %s361
    %v373 = vmul.f32 %v372, %v371
    %v374 = vadd.f32 %v360, %v373
    %s375 = smul.f32 %s150, 0.4
    %376 = vset.pattern.permute.xlu0 8
    %377 = vperm.xlu0 %376, %v50
    %v378 = vpop.permute.xlu0 %377
    %v380 = vlaneseq
    %v381 = vshrl.u32 %v380, 7
    %v382 = vsub.s32 0, %v381
    %v383 = vrot.slane %v52, %v382
    %v384 = vadd.f32 %v378, %v383
    %v385 = vand.u32 2147483647, %v384
    %v386 = vstv %s375
    %v387 = vmul.f32 %v386, %v385
    %v388 = vadd.f32 %v374, %v387
    %s389 = smul.f32 %s160, 0.4
    %390 = vset.pattern.permute.xlu0 9
    %391 = vperm.xlu0 %390, %v50
    %v392 = vpop.permute.xlu0 %391
    %v394 = vlaneseq
    %v395 = vshrl.u32 %v394, 7
    %v396 = vsub.s32 1, %v395
    %v397 = vrot.slane %v52, %v396
    %v398 = vadd.f32 %v392, %v397
    %v399 = vand.u32 2147483647, %v398
    %v400 = vstv %s389
    %v401 = vmul.f32 %v400, %v399
    %v402 = vadd.f32 %v388, %v401
    %s403 = smul.f32 %s173, 0.4
    %404 = vset.pattern.permute.xlu0 10
    %405 = vperm.xlu0 %404, %v50
    %v406 = vpop.permute.xlu0 %405
    %v408 = vlaneseq
    %v409 = vshrl.u32 %v408, 7
    %v410 = vsub.s32 2, %v409
    %v411 = vrot.slane %v52, %v410
    %v412 = vadd.f32 %v406, %v411
    %v413 = vand.u32 2147483647, %v412
    %v414 = vstv %s403
    %v415 = vmul.f32 %v414, %v413
    %v416 = vadd.f32 %v402, %v415
    %s417 = smul.f32 %s186, 0.4
    %418 = vset.pattern.permute.xlu0 11
    %419 = vperm.xlu0 %418, %v50
    %v420 = vpop.permute.xlu0 %419
    %v422 = vlaneseq
    %v423 = vshrl.u32 %v422, 7
    %v424 = vsub.s32 3, %v423
    %v425 = vrot.slane %v52, %v424
    %v426 = vadd.f32 %v420, %v425
    %v427 = vand.u32 2147483647, %v426
    %v428 = vstv %s417
    %v429 = vmul.f32 %v428, %v427
    %v430 = vadd.f32 %v416, %v429
    %s431 = smul.f32 %s199, 0.4
    %432 = vset.pattern.permute.xlu0 12
    %433 = vperm.xlu0 %432, %v50
    %v434 = vpop.permute.xlu0 %433
    %v436 = vlaneseq
    %v437 = vshrl.u32 %v436, 7
    %v438 = vsub.s32 4, %v437
    %v439 = vrot.slane %v52, %v438
    %v440 = vadd.f32 %v434, %v439
    %v441 = vand.u32 2147483647, %v440
    %v442 = vstv %s431
    %v443 = vmul.f32 %v442, %v441
    %v444 = vadd.f32 %v430, %v443
    %s445 = smul.f32 %s212, 0.4
    %446 = vset.pattern.permute.xlu0 13
    %447 = vperm.xlu0 %446, %v50
    %v448 = vpop.permute.xlu0 %447
    %v450 = vlaneseq
    %v451 = vshrl.u32 %v450, 7
    %v452 = vsub.s32 5, %v451
    %v453 = vrot.slane %v52, %v452
    %v454 = vadd.f32 %v448, %v453
    %v455 = vand.u32 2147483647, %v454
    %v456 = vstv %s445
    %v457 = vmul.f32 %v456, %v455
    %v458 = vadd.f32 %v444, %v457
    %s459 = smul.f32 %s225, 0.4
    %460 = vset.pattern.permute.xlu0 14
    %461 = vperm.xlu0 %460, %v50
    %v462 = vpop.permute.xlu0 %461
    %v464 = vlaneseq
    %v465 = vshrl.u32 %v464, 7
    %v466 = vsub.s32 6, %v465
    %v467 = vrot.slane %v52, %v466
    %v468 = vadd.f32 %v462, %v467
    %v469 = vand.u32 2147483647, %v468
    %v470 = vstv %s459
    %v471 = vmul.f32 %v470, %v469
    %v472 = vadd.f32 %v458, %v471
    %s473 = smul.f32 %s238, 0.4
    %474 = vset.pattern.permute.xlu0 15
    %475 = vperm.xlu0 %474, %v50
    %v476 = vpop.permute.xlu0 %475
    %v478 = vlaneseq
    %v479 = vshrl.u32 %v478, 7
    %v480 = vsub.s32 7, %v479
    %v481 = vrot.slane %v52, %v480
    %v482 = vadd.f32 %v476, %v481
    %v483 = vand.u32 2147483647, %v482
    %v484 = vstv %s473
    %v485 = vmul.f32 %v484, %v483
    %v486 = vadd.f32 %v472, %v485
    %v487 = vsel %vm49, 16843009, 0
    %v488 = vunpack.c.0.s8 %v487
    %vm489 = vcmp.ne.s32.totalorder %v488, 0
    %v490 = vsel %vm489, %v486, -1e+30
    %v491 = vld [vmem:[#allocation2] sm:$0xff]
    %vm492 = vcmask 64512
    %v493 = vsel %vm492, %v490, -inf
    %494 = vmax.xlane.f32.xlu0 %v493
    %v495 = vpop.xlane.xlu0 %494
    %v496 = vmax.f32 %v491, %v495
    %v497 = vsub.f32 %v491, %v496
    %v498 = vmul.f32 %v497, 1.442695
    %v499 = vpow.pop %v498
    %501 = vset.pattern.permute.xlu0 0
    %502 = vperm.xlu0 %501, %v496
    %v503 = vpop.permute.xlu0 %502
    %v505 = vsub.f32 %v490, %v503
    %v506 = vmul.f32 %v505, 1.442695
    %v507 = vpow.pop %v506
    %v508 = vld [vmem:[#allocation3] sm:$0xff]
    %v509 = vmul.f32 %v499, %v508
    %v510 = vsel %vm492, %v507, 0.0
    %511 = vadd.xlane.f32.xlu0 %v510
    %v512 = vpop.xlane.xlu0 %511
    %v513 = vadd.f32 %v509, %v512
    %vm514 = vcmask 7168
    %515 = vst.msk [vmem:[#allocation3] sm:$0xff] %vm514, %v513
    %v516 = vpack.c.bf16 %v507, %v507
    %v517 = vld [vmem:[%s1] sm:$0xf]
    %v519 = vsel %vm492, %v516, 0
    %vm521 = vcmask 1043456
    %v523 = vsel %vm521, %v517, 0
    %525 = vmatprep.subr.bf16.mxu0 0
    %526 = vmatpush1.bf16.msra.mxu0 %v523
    %527 = vmatprep.subr.bf16.mxu0 0
    %528 = vmatpush1.bf16.msra.mxu0 0
    %529 = vmatprep.subr.bf16.mxu0 0
    %530 = vmatpush1.bf16.msra.mxu0 0
    %531 = vmatprep.subr.bf16.mxu0 0
    %532 = vmatpush1.bf16.msra.mxu0 0
    %533 = vmatprep.subr.bf16.mxu0 0
    %534 = vmatpush1.bf16.msra.mxu0 0
    %535 = vmatprep.subr.bf16.mxu0 0
    %536 = vmatpush1.bf16.msra.mxu0 0
    %537 = vmatprep.subr.bf16.mxu0 0
    %538 = vmatpush1.bf16.msra.mxu0 0
    %539 = vmatprep.subr.bf16.mxu0 0
    %540 = vmatpush1.bf16.msra.mxu0 0
    %541 = vmatprep.subr.bf16.mxu0 0
    %542 = vmatpush1.bf16.msra.mxu0 0
    %543 = vmatprep.subr.bf16.mxu0 0
    %544 = vmatpush1.bf16.msra.mxu0 0
    %545 = vmatprep.subr.bf16.mxu0 0
    %546 = vmatpush1.bf16.msra.mxu0 0
    %547 = vmatprep.subr.bf16.mxu0 0
    %548 = vmatpush1.bf16.msra.mxu0 0
    %549 = vmatprep.subr.bf16.mxu0 0
    %550 = vmatpush1.bf16.msra.mxu0 0
    %551 = vmatprep.subr.bf16.mxu0 0
    %552 = vmatpush1.bf16.msra.mxu0 0
    %553 = vmatprep.subr.bf16.mxu0 0
    %554 = vmatpush1.bf16.msra.mxu0 0
    %555 = vmatprep.subr.bf16.mxu0 0
    %556 = vmatpush1.bf16.msra.mxu0 0
    %557 = vmatprep.mubr.bf16.mxu0 0
    %558 = vmatmul.mubr.bf16.gmra.mrb[0].mxu0 %v519
    %v559 = vpop.f32.mrb[0].mxu0
    %v560 = vadd.f32 0.0, %v559
    %v561 = vpop.f32.mrb[0].mxu0
    %v562 = vpop.f32.mrb[0].mxu0
    %v563 = vpop.f32.mrb[0].mxu0
    %564 = vdwg.mxu0
    %v565 = vld [vmem:[#allocation4] sm:$0xff]
    %567 = vset.pattern.permute.xlu0 0
    %568 = vperm.xlu0 %567, %v499
    %v569 = vpop.permute.xlu0 %568
    %v571 = vmul.f32 %v569, %v565
    %v572 = vadd.f32 %v571, %v560
    %vm573 = vcmask 130048
    %574 = vst.msk [vmem:[#allocation4] sm:$0xff] %vm573, %v572
    %575 = vst.msk [vmem:[#allocation2] sm:$0xff] %vm514, %v496
    %s576 = sld [smem:[#allocation5 + $0x80]]
    %v577 = vstv %s576
    %v578 = vmul.f32 %v577, %v50
    %v579 = vmul.f32 %v577, %v53
    %s580 = sld [smem:[#allocation5 + $0x81]]
    %v581 = vstv %s580
    %v582 = vmul.f32 %v581, %v50
    %v583 = vmul.f32 %v581, %v53
    %585 = vrot.lane.b32.xlu0 %v582, 127
    %v586 = vpop.permute.xlu0 %585
    %v588 = vadd.f32 %v578, %v586
    %v590 = vrot.slane %v583, 1
    %v592 = vadd.f32 %v579, %v590
    %s593 = sld [smem:[#allocation5 + $0x82]]
    %v594 = vstv %s593
    %v595 = vmul.f32 %v594, %v50
    %v596 = vmul.f32 %v594, %v53
    %598 = vrot.lane.b32.xlu0 %v595, 126
    %v599 = vpop.permute.xlu0 %598
    %v601 = vadd.f32 %v588, %v599
    %v603 = vrot.slane %v596, 2
    %v605 = vadd.f32 %v592, %v603
    %s606 = sld [smem:[#allocation5 + $0x83]]
    %v607 = vstv %s606
    %v608 = vmul.f32 %v607, %v50
    %v609 = vmul.f32 %v607, %v53
    %611 = vrot.lane.b32.xlu0 %v608, 125
    %v612 = vpop.permute.xlu0 %611
    %v614 = vadd.f32 %v601, %v612
    %v616 = vrot.slane %v609, 3
    %v618 = vadd.f32 %v605, %v616
    %s619 = sld [smem:[#allocation5 + $0x84]]
    %v620 = vstv %s619
    %v621 = vmul.f32 %v620, %v50
    %v622 = vmul.f32 %v620, %v53
    %624 = vrot.lane.b32.xlu0 %v621, 124
    %v625 = vpop.permute.xlu0 %624
    %v627 = vadd.f32 %v614, %v625
    %v629 = vrot.slane %v622, 4
    %v631 = vadd.f32 %v618, %v629
    %s632 = sld [smem:[#allocation5 + $0x85]]
    %v633 = vstv %s632
    %v634 = vmul.f32 %v633, %v50
    %v635 = vmul.f32 %v633, %v53
    %637 = vrot.lane.b32.xlu0 %v634, 123
    %v638 = vpop.permute.xlu0 %637
    %v640 = vadd.f32 %v627, %v638
    %v642 = vrot.slane %v635, 5
    %v644 = vadd.f32 %v631, %v642
    %s645 = sld [smem:[#allocation5 + $0x86]]
    %v646 = vstv %s645
    %v647 = vmul.f32 %v646, %v50
    %v648 = vmul.f32 %v646, %v53
    %650 = vrot.lane.b32.xlu0 %v647, 122
    %v651 = vpop.permute.xlu0 %650
    %v653 = vadd.f32 %v640, %v651
    %v655 = vrot.slane %v648, 6
    %v657 = vadd.f32 %v644, %v655
    %s658 = sld [smem:[#allocation5 + $0x87]]
    %v659 = vstv %s658
    %v660 = vmul.f32 %v659, %v50
    %v661 = vmul.f32 %v659, %v53
    %663 = vrot.lane.b32.xlu0 %v660, 121
    %v664 = vpop.permute.xlu0 %663
    %v666 = vadd.f32 %v653, %v664
    %v668 = vrot.slane %v661, 7
    %v670 = vadd.f32 %v657, %v668
    %s671 = sld [smem:[#allocation5 + $0x88]]
    %v672 = vstv %s671
    %v673 = vmul.f32 %v672, %v50
    %v674 = vmul.f32 %v672, %v54
    %676 = vrot.lane.b32.xlu0 %v673, 120
    %v677 = vpop.permute.xlu0 %676
    %v679 = vadd.f32 %v666, %v677
    %v680 = vadd.f32 %v670, %v674
    %s681 = sld [smem:[#allocation5 + $0x89]]
    %v682 = vstv %s681
    %v683 = vmul.f32 %v682, %v50
    %v684 = vmul.f32 %v682, %v54
    %686 = vrot.lane.b32.xlu0 %v683, 119
    %v687 = vpop.permute.xlu0 %686
    %v689 = vadd.f32 %v679, %v687
    %v691 = vrot.slane %v684, 1
    %v693 = vadd.f32 %v680, %v691
    %s694 = sld [smem:[#allocation5 + $0x8a]]
    %v695 = vstv %s694
    %v696 = vmul.f32 %v695, %v50
    %v697 = vmul.f32 %v695, %v54
    %699 = vrot.lane.b32.xlu0 %v696, 118
    %v700 = vpop.permute.xlu0 %699
    %v702 = vadd.f32 %v689, %v700
    %v704 = vrot.slane %v697, 2
    %v706 = vadd.f32 %v693, %v704
    %s707 = sld [smem:[#allocation5 + $0x8b]]
    %v708 = vstv %s707
    %v709 = vmul.f32 %v708, %v50
    %v710 = vmul.f32 %v708, %v54
    %712 = vrot.lane.b32.xlu0 %v709, 117
    %v713 = vpop.permute.xlu0 %712
    %v715 = vadd.f32 %v702, %v713
    %v717 = vrot.slane %v710, 3
    %v719 = vadd.f32 %v706, %v717
    %s720 = sld [smem:[#allocation5 + $0x8c]]
    %v721 = vstv %s720
    %v722 = vmul.f32 %v721, %v50
    %v723 = vmul.f32 %v721, %v54
    %725 = vrot.lane.b32.xlu0 %v722, 116
    %v726 = vpop.permute.xlu0 %725
    %v728 = vadd.f32 %v715, %v726
    %v730 = vrot.slane %v723, 4
    %v732 = vadd.f32 %v719, %v730
    %s733 = sld [smem:[#allocation5 + $0x8d]]
    %v734 = vstv %s733
    %v735 = vmul.f32 %v734, %v50
    %v736 = vmul.f32 %v734, %v54
    %738 = vrot.lane.b32.xlu0 %v735, 115
    %v739 = vpop.permute.xlu0 %738
    %v741 = vadd.f32 %v728, %v739
    %v743 = vrot.slane %v736, 5
    %v745 = vadd.f32 %v732, %v743
    %s746 = sld [smem:[#allocation5 + $0x8e]]
    %v747 = vstv %s746
    %v748 = vmul.f32 %v747, %v50
    %v749 = vmul.f32 %v747, %v54
    %751 = vrot.lane.b32.xlu0 %v748, 114
    %v752 = vpop.permute.xlu0 %751
    %v754 = vadd.f32 %v741, %v752
    %v756 = vrot.slane %v749, 6
    %v758 = vadd.f32 %v745, %v756
    %s759 = sld [smem:[#allocation5 + $0x8f]]
    %v760 = vstv %s759
    %v761 = vmul.f32 %v760, %v50
    %v762 = vmul.f32 %v760, %v54
    %764 = vrot.lane.b32.xlu0 %v761, 113
    %v765 = vpop.permute.xlu0 %764
    %v767 = vadd.f32 %v754, %v765
    %v769 = vrot.slane %v762, 7
    %v771 = vadd.f32 %v758, %v769
    %773 = vset.pattern.permute.xlu0 16
    %774 = vperm.xlu0 %773, %v767
    %v775 = vpop.permute.xlu0 %774
    %v777 = vlaneseq
    %v778 = vshrl.u32 %v777, 7
    %v779 = vsub.s32 0, %v778
    %v780 = vrot.slane %v771, %v779
    %v781 = vadd.f32 %v775, %v780
    %v782 = vmul.f32 %v781, 0.6
    %s783 = smul.f32 %s576, 0.4
    %784 = vset.pattern.permute.xlu0 16
    %785 = vperm.xlu0 %784, %v50
    %v786 = vpop.permute.xlu0 %785
    %v788 = vlaneseq
    %v789 = vshrl.u32 %v788, 7
    %v790 = vsub.s32 0, %v789
    %v791 = vrot.slane %v53, %v790
    %v792 = vadd.f32 %v786, %v791
    %v793 = vand.u32 2147483647, %v792
    %v794 = vstv %s783
    %v795 = vmul.f32 %v794, %v793
    %v796 = vadd.f32 %v782, %v795
    %s797 = smul.f32 %s580, 0.4
    %798 = vset.pattern.permute.xlu0 17
    %799 = vperm.xlu0 %798, %v50
    %v800 = vpop.permute.xlu0 %799
    %v802 = vlaneseq
    %v803 = vshrl.u32 %v802, 7
    %v804 = vsub.s32 1, %v803
    %v805 = vrot.slane %v53, %v804
    %v806 = vadd.f32 %v800, %v805
    %v807 = vand.u32 2147483647, %v806
    %v808 = vstv %s797
    %v809 = vmul.f32 %v808, %v807
    %v810 = vadd.f32 %v796, %v809
    %s811 = smul.f32 %s593, 0.4
    %812 = vset.pattern.permute.xlu0 18
    %813 = vperm.xlu0 %812, %v50
    %v814 = vpop.permute.xlu0 %813
    %v816 = vlaneseq
    %v817 = vshrl.u32 %v816, 7
    %v818 = vsub.s32 2, %v817
    %v819 = vrot.slane %v53, %v818
    %v820 = vadd.f32 %v814, %v819
    %v821 = vand.u32 2147483647, %v820
    %v822 = vstv %s811
    %v823 = vmul.f32 %v822, %v821
    %v824 = vadd.f32 %v810, %v823
    %s825 = smul.f32 %s606, 0.4
    %826 = vset.pattern.permute.xlu0 19
    %827 = vperm.xlu0 %826, %v50
    %v828 = vpop.permute.xlu0 %827
    %v830 = vlaneseq
    %v831 = vshrl.u32 %v830, 7
    %v832 = vsub.s32 3, %v831
    %v833 = vrot.slane %v53, %v832
    %v834 = vadd.f32 %v828, %v833
    %v835 = vand.u32 2147483647, %v834
    %v836 = vstv %s825
    %v837 = vmul.f32 %v836, %v835
    %v838 = vadd.f32 %v824, %v837
    %s839 = smul.f32 %s619, 0.4
    %840 = vset.pattern.permute.xlu0 20
    %841 = vperm.xlu0 %840, %v50
    %v842 = vpop.permute.xlu0 %841
    %v844 = vlaneseq
    %v845 = vshrl.u32 %v844, 7
    %v846 = vsub.s32 4, %v845
    %v847 = vrot.slane %v53, %v846
    %v848 = vadd.f32 %v842, %v847
    %v849 = vand.u32 2147483647, %v848
    %v850 = vstv %s839
    %v851 = vmul.f32 %v850, %v849
    %v852 = vadd.f32 %v838, %v851
    %s853 = smul.f32 %s632, 0.4
    %854 = vset.pattern.permute.xlu0 21
    %855 = vperm.xlu0 %854, %v50
    %v856 = vpop.permute.xlu0 %855
    %v858 = vlaneseq
    %v859 = vshrl.u32 %v858, 7
    %v860 = vsub.s32 5, %v859
    %v861 = vrot.slane %v53, %v860
    %v862 = vadd.f32 %v856, %v861
    %v863 = vand.u32 2147483647, %v862
    %v864 = vstv %s853
    %v865 = vmul.f32 %v864, %v863
    %v866 = vadd.f32 %v852, %v865
    %s867 = smul.f32 %s645, 0.4
    %868 = vset.pattern.permute.xlu0 22
    %869 = vperm.xlu0 %868, %v50
    %v870 = vpop.permute.xlu0 %869
    %v872 = vlaneseq
    %v873 = vshrl.u32 %v872, 7
    %v874 = vsub.s32 6, %v873
    %v875 = vrot.slane %v53, %v874
    %v876 = vadd.f32 %v870, %v875
    %v877 = vand.u32 2147483647, %v876
    %v878 = vstv %s867
    %v879 = vmul.f32 %v878, %v877
    %v880 = vadd.f32 %v866, %v879
    %s881 = smul.f32 %s658, 0.4
    %882 = vset.pattern.permute.xlu0 23
    %883 = vperm.xlu0 %882, %v50
    %v884 = vpop.permute.xlu0 %883
    %v886 = vlaneseq
    %v887 = vshrl.u32 %v886, 7
    %v888 = vsub.s32 7, %v887
    %v889 = vrot.slane %v53, %v888
    %v890 = vadd.f32 %v884, %v889
    %v891 = vand.u32 2147483647, %v890
    %v892 = vstv %s881
    %v893 = vmul.f32 %v892, %v891
    %v894 = vadd.f32 %v880, %v893
    %s895 = smul.f32 %s671, 0.4
    %896 = vset.pattern.permute.xlu0 24
    %897 = vperm.xlu0 %896, %v50
    %v898 = vpop.permute.xlu0 %897
    %v900 = vlaneseq
    %v901 = vshrl.u32 %v900, 7
    %v902 = vsub.s32 0, %v901
    %v903 = vrot.slane %v54, %v902
    %v904 = vadd.f32 %v898, %v903
    %v905 = vand.u32 2147483647, %v904
    %v906 = vstv %s895
    %v907 = vmul.f32 %v906, %v905
    %v908 = vadd.f32 %v894, %v907
    %s909 = smul.f32 %s681, 0.4
    %910 = vset.pattern.permute.xlu0 25
    %911 = vperm.xlu0 %910, %v50
    %v912 = vpop.permute.xlu0 %911
    %v914 = vlaneseq
    %v915 = vshrl.u32 %v914, 7
    %v916 = vsub.s32 1, %v915
    %v917 = vrot.slane %v54, %v916
    %v918 = vadd.f32 %v912, %v917
    %v919 = vand.u32 2147483647, %v918
    %v920 = vstv %s909
    %v921 = vmul.f32 %v920, %v919
    %v922 = vadd.f32 %v908, %v921
    %s923 = smul.f32 %s694, 0.4
    %924 = vset.pattern.permute.xlu0 26
    %925 = vperm.xlu0 %924, %v50
    %v926 = vpop.permute.xlu0 %925
    %v928 = vlaneseq
    %v929 = vshrl.u32 %v928, 7
    %v930 = vsub.s32 2, %v929
    %v931 = vrot.slane %v54, %v930
    %v932 = vadd.f32 %v926, %v931
    %v933 = vand.u32 2147483647, %v932
    %v934 = vstv %s923
    %v935 = vmul.f32 %v934, %v933
    %v936 = vadd.f32 %v922, %v935
    %s937 = smul.f32 %s707, 0.4
    %938 = vset.pattern.permute.xlu0 27
    %939 = vperm.xlu0 %938, %v50
    %v940 = vpop.permute.xlu0 %939
    %v942 = vlaneseq
    %v943 = vshrl.u32 %v942, 7
    %v944 = vsub.s32 3, %v943
    %v945 = vrot.slane %v54, %v944
    %v946 = vadd.f32 %v940, %v945
    %v947 = vand.u32 2147483647, %v946
    %v948 = vstv %s937
    %v949 = vmul.f32 %v948, %v947
    %v950 = vadd.f32 %v936, %v949
    %s951 = smul.f32 %s720, 0.4
    %952 = vset.pattern.permute.xlu0 28
    %953 = vperm.xlu0 %952, %v50
    %v954 = vpop.permute.xlu0 %953
    %v956 = vlaneseq
    %v957 = vshrl.u32 %v956, 7
    %v958 = vsub.s32 4, %v957
    %v959 = vrot.slane %v54, %v958
    %v960 = vadd.f32 %v954, %v959
    %v961 = vand.u32 2147483647, %v960
    %v962 = vstv %s951
    %v963 = vmul.f32 %v962, %v961
    %v964 = vadd.f32 %v950, %v963
    %s965 = smul.f32 %s733, 0.4
    %966 = vset.pattern.permute.xlu0 29
    %967 = vperm.xlu0 %966, %v50
    %v968 = vpop.permute.xlu0 %967
    %v970 = vlaneseq
    %v971 = vshrl.u32 %v970, 7
    %v972 = vsub.s32 5, %v971
    %v973 = vrot.slane %v54, %v972
    %v974 = vadd.f32 %v968, %v973
    %v975 = vand.u32 2147483647, %v974
    %v976 = vstv %s965
    %v977 = vmul.f32 %v976, %v975
    %v978 = vadd.f32 %v964, %v977
    %s979 = smul.f32 %s746, 0.4
    %980 = vset.pattern.permute.xlu0 30
    %981 = vperm.xlu0 %980, %v50
    %v982 = vpop.permute.xlu0 %981
    %v984 = vlaneseq
    %v985 = vshrl.u32 %v984, 7
    %v986 = vsub.s32 6, %v985
    %v987 = vrot.slane %v54, %v986
    %v988 = vadd.f32 %v982, %v987
    %v989 = vand.u32 2147483647, %v988
    %v990 = vstv %s979
    %v991 = vmul.f32 %v990, %v989
    %v992 = vadd.f32 %v978, %v991
    %s993 = smul.f32 %s759, 0.4
    %994 = vset.pattern.permute.xlu0 31
    %995 = vperm.xlu0 %994, %v50
    %v996 = vpop.permute.xlu0 %995
    %v998 = vlaneseq
    %v999 = vshrl.u32 %v998, 7
    %v1000 = vsub.s32 7, %v999
    %v1001 = vrot.slane %v54, %v1000
    %v1002 = vadd.f32 %v996, %v1001
    %v1003 = vand.u32 2147483647, %v1002
    %v1004 = vstv %s993
    %v1005 = vmul.f32 %v1004, %v1003
    %v1006 = vadd.f32 %v992, %v1005
    %v1007 = vsel %vm489, %v1006, -1e+30
    %v1008 = vld [vmem:[#allocation2] sm:$0xff]
    %v1009 = vsel %vm492, %v1007, -inf
    %1010 = vmax.xlane.f32.xlu0 %v1009
    %v1011 = vpop.xlane.xlu0 %1010
    %v1012 = vmax.f32 %v1008, %v1011
    %v1013 = vsub.f32 %v1008, %v1012
    %v1014 = vmul.f32 %v1013, 1.442695
    %v1015 = vpow.pop %v1014
    %1017 = vset.pattern.permute.xlu0 1
    %1018 = vperm.xlu0 %1017, %v1012
    %v1019 = vpop.permute.xlu0 %1018
    %v1021 = vsub.f32 %v1007, %v1019
    %v1022 = vmul.f32 %v1021, 1.442695
    %v1023 = vpow.pop %v1022
    %v1024 = vld [vmem:[#allocation3] sm:$0xff]
    %v1025 = vmul.f32 %v1015, %v1024
    %v1026 = vsel %vm492, %v1023, 0.0
    %1027 = vadd.xlane.f32.xlu0 %v1026
    %v1028 = vpop.xlane.xlu0 %1027
    %v1029 = vadd.f32 %v1025, %v1028
    %vm1030 = vcmask 15368
    %1031 = vst.msk [vmem:[#allocation3] sm:$0xff] %vm1030, %v1029
    %v1032 = vpack.c.bf16 %v1023, %v1023
    %v1033 = vld [vmem:[%s1] sm:$0xf]
    %v1035 = vunpack.c.l.b16 %v1033
    %v1036 = vpack.c.b16 %v1035, %v1035
    %1037 = vrot.lane.b32.xlu0 %v1036, 112
    %v1038 = vpop.permute.xlu0 %1037
    %v1040 = vsel %vm492, %v1032, 0
    %v1043 = vsel %vm521, %v1038, 0
    %1045 = vmatprep.subr.bf16.mxu0 0
    %1046 = vmatpush1.bf16.msra.mxu0 %v1043
    %1047 = vmatprep.subr.bf16.mxu0 0
    %1048 = vmatpush1.bf16.msra.mxu0 0
    %1049 = vmatprep.subr.bf16.mxu0 0
    %1050 = vmatpush1.bf16.msra.mxu0 0
    %1051 = vmatprep.subr.bf16.mxu0 0
    %1052 = vmatpush1.bf16.msra.mxu0 0
    %1053 = vmatprep.subr.bf16.mxu0 0
    %1054 = vmatpush1.bf16.msra.mxu0 0
    %1055 = vmatprep.subr.bf16.mxu0 0
    %1056 = vmatpush1.bf16.msra.mxu0 0
    %1057 = vmatprep.subr.bf16.mxu0 0
    %1058 = vmatpush1.bf16.msra.mxu0 0
    %1059 = vmatprep.subr.bf16.mxu0 0
    %1060 = vmatpush1.bf16.msra.mxu0 0
    %1061 = vmatprep.subr.bf16.mxu0 0
    %1062 = vmatpush1.bf16.msra.mxu0 0
    %1063 = vmatprep.subr.bf16.mxu0 0
    %1064 = vmatpush1.bf16.msra.mxu0 0
    %1065 = vmatprep.subr.bf16.mxu0 0
    %1066 = vmatpush1.bf16.msra.mxu0 0
    %1067 = vmatprep.subr.bf16.mxu0 0
    %1068 = vmatpush1.bf16.msra.mxu0 0
    %1069 = vmatprep.subr.bf16.mxu0 0
    %1070 = vmatpush1.bf16.msra.mxu0 0
    %1071 = vmatprep.subr.bf16.mxu0 0
    %1072 = vmatpush1.bf16.msra.mxu0 0
    %1073 = vmatprep.subr.bf16.mxu0 0
    %1074 = vmatpush1.bf16.msra.mxu0 0
    %1075 = vmatprep.subr.bf16.mxu0 0
    %1076 = vmatpush1.bf16.msra.mxu0 0
    %1077 = vmatprep.mubr.bf16.mxu0 0
    %1078 = vmatmul.mubr.bf16.gmra.mrb[0].mxu0 %v1040
    %v1079 = vpop.f32.mrb[0].mxu0
    %v1080 = vadd.f32 0.0, %v1079
    %v1081 = vpop.f32.mrb[0].mxu0
    %v1082 = vpop.f32.mrb[0].mxu0
    %v1083 = vpop.f32.mrb[0].mxu0
    %1084 = vdwg.mxu0
    %v1085 = vld [vmem:[#allocation4] sm:$0xff]
    %1087 = vset.pattern.permute.xlu0 1
    %1088 = vperm.xlu0 %1087, %v1015
    %v1089 = vpop.permute.xlu0 %1088
    %v1091 = vmul.f32 %v1089, %v1085
    %1093 = vrot.lane.b32.xlu0 %v1080, 16
    %v1094 = vpop.permute.xlu0 %1093
    %v1096 = vadd.f32 %v1091, %v1094
    %vm1097 = vcmask 261248
    %1098 = vst.msk [vmem:[#allocation4] sm:$0xff] %vm1097, %v1096
    %1099 = vst.msk [vmem:[#allocation2] sm:$0xff] %vm1030, %v1012
    // Predicated region
    $region34: #{dgcn_layers_forward.9} parent=1 // pred_check
      %p1100 = pneg %p39
    $region35: #{dgcn_layers_forward.9} parent=1 // pred_check_branch
      %1102 = sbr.rel (%p1100) target = $region37
    $region36: #{dgcn_layers_forward.9} parent=1 // pred_region
      %v1103 = vld [vmem:[#allocation4] sm:$0xff]
      %v1104 = vld [vmem:[#allocation3] sm:$0xff]
      %v1105 = vmax.f32 %v1104, 1e-20
      %v1106 = vrcp.pop %v1105
      %1108 = vset.pattern.permute.xlu0 0
      %1109 = vperm.xlu0 %1108, %v1106
      %v1110 = vpop.permute.xlu0 %1109
      %v1112 = vmul.f32 %v1103, %v1110
      %1113 = vset.pattern.permute.xlu0 1
      %1114 = vperm.xlu0 %1113, %v1106
      %v1115 = vpop.permute.xlu0 %1114
      %v1117 = vmul.f32 %v1103, %v1115
      %v1118 = vsel %vm573, %v1112, %v1117
      %v1119 = vld [vmem:[%s5] sm:$0x1]
      %v1121 = vlaneseq
      %v1122 = vshrl.u32 %v1121, 7
      %v1123 = vsub.s32 0, %v1122
      %v1124 = vrot.slane %v1119, %v1123
      %v1126 = vadd.f32 %v1118, %v1124
      %vm1127 = vcmask 261120
      %1128 = vst.msk [vmem:[%s6] sm:$0xff] %vm1127, %v1126
    $region37: #{dgcn_layers_forward.9} parent=1 // pred_fallthru
      _
    // Predicated region
    $region38: #{dgcn_layers_forward.9} parent=1 // pred_check
      _
    $region39: #{dgcn_layers_forward.9} parent=1 // pred_check_branch
      %1130 = sbr.rel (0) target = $region41
    $region40: #{dgcn_layers_forward.9} parent=1 // pred_region
      _
    $region41: #{dgcn_layers_forward.9} parent=1 // pred_fallthru
      _
    // Predicated region
    $region42: #{dgcn_layers_forward.9} parent=1 // pred_check
      _
    $region43: #{dgcn_layers_forward.9} parent=1 // pred_check_branch
      %1132 = sbr.rel (0) target = $region45
    $region44: #{dgcn_layers_forward.9} parent=1 // pred_region
      _
    $region45: #{dgcn_layers_forward.9} parent=1 // pred_fallthru
      _
    %1133 = vsyncpa [#allocation6], 1

</llo_original>
